<compile_context>
chip_gen: v6e
topology: v6e:2x2x1
jax: 0.10.0
libtpu: 0.0.40
codegen_flags: <defaults>
</compile_context>

<pallas_src>
import math

import jax
import jax.numpy as jnp
import numpy as np
from jax.experimental import pallas as pl
from jax.experimental.pallas import tpu as pltpu


# ----------------------------------------------------------------------------
# Fused kernel: one grid step == one unshared ConvNetLayer.
#   step 0          : initial e3nn Linear (then layer 0)
#   step n_conv - 1 : (layer n_conv-1 then) DirectionalDummyNodes attention
# Node features stay resident in x_out_ref (constant index_map) for all steps.
# ----------------------------------------------------------------------------
def _fused_kernel(node_ref, eemb_ref, src_ref, dst_ref,
                  w_lin_ref, w_r1_ref, w_r2_ref, w_self_ref,
                  q_ref, wk_ref, wv_ref, wo_ref,
                  x_out_ref, dummy_out_ref):
    f32 = jnp.float32
    bf16 = jnp.bfloat16
    layer = pl.program_id(0)
    n_layers = pl.num_programs(0)

    # ---- initial e3nn Linear (scalar irreps => dense matmul on MXU) --------
    @pl.when(layer == 0)
    def _():
        x_out_ref[...] = jnp.dot(node_ref[...], w_lin_ref[...],
                                 preferred_element_type=f32)          # [N,H]

    n = x_out_ref.shape[0]
    e = src_ref.shape[1]

    # ---- lane-dense one-hot gather / scatter operators (exact 0/1 bf16) ----
    row = jax.lax.broadcasted_iota(jnp.int32, (n, e), 0)              # [N,E]
    src_ohT = (row == src_ref[...]).astype(bf16)   # [N,E]: gather x[src[e]]
    dst_ohT = (row == dst_ref[...]).astype(bf16)   # [N,E]: scatter-sum to dst

    # ---- one unshared ConvNetLayer (InteractionBlock, l_max=0) -------------
    x_b = x_out_ref[...].astype(bf16)                                 # [N,H]
    # gather source-node features per edge: contract node axis, no transpose
    xs = jax.lax.dot_general(src_ohT, x_b, (((0,), (0,)), ((), ())),
                             preferred_element_type=f32)              # [E,H]
    # radial MLP on edge embeddings -> per-edge, per-channel weights
    # (independent of node features; LLO schedules it alongside the gather)
    hmid = jax.nn.silu(jnp.dot(eemb_ref[...], w_r1_ref[...],
                               preferred_element_type=f32))           # [E,R]
    ew = jnp.dot(hmid.astype(bf16), w_r2_ref[...],
                 preferred_element_type=f32)                          # [E,H]
    msg = (ew * xs).astype(bf16)                                      # [E,H]
    # scatter-sum messages onto destination nodes
    agg = jnp.dot(dst_ohT, msg, preferred_element_type=f32)           # [N,H]
    # self-interaction linear + scalar SiLU gate (resnet=False)
    x_new = jax.nn.silu(jnp.dot(agg.astype(bf16), w_self_ref[...],
                                preferred_element_type=f32))          # [N,H]
    x_out_ref[...] = x_new

    # ---- DirectionalDummyNodes (shared weights, l_max=0), last step only ---
    @pl.when(layer == n_layers - 1)
    def _():
        xb = x_new.astype(bf16)
        k = jnp.dot(xb, wk_ref[...], preferred_element_type=f32).astype(bf16)
        v = jnp.dot(xb, wv_ref[...], preferred_element_type=f32).astype(bf16)
        q = q_ref[...]                                                # [M,Dk]
        scale = 1.0 / math.sqrt(q.shape[-1])
        s = jax.lax.dot_general(q, k, (((1,), (1,)), ((), ())),
                                preferred_element_type=f32) * scale   # [M,N]
        s = s - jnp.max(s, axis=-1, keepdims=True)
        p = jnp.exp(s)
        a = p * pl.reciprocal(jnp.sum(p, axis=-1, keepdims=True), approx=True)
        dv = jnp.dot(a.astype(bf16), v, preferred_element_type=f32)   # [M,Dv]
        dummy_out_ref[...] = jnp.dot(dv.astype(bf16), wo_ref[...],
                                     preferred_element_type=f32)      # [M,Hd]


def forward(node_feats, edge_embed, src_row, dst_row, params):
    n, f_in = node_feats.shape
    e, b = edge_embed.shape
    n_conv, _, r_hid = params["w_r1"].shape
    h = params["w_lin"].shape[1]
    m, dk = params["q_dummy"].shape
    dvd = params["w_v"].shape[1]
    hd = params["w_o"].shape[1]

    def fixed(shape):
        nd = len(shape)
        return pl.BlockSpec(shape, lambda l: (0,) * nd)

    def per_layer(tail):
        zeros = (0,) * len(tail)
        return pl.BlockSpec((None,) + tail, lambda l: (l,) + zeros)

    # advisory cost estimate for XLA scheduling around the fused call
    flops_layer = 2 * (2 * n * e * h + e * b * r_hid + e * r_hid * h
                       + n * h * h)
    flops = (n_conv * flops_layer + 2 * n * f_in * h
             + 2 * (n * h * dk + n * h * dvd + m * n * dk + m * n * dvd
                    + m * dvd * hd))
    transcendentals = n_conv * (e * r_hid + n * h) + m * n
    bytes_accessed = int(
        sum(a.size * a.dtype.itemsize for a in
            (node_feats, edge_embed, src_row, dst_row,
             params["w_lin"], params["w_r1"], params["w_r2"],
             params["w_self"], params["q_dummy"], params["w_k"],
             params["w_v"], params["w_o"]))
        + n * h * 4 + m * hd * 4)

    grid_spec = pltpu.PrefetchScalarGridSpec(
        num_scalar_prefetch=0,
        grid=(n_conv,),
        in_specs=[
            fixed((n, f_in)),        # node features (fetched once, resident)
            fixed((e, b)),           # edge radial-basis embeddings
            fixed((1, e)),           # src indices, lane-dense int32
            fixed((1, e)),           # dst indices, lane-dense int32
            fixed((f_in, h)),        # initial linear weight
            per_layer((b, r_hid)),   # radial MLP layer-1 weight (streamed)
            per_layer((r_hid, h)),   # radial MLP layer-2 weight (streamed)
            per_layer((h, h)),       # self-interaction weight   (streamed)
            fixed((m, dk)),          # dummy directional queries
            fixed((h, dk)),          # key projection
            fixed((h, dvd)),         # value projection
            fixed((dvd, hd)),        # dummy output projection
        ],
        out_specs=(fixed((n, h)), fixed((m, hd))),
    )

    return pl.pallas_call(
        _fused_kernel,
        grid_spec=grid_spec,
        out_shape=(jax.ShapeDtypeStruct((n, h), jnp.float32),
                   jax.ShapeDtypeStruct((m, hd), jnp.float32)),
        compiler_params=pltpu.CompilerParams(
            dimension_semantics=("arbitrary",),
            vmem_limit_bytes=32 * 1024 * 1024),
        cost_estimate=pl.CostEstimate(flops=flops,
                                      transcendentals=transcendentals,
                                      bytes_accessed=bytes_accessed),
    )(node_feats, edge_embed, src_row, dst_row,
      params["w_lin"], params["w_r1"], params["w_r2"], params["w_self"],
      params["q_dummy"], params["w_k"], params["w_v"], params["w_o"])


# ----------------------------------------------------------------------------
# Pure-JAX reference (mirrors the kernel math, bf16 operands / f32 accumulate)
# ----------------------------------------------------------------------------
def _reference(node_feats, edge_embed, src_row, dst_row, params):
    f32, bf16 = jnp.float32, jnp.bfloat16
    n = node_feats.shape[0]
    src = src_row.reshape(-1)
    dst = dst_row.reshape(-1)
    x = jnp.dot(node_feats, params["w_lin"], preferred_element_type=f32)
    n_conv = params["w_r1"].shape[0]
    for layer in range(n_conv):
        x_b = x.astype(bf16)
        xs = x_b[src].astype(f32)
        hmid = jax.nn.silu(jnp.dot(edge_embed, params["w_r1"][layer],
                                   preferred_element_type=f32))
        ew = jnp.dot(hmid.astype(bf16), params["w_r2"][layer],
                     preferred_element_type=f32)
        msg = (ew * xs).astype(bf16).astype(f32)
        agg = jax.ops.segment_sum(msg, dst, num_segments=n)
        x = jax.nn.silu(jnp.dot(agg.astype(bf16), params["w_self"][layer],
                                preferred_element_type=f32))
    x_b = x.astype(bf16)
    k = jnp.dot(x_b, params["w_k"], preferred_element_type=f32).astype(bf16)
    v = jnp.dot(x_b, params["w_v"], preferred_element_type=f32).astype(bf16)
    q = params["q_dummy"]
    s = jax.lax.dot_general(q, k, (((1,), (1,)), ((), ())),
                            preferred_element_type=f32) / math.sqrt(q.shape[-1])
    s = s - jnp.max(s, axis=-1, keepdims=True)
    p = jnp.exp(s)
    a = p / jnp.sum(p, axis=-1, keepdims=True)
    dv = jnp.dot(a.astype(bf16), v, preferred_element_type=f32)
    dummy = jnp.dot(dv.astype(bf16), params["w_o"], preferred_element_type=f32)
    return x, dummy


if __name__ == "__main__":
    # --- small, lane-aligned deterministic problem sizes ---------------------
    N_NODES = 128    # real atoms (multiple of 8 sublanes)
    N_EDGES = 256
    F_IN = 16        # irreps_in[node_features] (scalars)
    H = 128          # feature_irreps_hidden (scalars), lane-dense
    N_CONV = 2       # n_convolutions
    B_RAD = 16       # edge (radial basis) embedding dim
    R_HID = 128      # radial MLP hidden dim
    M_DUMMY = 8      # directional dummy atoms
    D_K = 128        # irreps_key / irreps_query dim
    D_V = 128
    H_DUMMY = 128    # irreps_dummy_nodes dim

    key = jax.random.PRNGKey(0)
    keys = jax.random.split(key, 16)

    node_feats = jax.random.normal(keys[0], (N_NODES, F_IN), jnp.float32
                                   ).astype(jnp.bfloat16)
    edge_embed = jax.random.normal(keys[1], (N_EDGES, B_RAD), jnp.float32
                                   ).astype(jnp.bfloat16)
    src = jnp.arange(N_EDGES, dtype=jnp.int32) % N_NODES
    dst = (3 * jnp.arange(N_EDGES, dtype=jnp.int32) + 1) % N_NODES
    src_row = src.reshape(1, N_EDGES)   # [1,E] int32, lane-dense
    dst_row = dst.reshape(1, N_EDGES)   # [1,E] int32, lane-dense

    def w(k, shape):
        fan_in = shape[-2]
        return (jax.random.normal(k, shape, jnp.float32)
                / jnp.sqrt(float(fan_in))).astype(jnp.bfloat16)

    params = {
        "w_lin": w(keys[2], (F_IN, H)),
        # unshared per-layer conv weights, stacked on a leading layer axis
        "w_r1": w(keys[3], (N_CONV, B_RAD, R_HID)),
        "w_r2": w(keys[4], (N_CONV, R_HID, H)),
        "w_self": w(keys[5], (N_CONV, H, H)),
        # shared DirectionalDummyNodes weights (l_max=0: directional queries
        # collapse to a learnable per-dummy embedding)
        "q_dummy": w(keys[10], (M_DUMMY, D_K)),
        "w_k": w(keys[11], (H, D_K)),
        "w_v": w(keys[12], (H, D_V)),
        "w_o": w(keys[13], (D_V, H_DUMMY)),
    }

    x_out, dummy_out = forward(node_feats, edge_embed, src_row, dst_row,
                               params)
    jax.block_until_ready((x_out, dummy_out))

    assert x_out.shape == (N_NODES, H)
    assert dummy_out.shape == (M_DUMMY, H_DUMMY)
    assert bool(jnp.all(jnp.isfinite(x_out)))
    assert bool(jnp.all(jnp.isfinite(dummy_out)))

    x_ref, dummy_ref = _reference(node_feats, edge_embed, src_row, dst_row,
                                  params)
    np.testing.assert_allclose(np.asarray(x_out), np.asarray(x_ref),
                               rtol=2e-2, atol=2e-2)
    np.testing.assert_allclose(np.asarray(dummy_out), np.asarray(dummy_ref),
                               rtol=2e-2, atol=2e-2)
    print("KERNEL_OK")
</pallas_src>

<mosaic_0001>
module attributes {stable_mosaic.version = 11 : i64} {
  func.func @_fused_kernel(%arg0: i32, %arg1: memref<128x16xbf16, #tpu.memory_space<vmem>>, %arg2: memref<256x16xbf16, #tpu.memory_space<vmem>>, %arg3: memref<1x256xi32, #tpu.memory_space<vmem>>, %arg4: memref<1x256xi32, #tpu.memory_space<vmem>>, %arg5: memref<16x128xbf16, #tpu.memory_space<vmem>>, %arg6: memref<1x16x128xbf16, #tpu.memory_space<vmem>>, %arg7: memref<1x128x128xbf16, #tpu.memory_space<vmem>>, %arg8: memref<1x128x128xbf16, #tpu.memory_space<vmem>>, %arg9: memref<8x128xbf16, #tpu.memory_space<vmem>>, %arg10: memref<128x128xbf16, #tpu.memory_space<vmem>>, %arg11: memref<128x128xbf16, #tpu.memory_space<vmem>>, %arg12: memref<128x128xbf16, #tpu.memory_space<vmem>>, %arg13: memref<128x128xf32, #tpu.memory_space<vmem>>, %arg14: memref<8x128xf32, #tpu.memory_space<vmem>>) attributes {dimension_semantics = [#tpu.dimension_semantics<arbitrary>], iteration_bounds = array<i64: 2>, scalar_prefetch = 0 : i64, scratch_operands = 0 : i64, tpu.core_type = #tpu.core_type<tc>, window_params = [{pipeline_mode = #tpu.pipeline_mode<synchronous>, transform_indices = @transform_0, window_bounds = array<i64: 128, 16>}, {pipeline_mode = #tpu.pipeline_mode<synchronous>, transform_indices = @transform_1, window_bounds = array<i64: 256, 16>}, {pipeline_mode = #tpu.pipeline_mode<synchronous>, transform_indices = @transform_2, window_bounds = array<i64: 1, 256>}, {pipeline_mode = #tpu.pipeline_mode<synchronous>, transform_indices = @transform_3, window_bounds = array<i64: 1, 256>}, {pipeline_mode = #tpu.pipeline_mode<synchronous>, transform_indices = @transform_4, window_bounds = array<i64: 16, 128>}, {transform_indices = @transform_5, window_bounds = array<i64: 1, 16, 128>}, {transform_indices = @transform_6, window_bounds = array<i64: 1, 128, 128>}, {transform_indices = @transform_7, window_bounds = array<i64: 1, 128, 128>}, {pipeline_mode = #tpu.pipeline_mode<synchronous>, transform_indices = @transform_8, window_bounds = array<i64: 8, 128>}, {pipeline_mode = #tpu.pipeline_mode<synchronous>, transform_indices = @transform_9, window_bounds = array<i64: 128, 128>}, {pipeline_mode = #tpu.pipeline_mode<synchronous>, transform_indices = @transform_10, window_bounds = array<i64: 128, 128>}, {pipeline_mode = #tpu.pipeline_mode<synchronous>, transform_indices = @transform_11, window_bounds = array<i64: 128, 128>}, {pipeline_mode = #tpu.pipeline_mode<synchronous>, transform_indices = @transform_12, window_bounds = array<i64: 128, 128>}, {pipeline_mode = #tpu.pipeline_mode<synchronous>, transform_indices = @transform_13, window_bounds = array<i64: 8, 128>}]} {
    %c0_i32 = arith.constant 0 : i32
    %0 = arith.cmpi eq, %arg0, %c0_i32 : i32
    %1 = arith.extui %0 : i1 to i32
    %c0_i32_0 = arith.constant 0 : i32
    %2 = arith.cmpi ne, %1, %c0_i32_0 : i32
    scf.if %2 {
      %c0_26 = arith.constant 0 : index
      %c0_27 = arith.constant 0 : index
      %50 = vector.load %arg1[%c0_26, %c0_27] : memref<128x16xbf16, #tpu.memory_space<vmem>>, vector<128x16xbf16>
      %c0_28 = arith.constant 0 : index
      %c0_29 = arith.constant 0 : index
      %51 = vector.load %arg5[%c0_28, %c0_29] : memref<16x128xbf16, #tpu.memory_space<vmem>>, vector<16x128xbf16>
      %cst_30 = arith.constant dense<0.000000e+00> : vector<128x128xf32>
      %52 = tpu.matmul %50, %51, %cst_30 {dimension_numbers = #tpu.dot_dimension_numbers<[1], [0], [0], [1], [0, 0, 1, 1], [], []>} : vector<128x16xbf16>, vector<16x128xbf16>, vector<128x128xf32> -> vector<128x128xf32>
      %c0_31 = arith.constant 0 : index
      %c0_32 = arith.constant 0 : index
      %53 = vector.load %arg13[%c0_31, %c0_32] : memref<128x128xf32, #tpu.memory_space<vmem>>, vector<128x128xf32>
      tpu.vector_store %arg13[%c0_31, %c0_32], %52 {strides = array<i32>} : memref<128x128xf32, #tpu.memory_space<vmem>>, vector<128x128xf32>,
    } else {
    }
    %3 = tpu.iota {dimensions = array<i32: 0>} : vector<128x256xi32>
    %c0 = arith.constant 0 : index
    %c0_1 = arith.constant 0 : index
    %4 = vector.load %arg3[%c0, %c0_1] : memref<1x256xi32, #tpu.memory_space<vmem>>, vector<1x256xi32>
    %5 = vector.broadcast %4 : vector<1x256xi32> to vector<128x256xi32>
    %6 = arith.cmpi eq, %3, %5 : vector<128x256xi32>
    %7 = arith.extui %6 : vector<128x256xi1> to vector<128x256xi32>
    %8 = arith.sitofp %7 : vector<128x256xi32> to vector<128x256xf32>
    %9 = arith.truncf %8 : vector<128x256xf32> to vector<128x256xbf16>
    %c0_2 = arith.constant 0 : index
    %c0_3 = arith.constant 0 : index
    %10 = vector.load %arg4[%c0_2, %c0_3] : memref<1x256xi32, #tpu.memory_space<vmem>>, vector<1x256xi32>
    %11 = vector.broadcast %10 : vector<1x256xi32> to vector<128x256xi32>
    %12 = arith.cmpi eq, %3, %11 : vector<128x256xi32>
    %13 = arith.extui %12 : vector<128x256xi1> to vector<128x256xi32>
    %14 = arith.sitofp %13 : vector<128x256xi32> to vector<128x256xf32>
    %15 = arith.truncf %14 : vector<128x256xf32> to vector<128x256xbf16>
    %c0_4 = arith.constant 0 : index
    %c0_5 = arith.constant 0 : index
    %16 = vector.load %arg13[%c0_4, %c0_5] : memref<128x128xf32, #tpu.memory_space<vmem>>, vector<128x128xf32>
    %17 = arith.truncf %16 : vector<128x128xf32> to vector<128x128xbf16>
    %cst = arith.constant dense<0.000000e+00> : vector<256x128xf32>
    %18 = tpu.matmul %9, %17, %cst {dimension_numbers = #tpu.dot_dimension_numbers<[0], [0], [1], [1], [0, 1, 1, 1], [], []>} : vector<128x256xbf16>, vector<128x128xbf16>, vector<256x128xf32> -> vector<256x128xf32>
    %c0_6 = arith.constant 0 : index
    %c0_7 = arith.constant 0 : index
    %19 = vector.load %arg2[%c0_6, %c0_7] : memref<256x16xbf16, #tpu.memory_space<vmem>>, vector<256x16xbf16>
    %c0_8 = arith.constant 0 : index
    %c0_9 = arith.constant 0 : index
    %c0_10 = arith.constant 0 : index
    %20 = vector.load %arg6[%c0_8, %c0_9, %c0_10] : memref<1x16x128xbf16, #tpu.memory_space<vmem>>, vector<1x16x128xbf16>
    %21 = vector.shape_cast %20 : vector<1x16x128xbf16> to vector<16x128xbf16>
    %cst_11 = arith.constant dense<0.000000e+00> : vector<256x128xf32>
    %22 = tpu.matmul %19, %21, %cst_11 {dimension_numbers = #tpu.dot_dimension_numbers<[1], [0], [0], [1], [0, 0, 1, 1], [], []>} : vector<256x16xbf16>, vector<16x128xbf16>, vector<256x128xf32> -> vector<256x128xf32>
    %23 = arith.negf %22 : vector<256x128xf32>
    %24 = math.exp %23 : vector<256x128xf32>
    %cst_12 = arith.constant 1.000000e+00 : f32
    %25 = vector.broadcast %cst_12 : f32 to vector<256x128xf32>
    %26 = arith.addf %25, %24 : vector<256x128xf32>
    %27 = arith.divf %25, %26 : vector<256x128xf32>
    %28 = arith.mulf %22, %27 : vector<256x128xf32>
    %29 = arith.truncf %28 : vector<256x128xf32> to vector<256x128xbf16>
    %c0_13 = arith.constant 0 : index
    %c0_14 = arith.constant 0 : index
    %c0_15 = arith.constant 0 : index
    %30 = vector.load %arg7[%c0_13, %c0_14, %c0_15] : memref<1x128x128xbf16, #tpu.memory_space<vmem>>, vector<1x128x128xbf16>
    %31 = vector.shape_cast %30 : vector<1x128x128xbf16> to vector<128x128xbf16>
    %cst_16 = arith.constant dense<0.000000e+00> : vector<256x128xf32>
    %32 = tpu.matmul %29, %31, %cst_16 {dimension_numbers = #tpu.dot_dimension_numbers<[1], [0], [0], [1], [0, 0, 1, 1], [], []>} : vector<256x128xbf16>, vector<128x128xbf16>, vector<256x128xf32> -> vector<256x128xf32>
    %33 = arith.mulf %32, %18 : vector<256x128xf32>
    %34 = arith.truncf %33 : vector<256x128xf32> to vector<256x128xbf16>
    %cst_17 = arith.constant dense<0.000000e+00> : vector<128x128xf32>
    %35 = tpu.matmul %15, %34, %cst_17 {dimension_numbers = #tpu.dot_dimension_numbers<[1], [0], [0], [1], [0, 0, 1, 1], [], []>} : vector<128x256xbf16>, vector<256x128xbf16>, vector<128x128xf32> -> vector<128x128xf32>
    %36 = arith.truncf %35 : vector<128x128xf32> to vector<128x128xbf16>
    %c0_18 = arith.constant 0 : index
    %c0_19 = arith.constant 0 : index
    %c0_20 = arith.constant 0 : index
    %37 = vector.load %arg8[%c0_18, %c0_19, %c0_20] : memref<1x128x128xbf16, #tpu.memory_space<vmem>>, vector<1x128x128xbf16>
    %38 = vector.shape_cast %37 : vector<1x128x128xbf16> to vector<128x128xbf16>
    %cst_21 = arith.constant dense<0.000000e+00> : vector<128x128xf32>
    %39 = tpu.matmul %36, %38, %cst_21 {dimension_numbers = #tpu.dot_dimension_numbers<[1], [0], [0], [1], [0, 0, 1, 1], [], []>} : vector<128x128xbf16>, vector<128x128xbf16>, vector<128x128xf32> -> vector<128x128xf32>
    %40 = arith.negf %39 : vector<128x128xf32>
    %41 = math.exp %40 : vector<128x128xf32>
    %cst_22 = arith.constant 1.000000e+00 : f32
    %42 = vector.broadcast %cst_22 : f32 to vector<128x128xf32>
    %43 = arith.addf %42, %41 : vector<128x128xf32>
    %44 = arith.divf %42, %43 : vector<128x128xf32>
    %45 = arith.mulf %39, %44 : vector<128x128xf32>
    %c0_23 = arith.constant 0 : index
    %c0_24 = arith.constant 0 : index
    %46 = vector.load %arg13[%c0_23, %c0_24] : memref<128x128xf32, #tpu.memory_space<vmem>>, vector<128x128xf32>
    tpu.vector_store %arg13[%c0_23, %c0_24], %45 {strides = array<i32>} : memref<128x128xf32, #tpu.memory_space<vmem>>, vector<128x128xf32>,
    %c1_i32 = arith.constant 1 : i32
    %47 = arith.cmpi eq, %arg0, %c1_i32 : i32
    %48 = arith.extui %47 : i1 to i32
    %c0_i32_25 = arith.constant 0 : i32
    %49 = arith.cmpi ne, %48, %c0_i32_25 : i32
    scf.if %49 {
      %50 = arith.truncf %45 : vector<128x128xf32> to vector<128x128xbf16>
      %c0_26 = arith.constant 0 : index
      %c0_27 = arith.constant 0 : index
      %51 = vector.load %arg10[%c0_26, %c0_27] : memref<128x128xbf16, #tpu.memory_space<vmem>>, vector<128x128xbf16>
      %cst_28 = arith.constant dense<0.000000e+00> : vector<128x128xf32>
      %52 = tpu.matmul %50, %51, %cst_28 {dimension_numbers = #tpu.dot_dimension_numbers<[1], [0], [0], [1], [0, 0, 1, 1], [], []>} : vector<128x128xbf16>, vector<128x128xbf16>, vector<128x128xf32> -> vector<128x128xf32>
      %53 = arith.truncf %52 : vector<128x128xf32> to vector<128x128xbf16>
      %c0_29 = arith.constant 0 : index
      %c0_30 = arith.constant 0 : index
      %54 = vector.load %arg11[%c0_29, %c0_30] : memref<128x128xbf16, #tpu.memory_space<vmem>>, vector<128x128xbf16>
      %cst_31 = arith.constant dense<0.000000e+00> : vector<128x128xf32>
      %55 = tpu.matmul %50, %54, %cst_31 {dimension_numbers = #tpu.dot_dimension_numbers<[1], [0], [0], [1], [0, 0, 1, 1], [], []>} : vector<128x128xbf16>, vector<128x128xbf16>, vector<128x128xf32> -> vector<128x128xf32>
      %56 = arith.truncf %55 : vector<128x128xf32> to vector<128x128xbf16>
      %c0_32 = arith.constant 0 : index
      %c0_33 = arith.constant 0 : index
      %57 = vector.load %arg9[%c0_32, %c0_33] : memref<8x128xbf16, #tpu.memory_space<vmem>>, vector<8x128xbf16>
      %cst_34 = arith.constant dense<0.000000e+00> : vector<8x128xf32>
      %58 = tpu.matmul %57, %53, %cst_34 {dimension_numbers = #tpu.dot_dimension_numbers<[1], [1], [0], [0], [0, 0, 1, 0], [], []>} : vector<8x128xbf16>, vector<128x128xbf16>, vector<8x128xf32> -> vector<8x128xf32>
      %cst_35 = arith.constant 0.0883883461 : f32
      %59 = vector.broadcast %cst_35 : f32 to vector<8x128xf32>
      %60 = arith.mulf %58, %59 : vector<8x128xf32>
      %cst_36 = arith.constant dense<0xFF800000> : vector<8xf32>
      %61 = vector.multi_reduction <maximumf>, %60, %cst_36 [1] : vector<8x128xf32> to vector<8xf32>
      %62 = vector.shape_cast %61 : vector<8xf32> to vector<8x1xf32>
      %63 = vector.broadcast %62 : vector<8x1xf32> to vector<8x128xf32>
      %64 = arith.subf %60, %63 : vector<8x128xf32>
      %65 = math.exp %64 : vector<8x128xf32>
      %cst_37 = arith.constant dense<0.000000e+00> : vector<8xf32>
      %66 = vector.multi_reduction <add>, %65, %cst_37 [1] : vector<8x128xf32> to vector<8xf32>
      %67 = vector.shape_cast %66 : vector<8xf32> to vector<8x1xf32>
      %68 = tpu.reciprocal %67 {approx = true} : vector<8x1xf32> -> vector<8x1xf32>
      %69 = vector.broadcast %68 : vector<8x1xf32> to vector<8x128xf32>
      %70 = arith.mulf %65, %69 : vector<8x128xf32>
      %71 = arith.truncf %70 : vector<8x128xf32> to vector<8x128xbf16>
      %cst_38 = arith.constant dense<0.000000e+00> : vector<8x128xf32>
      %72 = tpu.matmul %71, %56, %cst_38 {dimension_numbers = #tpu.dot_dimension_numbers<[1], [0], [0], [1], [0, 0, 1, 1], [], []>} : vector<8x128xbf16>, vector<128x128xbf16>, vector<8x128xf32> -> vector<8x128xf32>
      %73 = arith.truncf %72 : vector<8x128xf32> to vector<8x128xbf16>
      %c0_39 = arith.constant 0 : index
      %c0_40 = arith.constant 0 : index
      %74 = vector.load %arg12[%c0_39, %c0_40] : memref<128x128xbf16, #tpu.memory_space<vmem>>, vector<128x128xbf16>
      %cst_41 = arith.constant dense<0.000000e+00> : vector<8x128xf32>
      %75 = tpu.matmul %73, %74, %cst_41 {dimension_numbers = #tpu.dot_dimension_numbers<[1], [0], [0], [1], [0, 0, 1, 1], [], []>} : vector<8x128xbf16>, vector<128x128xbf16>, vector<8x128xf32> -> vector<8x128xf32>
      %c0_42 = arith.constant 0 : index
      %c0_43 = arith.constant 0 : index
      %76 = vector.load %arg14[%c0_42, %c0_43] : memref<8x128xf32, #tpu.memory_space<vmem>>, vector<8x128xf32>
      tpu.vector_store %arg14[%c0_42, %c0_43], %75 {strides = array<i32>} : memref<8x128xf32, #tpu.memory_space<vmem>>, vector<8x128xf32>,
    } else {
    }
    return
  }
  func.func @transform_0(%arg0: i32) -> (i32, i32) {
    %c0_i32 = arith.constant 0 : i32
    %c0_i32_0 = arith.constant 0 : i32
    %c0_i32_1 = arith.constant 0 : i32
    return %c0_i32, %c0_i32_0 : i32, i32
  }
  func.func @transform_1(%arg0: i32) -> (i32, i32) {
    %c0_i32 = arith.constant 0 : i32
    %c0_i32_0 = arith.constant 0 : i32
    %c0_i32_1 = arith.constant 0 : i32
    return %c0_i32, %c0_i32_0 : i32, i32
  }
  func.func @transform_2(%arg0: i32) -> (i32, i32) {
    %c0_i32 = arith.constant 0 : i32
    %c0_i32_0 = arith.constant 0 : i32
    %c0_i32_1 = arith.constant 0 : i32
    return %c0_i32, %c0_i32_0 : i32, i32
  }
  func.func @transform_3(%arg0: i32) -> (i32, i32) {
    %c0_i32 = arith.constant 0 : i32
    %c0_i32_0 = arith.constant 0 : i32
    %c0_i32_1 = arith.constant 0 : i32
    return %c0_i32, %c0_i32_0 : i32, i32
  }
  func.func @transform_4(%arg0: i32) -> (i32, i32) {
    %c0_i32 = arith.constant 0 : i32
    %c0_i32_0 = arith.constant 0 : i32
    %c0_i32_1 = arith.constant 0 : i32
    return %c0_i32, %c0_i32_0 : i32, i32
  }
  func.func @transform_5(%arg0: i32) -> (i32, i32, i32) {
    %c0_i32 = arith.constant 0 : i32
    %c0_i32_0 = arith.constant 0 : i32
    %c0_i32_1 = arith.constant 0 : i32
    return %arg0, %c0_i32, %c0_i32_0 : i32, i32, i32
  }
  func.func @transform_6(%arg0: i32) -> (i32, i32, i32) {
    %c0_i32 = arith.constant 0 : i32
    %c0_i32_0 = arith.constant 0 : i32
    %c0_i32_1 = arith.constant 0 : i32
    return %arg0, %c0_i32, %c0_i32_0 : i32, i32, i32
  }
  func.func @transform_7(%arg0: i32) -> (i32, i32, i32) {
    %c0_i32 = arith.constant 0 : i32
    %c0_i32_0 = arith.constant 0 : i32
    %c0_i32_1 = arith.constant 0 : i32
    return %arg0, %c0_i32, %c0_i32_0 : i32, i32, i32
  }
  func.func @transform_8(%arg0: i32) -> (i32, i32) {
    %c0_i32 = arith.constant 0 : i32
    %c0_i32_0 = arith.constant 0 : i32
    %c0_i32_1 = arith.constant 0 : i32
    return %c0_i32, %c0_i32_0 : i32, i32
  }
  func.func @transform_9(%arg0: i32) -> (i32, i32) {
    %c0_i32 = arith.constant 0 : i32
    %c0_i32_0 = arith.constant 0 : i32
    %c0_i32_1 = arith.constant 0 : i32
    return %c0_i32, %c0_i32_0 : i32, i32
  }
  func.func @transform_10(%arg0: i32) -> (i32, i32) {
    %c0_i32 = arith.constant 0 : i32
    %c0_i32_0 = arith.constant 0 : i32
    %c0_i32_1 = arith.constant 0 : i32
    return %c0_i32, %c0_i32_0 : i32, i32
  }
  func.func @transform_11(%arg0: i32) -> (i32, i32) {
    %c0_i32 = arith.constant 0 : i32
    %c0_i32_0 = arith.constant 0 : i32
    %c0_i32_1 = arith.constant 0 : i32
    return %c0_i32, %c0_i32_0 : i32, i32
  }
  func.func @transform_12(%arg0: i32) -> (i32, i32) {
    %c0_i32 = arith.constant 0 : i32
    %c0_i32_0 = arith.constant 0 : i32
    %c0_i32_1 = arith.constant 0 : i32
    return %c0_i32, %c0_i32_0 : i32, i32
  }
  func.func @transform_13(%arg0: i32) -> (i32, i32) {
    %c0_i32 = arith.constant 0 : i32
    %c0_i32_0 = arith.constant 0 : i32
    %c0_i32_1 = arith.constant 0 : i32
    return %c0_i32, %c0_i32_0 : i32, i32
  }
}

</mosaic_0001>

<llo_original>
// kernel: tpu_custom_call.1
$region0: #{tpu_custom_call.1}
  #allocation0 [shape = 'u32[]', space=smem, size = 0x4, offset = 0x4, fixed_abs, tag = 'smem constant byte address 0x4 - core index']
  #allocation1 [shape = 'u32[144,128]{1,0:T(1,128)}', space=vmem, size = 0x12000, scoped, tag = 'internal scratch']
  %s0 = inlined_call_operand.vmem [shape: bf16[128,16], index: 0, kind: input, shape index: {}]
  %s1 = inlined_call_operand.vmem [shape: bf16[256,16], index: 1, kind: input, shape index: {}]
  %s2 = inlined_call_operand.vmem [shape: s32[1,256], index: 2, kind: input, shape index: {}]
  %s3 = inlined_call_operand.vmem [shape: s32[1,256], index: 3, kind: input, shape index: {}]
  %s4 = inlined_call_operand.vmem [shape: bf16[16,128], index: 4, kind: input, shape index: {}]
  %s5 = inlined_call_operand.vmem [shape: bf16[2,16,128], index: 5, kind: input, shape index: {}]
  %s6 = inlined_call_operand.vmem [shape: bf16[2,128,128], index: 6, kind: input, shape index: {}]
  %s7 = inlined_call_operand.hbm [shape: bf16[2,128,128], index: 7, kind: input, shape index: {}]
  %s8 = inlined_call_operand.vmem [shape: bf16[8,128], index: 8, kind: input, shape index: {}]
  %s9 = inlined_call_operand.vmem [shape: bf16[128,128], index: 9, kind: input, shape index: {}]
  %s10 = inlined_call_operand.hbm [shape: bf16[128,128], index: 10, kind: input, shape index: {}]
  %s11 = inlined_call_operand.hbm [shape: bf16[128,128], index: 11, kind: input, shape index: {}]
  %s12 = inlined_call_operand.hbm [shape: f32[128,128], index: 12, kind: output, shape index: {0}]
  %s13 = inlined_call_operand.hbm [shape: f32[8,128], index: 13, kind: output, shape index: {1}]
  %14 = xla_tuple %s12, %s13
  %s15 = sld [smem:[#allocation0]]
  $region109: #{tpu_custom_call.1} parent=0
    _
  %s17 = ssub.s32 1, %s15
  %s18 = scalar_select 0, %s17, %s15
  $region1: #{tpu_custom_call.1} parent=0
    #allocation2 [shape = 'u8[65536]{0}', space=vmem, size = 0x10000, scoped, tag = 'input window, operand 7']
    #allocation3 [shape = 's32[2]{0}', space=sflag, size = 0x8, scoped, tag = 'scoped memory for tpu_custom_call.1']
    #allocation4 [shape = 's32[2]{0}', space=sflag, size = 0x8, scoped, tag = 'scoped memory for tpu_custom_call.1']
    #allocation5 [shape = 'u8[32768]{0}', space=vmem, size = 0x8000, scoped, tag = 'input window, operand 10, single buffered']
    #allocation6 [shape = 's32[1]{0}', space=sflag, size = 0x4, scoped, tag = 'scoped memory for tpu_custom_call.1']
    #allocation7 [shape = 'u8[32768]{0}', space=vmem, size = 0x8000, scoped, tag = 'input window, operand 11, single buffered']
    #allocation8 [shape = 'u8[65536]{0}', space=vmem, size = 0x10000, scoped, tag = 'output window, operand 0, single buffered']
    #allocation9 [shape = 'u8[4096]{0}', space=vmem, size = 0x1000, scoped, tag = 'output window, operand 1, single buffered']
    #allocation10 [shape = 's32[1]{0}', space=sflag, size = 0x4, scoped, tag = 'scoped memory for tpu_custom_call.1']
    %19 = vsyncpa [#allocation3], 0
    %s20 = scalar_lea.sflag [#allocation3], 1
    %21 = vsyncpa %s20, 0
    %22 = vsyncpa [#allocation6], 0
    %23 = vsyncpa [#allocation4], 0
    %24 = vsyncpa [#allocation10], 0
    loop: start=0, step=1, limit=4
    $region2: #{tpu_custom_call.1} parent=1 // loop_pre_header
      _
    $region3: #{tpu_custom_call.1} parent=1 // loop_header
      %s26 = sphi 0, %s30
      %p27 = scmp.ge.s32.totalorder %s26, 4
      %s34 = sphi 0, %s34
      %s36 = sphi 0, %s34
      %s37 = sphi 0, %s36
      %s51 = sphi 0, %s37
      %s55 = sphi 0, %s55
      %s57 = sphi 0, %s55
      %s58 = sphi 0, %s57
      %s72 = sphi 0, %s58
      %s76 = sphi 0, %s76
      %s78 = sphi 0, %s76
      %s79 = sphi 0, %s78
      %s93 = sphi 0, %s79
      %s97 = sphi 0, %s97
      %s99 = sphi 0, %s97
      %s100 = sphi 0, %s99
      %s114 = sphi 0, %s100
      %s118 = sphi 0, %s118
      %s120 = sphi 0, %s118
      %s121 = sphi 0, %s120
      %s135 = sphi 0, %s121
      %s141 = sphi 0, %s143
      %s144 = sphi 0, %s141
      %s145 = sphi 0, %s144
      %s161 = sphi 0, %s145
      %s167 = sphi 0, %s169
      %s170 = sphi 0, %s167
      %s171 = sphi 0, %s170
      %s187 = sphi 0, %s171
      %s193 = sphi 0, %s195
      %s196 = sphi 0, %s193
      %s197 = sphi 0, %s196
      %s213 = sphi 0, %s197
      %s217 = sphi 0, %s217
      %s219 = sphi 0, %s217
      %s220 = sphi 0, %s219
      %s234 = sphi 0, %s220
      %s238 = sphi 0, %s238
      %s240 = sphi 0, %s238
      %s241 = sphi 0, %s240
      %s255 = sphi 0, %s241
      %s259 = sphi 0, %s259
      %s261 = sphi 0, %s259
      %s262 = sphi 0, %s261
      %s276 = sphi 0, %s262
      %s280 = sphi 0, %s280
      %s282 = sphi 0, %s280
      %s283 = sphi 0, %s282
      %s297 = sphi 0, %s283
      %s301 = sphi 0, %s301
      %s303 = sphi 0, %s301
      %s304 = sphi 0, %s303
      %s318 = sphi 0, %s304
      %s322 = sphi 0, %s322
      %s324 = sphi 0, %s322
      %s325 = sphi 0, %s324
      %s339 = sphi 0, %s325
    $region4: #{tpu_custom_call.1} parent=1 // loop_header_branch
      %29 = sbr.rel (%p27) target = $region8
    $region5: #{tpu_custom_call.1} parent=1 // loop_body
      %s31 = ssub.s32 %s26, 1
      %s32 = ssub.s32 %s26, 2
      %s33 = sadd.s32 %s26, 1
      %s35 = sadd.s32 %s34, 1
      %p38 = scmp.eq.s32.totalorder %s26, 1
      %p39 = scmp.ne.s32.totalorder %s34, %s36
      %p40 = scmp.eq.s32.totalorder %s26, 0
      %p41 = por %p39, %p40
      %p42 = scmp.ne.s32.totalorder %s34, %s36
      %p43 = scmp.eq.s32.totalorder %s31, 1
      %p44 = por %p42, %p43
      %p45 = scmp.ne.s32.totalorder %s36, %s37
      %p46 = scmp.eq.s32.totalorder %s31, 0
      %p47 = por %p45, %p46
      %p48 = scmp.ne.s32.totalorder %s36, %s37
      %p49 = scmp.eq.s32.totalorder %s32, 1
      %p50 = por %p48, %p49
      %p52 = scmp.ne.s32.totalorder %s37, %s51
      %p53 = scmp.eq.s32.totalorder %s32, 0
      %p54 = por %p52, %p53
      %s56 = sadd.s32 %s55, 1
      %p59 = scmp.eq.s32.totalorder %s26, 1
      %p60 = scmp.ne.s32.totalorder %s55, %s57
      %p61 = scmp.eq.s32.totalorder %s26, 0
      %p62 = por %p60, %p61
      %p63 = scmp.ne.s32.totalorder %s55, %s57
      %p64 = scmp.eq.s32.totalorder %s31, 1
      %p65 = por %p63, %p64
      %p66 = scmp.ne.s32.totalorder %s57, %s58
      %p67 = scmp.eq.s32.totalorder %s31, 0
      %p68 = por %p66, %p67
      %p69 = scmp.ne.s32.totalorder %s57, %s58
      %p70 = scmp.eq.s32.totalorder %s32, 1
      %p71 = por %p69, %p70
      %p73 = scmp.ne.s32.totalorder %s58, %s72
      %p74 = scmp.eq.s32.totalorder %s32, 0
      %p75 = por %p73, %p74
      %s77 = sadd.s32 %s76, 1
      %p80 = scmp.eq.s32.totalorder %s26, 1
      %p81 = scmp.ne.s32.totalorder %s76, %s78
      %p82 = scmp.eq.s32.totalorder %s26, 0
      %p83 = por %p81, %p82
      %p84 = scmp.ne.s32.totalorder %s76, %s78
      %p85 = scmp.eq.s32.totalorder %s31, 1
      %p86 = por %p84, %p85
      %p87 = scmp.ne.s32.totalorder %s78, %s79
      %p88 = scmp.eq.s32.totalorder %s31, 0
      %p89 = por %p87, %p88
      %p90 = scmp.ne.s32.totalorder %s78, %s79
      %p91 = scmp.eq.s32.totalorder %s32, 1
      %p92 = por %p90, %p91
      %p94 = scmp.ne.s32.totalorder %s79, %s93
      %p95 = scmp.eq.s32.totalorder %s32, 0
      %p96 = por %p94, %p95
      %s98 = sadd.s32 %s97, 1
      %p101 = scmp.eq.s32.totalorder %s26, 1
      %p102 = scmp.ne.s32.totalorder %s97, %s99
      %p103 = scmp.eq.s32.totalorder %s26, 0
      %p104 = por %p102, %p103
      %p105 = scmp.ne.s32.totalorder %s97, %s99
      %p106 = scmp.eq.s32.totalorder %s31, 1
      %p107 = por %p105, %p106
      %p108 = scmp.ne.s32.totalorder %s99, %s100
      %p109 = scmp.eq.s32.totalorder %s31, 0
      %p110 = por %p108, %p109
      %p111 = scmp.ne.s32.totalorder %s99, %s100
      %p112 = scmp.eq.s32.totalorder %s32, 1
      %p113 = por %p111, %p112
      %p115 = scmp.ne.s32.totalorder %s100, %s114
      %p116 = scmp.eq.s32.totalorder %s32, 0
      %p117 = por %p115, %p116
      %s119 = sadd.s32 %s118, 1
      %p122 = scmp.eq.s32.totalorder %s26, 1
      %p123 = scmp.ne.s32.totalorder %s118, %s120
      %p124 = scmp.eq.s32.totalorder %s26, 0
      %p125 = por %p123, %p124
      %p126 = scmp.ne.s32.totalorder %s118, %s120
      %p127 = scmp.eq.s32.totalorder %s31, 1
      %p128 = por %p126, %p127
      %p129 = scmp.ne.s32.totalorder %s120, %s121
      %p130 = scmp.eq.s32.totalorder %s31, 0
      %p131 = por %p129, %p130
      %p132 = scmp.ne.s32.totalorder %s120, %s121
      %p133 = scmp.eq.s32.totalorder %s32, 1
      %p134 = por %p132, %p133
      %p136 = scmp.ne.s32.totalorder %s121, %s135
      %p137 = scmp.eq.s32.totalorder %s32, 0
      %p138 = por %p136, %p137
      %s139 = ssub.s32 %s26, %s33
      %p140 = scmp.eq.s32.totalorder %s139, 0
      %s142 = sadd.s32 %s141, 1
      %s143 = scalar_select %p140, %s141, %s142
      %p146 = pneg %p140
      %p147 = scmp.eq.s32.totalorder %s26, 1
      %p148 = por %p146, %p147
      %p149 = scmp.ne.s32.totalorder %s141, %s144
      %p150 = scmp.eq.s32.totalorder %s26, 0
      %p151 = por %p149, %p150
      %p152 = scmp.ne.s32.totalorder %s141, %s144
      %p153 = scmp.eq.s32.totalorder %s31, 1
      %p154 = por %p152, %p153
      %p155 = scmp.ne.s32.totalorder %s144, %s145
      %p156 = scmp.eq.s32.totalorder %s31, 0
      %p157 = por %p155, %p156
      %p158 = scmp.ne.s32.totalorder %s144, %s145
      %p159 = scmp.eq.s32.totalorder %s32, 1
      %p160 = por %p158, %p159
      %p162 = scmp.ne.s32.totalorder %s145, %s161
      %p163 = scmp.eq.s32.totalorder %s32, 0
      %p164 = por %p162, %p163
      %s165 = ssub.s32 %s26, %s33
      %p166 = scmp.eq.s32.totalorder %s165, 0
      %s168 = sadd.s32 %s167, 1
      %s169 = scalar_select %p166, %s167, %s168
      %p172 = pneg %p166
      %p173 = scmp.eq.s32.totalorder %s26, 1
      %p174 = por %p172, %p173
      %p175 = scmp.ne.s32.totalorder %s167, %s170
      %p176 = scmp.eq.s32.totalorder %s26, 0
      %p177 = por %p175, %p176
      %p178 = scmp.ne.s32.totalorder %s167, %s170
      %p179 = scmp.eq.s32.totalorder %s31, 1
      %p180 = por %p178, %p179
      %p181 = scmp.ne.s32.totalorder %s170, %s171
      %p182 = scmp.eq.s32.totalorder %s31, 0
      %p183 = por %p181, %p182
      %p184 = scmp.ne.s32.totalorder %s170, %s171
      %p185 = scmp.eq.s32.totalorder %s32, 1
      %p186 = por %p184, %p185
      %p188 = scmp.ne.s32.totalorder %s171, %s187
      %p189 = scmp.eq.s32.totalorder %s32, 0
      %p190 = por %p188, %p189
      %s191 = ssub.s32 %s26, %s33
      %p192 = scmp.eq.s32.totalorder %s191, 0
      %s194 = sadd.s32 %s193, 1
      %s195 = scalar_select %p192, %s193, %s194
      %p198 = pneg %p192
      %p199 = scmp.eq.s32.totalorder %s26, 1
      %p200 = por %p198, %p199
      %p201 = scmp.ne.s32.totalorder %s193, %s196
      %p202 = scmp.eq.s32.totalorder %s26, 0
      %p203 = por %p201, %p202
      %p204 = scmp.ne.s32.totalorder %s193, %s196
      %p205 = scmp.eq.s32.totalorder %s31, 1
      %p206 = por %p204, %p205
      %p207 = scmp.ne.s32.totalorder %s196, %s197
      %p208 = scmp.eq.s32.totalorder %s31, 0
      %p209 = por %p207, %p208
      %p210 = scmp.ne.s32.totalorder %s196, %s197
      %p211 = scmp.eq.s32.totalorder %s32, 1
      %p212 = por %p210, %p211
      %p214 = scmp.ne.s32.totalorder %s197, %s213
      %p215 = scmp.eq.s32.totalorder %s32, 0
      %p216 = por %p214, %p215
      %s218 = sadd.s32 %s217, 1
      %p221 = scmp.eq.s32.totalorder %s26, 1
      %p222 = scmp.ne.s32.totalorder %s217, %s219
      %p223 = scmp.eq.s32.totalorder %s26, 0
      %p224 = por %p222, %p223
      %p225 = scmp.ne.s32.totalorder %s217, %s219
      %p226 = scmp.eq.s32.totalorder %s31, 1
      %p227 = por %p225, %p226
      %p228 = scmp.ne.s32.totalorder %s219, %s220
      %p229 = scmp.eq.s32.totalorder %s31, 0
      %p230 = por %p228, %p229
      %p231 = scmp.ne.s32.totalorder %s219, %s220
      %p232 = scmp.eq.s32.totalorder %s32, 1
      %p233 = por %p231, %p232
      %p235 = scmp.ne.s32.totalorder %s220, %s234
      %p236 = scmp.eq.s32.totalorder %s32, 0
      %p237 = por %p235, %p236
      %s239 = sadd.s32 %s238, 1
      %p242 = scmp.eq.s32.totalorder %s26, 1
      %p243 = scmp.ne.s32.totalorder %s238, %s240
      %p244 = scmp.eq.s32.totalorder %s26, 0
      %p245 = por %p243, %p244
      %p246 = scmp.ne.s32.totalorder %s238, %s240
      %p247 = scmp.eq.s32.totalorder %s31, 1
      %p248 = por %p246, %p247
      %p249 = scmp.ne.s32.totalorder %s240, %s241
      %p250 = scmp.eq.s32.totalorder %s31, 0
      %p251 = por %p249, %p250
      %p252 = scmp.ne.s32.totalorder %s240, %s241
      %p253 = scmp.eq.s32.totalorder %s32, 1
      %p254 = por %p252, %p253
      %p256 = scmp.ne.s32.totalorder %s241, %s255
      %p257 = scmp.eq.s32.totalorder %s32, 0
      %p258 = por %p256, %p257
      %s260 = sadd.s32 %s259, 1
      %p263 = scmp.eq.s32.totalorder %s26, 1
      %p264 = scmp.ne.s32.totalorder %s259, %s261
      %p265 = scmp.eq.s32.totalorder %s26, 0
      %p266 = por %p264, %p265
      %p267 = scmp.ne.s32.totalorder %s259, %s261
      %p268 = scmp.eq.s32.totalorder %s31, 1
      %p269 = por %p267, %p268
      %p270 = scmp.ne.s32.totalorder %s261, %s262
      %p271 = scmp.eq.s32.totalorder %s31, 0
      %p272 = por %p270, %p271
      %p273 = scmp.ne.s32.totalorder %s261, %s262
      %p274 = scmp.eq.s32.totalorder %s32, 1
      %p275 = por %p273, %p274
      %p277 = scmp.ne.s32.totalorder %s262, %s276
      %p278 = scmp.eq.s32.totalorder %s32, 0
      %p279 = por %p277, %p278
      %s281 = sadd.s32 %s280, 1
      %p284 = scmp.eq.s32.totalorder %s26, 1
      %p285 = scmp.ne.s32.totalorder %s280, %s282
      %p286 = scmp.eq.s32.totalorder %s26, 0
      %p287 = por %p285, %p286
      %p288 = scmp.ne.s32.totalorder %s280, %s282
      %p289 = scmp.eq.s32.totalorder %s31, 1
      %p290 = por %p288, %p289
      %p291 = scmp.ne.s32.totalorder %s282, %s283
      %p292 = scmp.eq.s32.totalorder %s31, 0
      %p293 = por %p291, %p292
      %p294 = scmp.ne.s32.totalorder %s282, %s283
      %p295 = scmp.eq.s32.totalorder %s32, 1
      %p296 = por %p294, %p295
      %p298 = scmp.ne.s32.totalorder %s283, %s297
      %p299 = scmp.eq.s32.totalorder %s32, 0
      %p300 = por %p298, %p299
      %s302 = sadd.s32 %s301, 1
      %p305 = scmp.eq.s32.totalorder %s26, 1
      %p306 = scmp.ne.s32.totalorder %s301, %s303
      %p307 = scmp.eq.s32.totalorder %s26, 0
      %p308 = por %p306, %p307
      %p309 = scmp.ne.s32.totalorder %s301, %s303
      %p310 = scmp.eq.s32.totalorder %s31, 1
      %p311 = por %p309, %p310
      %p312 = scmp.ne.s32.totalorder %s303, %s304
      %p313 = scmp.eq.s32.totalorder %s31, 0
      %p314 = por %p312, %p313
      %p315 = scmp.ne.s32.totalorder %s303, %s304
      %p316 = scmp.eq.s32.totalorder %s32, 1
      %p317 = por %p315, %p316
      %p319 = scmp.ne.s32.totalorder %s304, %s318
      %p320 = scmp.eq.s32.totalorder %s32, 0
      %p321 = por %p319, %p320
      %s323 = sadd.s32 %s322, 1
      %p326 = scmp.eq.s32.totalorder %s26, 1
      %p327 = scmp.ne.s32.totalorder %s322, %s324
      %p328 = scmp.eq.s32.totalorder %s26, 0
      %p329 = por %p327, %p328
      %p330 = scmp.ne.s32.totalorder %s322, %s324
      %p331 = scmp.eq.s32.totalorder %s31, 1
      %p332 = por %p330, %p331
      %p333 = scmp.ne.s32.totalorder %s324, %s325
      %p334 = scmp.eq.s32.totalorder %s31, 0
      %p335 = por %p333, %p334
      %p336 = scmp.ne.s32.totalorder %s324, %s325
      %p337 = scmp.eq.s32.totalorder %s32, 1
      %p338 = por %p336, %p337
      %p340 = scmp.ne.s32.totalorder %s325, %s339
      %p341 = scmp.eq.s32.totalorder %s32, 0
      %p342 = por %p340, %p341
      %p343 = scmp.le.s32.totalorder 1, %s26
      %p344 = scmp.lt.s32.totalorder %s26, 3
      %p345 = pnand %p343, %p344
      %p346 = pneg %p345
      // Predicated region
      $region9: #{tpu_custom_call.1} parent=5 // pred_check
        _
      $region10: #{tpu_custom_call.1} parent=5 // pred_check_branch
        %348 = sbr.rel (%p345) target = $region12
      $region11: #{tpu_custom_call.1} parent=5 // pred_region
        %s349 = ssub.s32 %s26, 1
        // Predicated region
        $region13: #{tpu_custom_call.1} parent=11 // pred_check
          %p350 = pneg %p47
        $region14: #{tpu_custom_call.1} parent=11 // pred_check_branch
          %352 = sbr.rel (%p350) target = $region16
        $region15: #{tpu_custom_call.1} parent=11 // pred_region
          _
        $region16: #{tpu_custom_call.1} parent=11 // pred_fallthru
          _
        // Predicated region
        $region17: #{tpu_custom_call.1} parent=11 // pred_check
          %p353 = pneg %p68
        $region18: #{tpu_custom_call.1} parent=11 // pred_check_branch
          %355 = sbr.rel (%p353) target = $region20
        $region19: #{tpu_custom_call.1} parent=11 // pred_region
          _
        $region20: #{tpu_custom_call.1} parent=11 // pred_fallthru
          _
        // Predicated region
        $region21: #{tpu_custom_call.1} parent=11 // pred_check
          %p356 = pneg %p89
        $region22: #{tpu_custom_call.1} parent=11 // pred_check_branch
          %358 = sbr.rel (%p356) target = $region24
        $region23: #{tpu_custom_call.1} parent=11 // pred_region
          _
        $region24: #{tpu_custom_call.1} parent=11 // pred_fallthru
          _
        // Predicated region
        $region25: #{tpu_custom_call.1} parent=11 // pred_check
          %p359 = pneg %p110
        $region26: #{tpu_custom_call.1} parent=11 // pred_check_branch
          %361 = sbr.rel (%p359) target = $region28
        $region27: #{tpu_custom_call.1} parent=11 // pred_region
          _
        $region28: #{tpu_custom_call.1} parent=11 // pred_fallthru
          _
        // Predicated region
        $region29: #{tpu_custom_call.1} parent=11 // pred_check
          %p362 = pneg %p131
        $region30: #{tpu_custom_call.1} parent=11 // pred_check_branch
          %364 = sbr.rel (%p362) target = $region32
        $region31: #{tpu_custom_call.1} parent=11 // pred_region
          _
        $region32: #{tpu_custom_call.1} parent=11 // pred_fallthru
          _
        // Predicated region
        $region33: #{tpu_custom_call.1} parent=11 // pred_check
          %p365 = pneg %p230
        $region34: #{tpu_custom_call.1} parent=11 // pred_check_branch
          %367 = sbr.rel (%p365) target = $region36
        $region35: #{tpu_custom_call.1} parent=11 // pred_region
          _
        $region36: #{tpu_custom_call.1} parent=11 // pred_fallthru
          _
        // Predicated region
        $region37: #{tpu_custom_call.1} parent=11 // pred_check
          %p368 = pneg %p251
        $region38: #{tpu_custom_call.1} parent=11 // pred_check_branch
          %370 = sbr.rel (%p368) target = $region40
        $region39: #{tpu_custom_call.1} parent=11 // pred_region
          _
        $region40: #{tpu_custom_call.1} parent=11 // pred_fallthru
          _
        // Predicated region
        $region41: #{tpu_custom_call.1} parent=11 // pred_check
          %p371 = pneg %p272
        $region42: #{tpu_custom_call.1} parent=11 // pred_check_branch
          %373 = sbr.rel (%p371) target = $region44
        $region43: #{tpu_custom_call.1} parent=11 // pred_region
          %s375 = ssub.s32 1024, 1024
          %376 = vsyncadd [#allocation6], %s375
          %s377 = sshll.u32 [#allocation5], 4
          %s378 = int_to_ptr.vmem [resolvable:$true] %s377
          %383 = dma.hbm_to_vmem [thread:$0]  %s10, 1024, %s378, [#allocation6], 64, 64, 4
        $region44: #{tpu_custom_call.1} parent=11 // pred_fallthru
          _
        // Predicated region
        $region45: #{tpu_custom_call.1} parent=11 // pred_check
          %p384 = pneg %p293
        $region46: #{tpu_custom_call.1} parent=11 // pred_check_branch
          %386 = sbr.rel (%p384) target = $region48
        $region47: #{tpu_custom_call.1} parent=11 // pred_region
          %s388 = ssub.s32 1024, 1024
          %389 = vsyncadd [#allocation6], %s388
          %s390 = sshll.u32 [#allocation7], 4
          %s391 = int_to_ptr.vmem [resolvable:$true] %s390
          %396 = dma.hbm_to_vmem [thread:$0]  %s11, 1024, %s391, [#allocation6], 64, 64, 4
        $region48: #{tpu_custom_call.1} parent=11 // pred_fallthru
          _
      $region12: #{tpu_custom_call.1} parent=5 // pred_fallthru
        _
      %p397 = scmp.lt.s32.totalorder %s26, 2
      // Predicated region
      $region49: #{tpu_custom_call.1} parent=5 // pred_check
        %p398 = pneg %p397
      $region50: #{tpu_custom_call.1} parent=5 // pred_check_branch
        %400 = sbr.rel (%p398) target = $region52
      $region51: #{tpu_custom_call.1} parent=5 // pred_region
        // Predicated region
        $region53: #{tpu_custom_call.1} parent=51 // pred_check
          %p401 = pneg %p151
        $region54: #{tpu_custom_call.1} parent=51 // pred_check_branch
          %403 = sbr.rel (%p401) target = $region56
        $region55: #{tpu_custom_call.1} parent=51 // pred_region
          %p404 = scmp.lt.s32.totalorder %s26, 1
          %s405 = scalar_select %p404, %s26, 1
          %s406 = smul.addr %s405, 2
          %s407 = smul.addr %s406, 4
          %s408 = scalar_lea.vmem %s5, %s407
        $region56: #{tpu_custom_call.1} parent=51 // pred_fallthru
          _
        // Predicated region
        $region57: #{tpu_custom_call.1} parent=51 // pred_check
          %p409 = pneg %p177
        $region58: #{tpu_custom_call.1} parent=51 // pred_check_branch
          %411 = sbr.rel (%p409) target = $region60
        $region59: #{tpu_custom_call.1} parent=51 // pred_region
          %p412 = scmp.lt.s32.totalorder %s26, 1
          %s413 = scalar_select %p412, %s26, 1
          %s414 = smul.addr %s413, 16
          %s415 = smul.addr %s414, 4
          %s416 = scalar_lea.vmem %s6, %s415
        $region60: #{tpu_custom_call.1} parent=51 // pred_fallthru
          _
        // Predicated region
        $region61: #{tpu_custom_call.1} parent=51 // pred_check
          %p417 = pneg %p203
        $region62: #{tpu_custom_call.1} parent=51 // pred_check_branch
          %419 = sbr.rel (%p417) target = $region64
        $region63: #{tpu_custom_call.1} parent=51 // pred_region
          %s420 = sand.u32 %s193, 1
          %s421 = scalar_lea.sflag [#allocation3], %s420
          %s422 = sand.u32 %s193, 1
          %s423 = smul.addr %s422, 64
          %s424 = scalar_lea.vmem [#allocation2], %s423
          %s426 = ssub.s32 1024, 1024
          %427 = vsyncadd %s421, %s426
          %s428 = smul.addr %s26, 16
          %s429 = smul.addr %s428, 64
          %s430 = scalar_lea.hbm %s7, %s429
          %s431 = sshll.u32 %s424, 4
          %s432 = int_to_ptr.vmem [resolvable:$true] %s431
          %437 = dma.hbm_to_vmem [thread:$0]  %s430, 1024, %s432, %s421, 64, 64, 4
        $region64: #{tpu_custom_call.1} parent=51 // pred_fallthru
          _
      $region52: #{tpu_custom_call.1} parent=5 // pred_fallthru
        _
      %p438 = scmp.le.s32.totalorder 1, %s26
      %p439 = scmp.lt.s32.totalorder %s26, 3
      %p440 = pnand %p438, %p439
      %p441 = pneg %p440
      // Predicated region
      $region65: #{tpu_custom_call.1} parent=5 // pred_check
        _
      $region66: #{tpu_custom_call.1} parent=5 // pred_check_branch
        %443 = sbr.rel (%p440) target = $region68
      $region67: #{tpu_custom_call.1} parent=5 // pred_region
        %s444 = ssub.s32 %s26, 1
        %s445 = sand.u32 %s196, 1
        %s446 = scalar_lea.sflag [#allocation3], %s445
        %s447 = sand.u32 %s196, 1
        %s448 = smul.addr %s447, 64
        %s449 = scalar_lea.vmem [#allocation2], %s448
        // Predicated region
        $region69: #{tpu_custom_call.1} parent=67 // pred_check
          %p450 = pneg %p209
        $region70: #{tpu_custom_call.1} parent=67 // pred_check_branch
          %452 = sbr.rel (%p450) target = $region72
        $region71: #{tpu_custom_call.1} parent=67 // pred_region
          %453 = dma.done %s446, 1024
        $region72: #{tpu_custom_call.1} parent=67 // pred_fallthru
          _
        // Predicated region
        $region73: #{tpu_custom_call.1} parent=67 // pred_check
          %p454 = pneg %p272
        $region74: #{tpu_custom_call.1} parent=67 // pred_check_branch
          %456 = sbr.rel (%p454) target = $region76
        $region75: #{tpu_custom_call.1} parent=67 // pred_region
          %457 = dma.done [#allocation6], 1024
        $region76: #{tpu_custom_call.1} parent=67 // pred_fallthru
          _
        // Predicated region
        $region77: #{tpu_custom_call.1} parent=67 // pred_check
          %p458 = pneg %p293
        $region78: #{tpu_custom_call.1} parent=67 // pred_check_branch
          %460 = sbr.rel (%p458) target = $region80
        $region79: #{tpu_custom_call.1} parent=67 // pred_region
          %461 = dma.done [#allocation6], 1024
        $region80: #{tpu_custom_call.1} parent=67 // pred_fallthru
          _
        %p462 = pneg %p47
        %p463 = pneg %p44
        %p464 = pneg %p68
        %p465 = pneg %p65
        %p466 = pneg %p89
        %p467 = pneg %p86
        %p468 = pneg %p110
        %p469 = pneg %p107
        %p470 = pneg %p131
        %p471 = pneg %p128
        %p472 = scmp.lt.s32.totalorder %s31, 1
        %s473 = scalar_select %p472, %s31, 1
        %s474 = smul.addr %s473, 2
        %s475 = smul.addr %s474, 4
        %s476 = scalar_lea.vmem %s5, %s475
        %p477 = pneg %p157
        %p478 = pneg %p154
        %p479 = scmp.lt.s32.totalorder %s31, 1
        %s480 = scalar_select %p479, %s31, 1
        %s481 = smul.addr %s480, 16
        %s482 = smul.addr %s481, 4
        %s483 = scalar_lea.vmem %s6, %s482
        %p484 = pneg %p183
        %p485 = pneg %p180
        %s486 = sand.u32 %s196, 1
        %s487 = scalar_lea.sflag [#allocation3], %s486
        %s488 = sand.u32 %s196, 1
        %s489 = smul.addr %s488, 64
        %s490 = scalar_lea.vmem [#allocation2], %s489
        %p491 = pneg %p209
        %p492 = pneg %p206
        %p493 = pneg %p230
        %p494 = pneg %p227
        %p495 = pneg %p251
        %p496 = pneg %p248
        %p497 = pneg %p272
        %p498 = pneg %p269
        %p499 = pneg %p293
        %p500 = pneg %p290
        %p501 = pneg %p314
        %p502 = pneg %p311
        %p503 = pneg %p335
        %p504 = pneg %p332
        %p505 = scmp.lt.s32.totalorder %s31, 1
        %s506 = scalar_select %p505, %s31, 1
        %s507 = smul.addr %s506, 2
        %s508 = smul.addr %s507, 4
        %s509 = scalar_lea.vmem %s5, %s508
        %p510 = scmp.lt.s32.totalorder %s31, 1
        %s511 = scalar_select %p510, %s31, 1
        %s512 = smul.addr %s511, 16
        %s513 = smul.addr %s512, 4
        %s514 = scalar_lea.vmem %s6, %s513
        %p516 = scmp.eq.s32.totalorder %s31, 0
        // Predicated region
        $region81: #{tpu_custom_call.1} parent=67 // pred_check
          %p517 = pneg %p516
        $region82: #{tpu_custom_call.1} parent=67 // pred_check_branch
          %519 = sbr.rel (%p517) target = $region84
        $region83: #{tpu_custom_call.1} parent=67 // pred_region
          %v520 = vld [vmem:[%s0] sm:$0xf]
          %v521 = vld [vmem:[%s0 + $0x4] sm:$0xf]
          %v522 = vld [vmem:[%s0 + $0x8] sm:$0xf]
          %v523 = vld [vmem:[%s0 + $0xc] sm:$0xf]
          %v524 = vld [vmem:[%s0 + $0x10] sm:$0xf]
          %v525 = vld [vmem:[%s0 + $0x14] sm:$0xf]
          %v526 = vld [vmem:[%s0 + $0x18] sm:$0xf]
          %v527 = vld [vmem:[%s0 + $0x1c] sm:$0xf]
          %v528 = vld [vmem:[%s0 + $0x20] sm:$0xf]
          %v529 = vld [vmem:[%s0 + $0x24] sm:$0xf]
          %v530 = vld [vmem:[%s0 + $0x28] sm:$0xf]
          %v531 = vld [vmem:[%s0 + $0x2c] sm:$0xf]
          %v532 = vld [vmem:[%s0 + $0x30] sm:$0xf]
          %v533 = vld [vmem:[%s0 + $0x34] sm:$0xf]
          %v534 = vld [vmem:[%s0 + $0x38] sm:$0xf]
          %v535 = vld [vmem:[%s0 + $0x3c] sm:$0xf]
          %v536 = vld [vmem:[%s4] sm:$0xf]
          %v537 = vld [vmem:[%s4 + $0x4] sm:$0xf]
          %v554 = vunpack.c.l.b16 %v520
          %v555 = vunpack.c.l.b16 %v521
          %v556 = vunpack.c.l.b16 %v522
          %v557 = vunpack.c.l.b16 %v523
          %v558 = vunpack.c.l.b16 %v524
          %v559 = vunpack.c.l.b16 %v525
          %v560 = vunpack.c.l.b16 %v526
          %v561 = vunpack.c.l.b16 %v527
          %v562 = vunpack.c.l.b16 %v528
          %v563 = vunpack.c.l.b16 %v529
          %v564 = vunpack.c.l.b16 %v530
          %v565 = vunpack.c.l.b16 %v531
          %v566 = vunpack.c.l.b16 %v532
          %v567 = vunpack.c.l.b16 %v533
          %v568 = vunpack.c.l.b16 %v534
          %v569 = vunpack.c.l.b16 %v535
          %v570 = vpack.c.b16 %v555, %v554
          %v571 = vpack.c.b16 %v557, %v556
          %v572 = vpack.c.b16 %v559, %v558
          %v573 = vpack.c.b16 %v561, %v560
          %v574 = vpack.c.b16 %v563, %v562
          %v575 = vpack.c.b16 %v565, %v564
          %v576 = vpack.c.b16 %v567, %v566
          %v577 = vpack.c.b16 %v569, %v568
          %v580 = vunpack.c.l.b16 %v536
          %v581 = vunpack.c.l.b16 %v537
          %v582 = vpack.c.b16 %v581, %v580
          %vm584 = vcmask 130048
          %v586 = vsel %vm584, %v570, 0
          %v589 = vsel %vm584, %v571, 0
          %v592 = vsel %vm584, %v572, 0
          %v595 = vsel %vm584, %v573, 0
          %v598 = vsel %vm584, %v574, 0
          %v601 = vsel %vm584, %v575, 0
          %v604 = vsel %vm584, %v576, 0
          %v607 = vsel %vm584, %v577, 0
          %609 = vmatprep.subr.bf16.mxu0 0
          %610 = vmatpush1.bf16.msra.mxu0 0
          %611 = vmatprep.subr.bf16.mxu0 0
          %612 = vmatpush1.bf16.msra.mxu0 0
          %613 = vmatprep.subr.bf16.mxu0 0
          %614 = vmatpush1.bf16.msra.mxu0 0
          %615 = vmatprep.subr.bf16.mxu0 0
          %616 = vmatpush1.bf16.msra.mxu0 0
          %617 = vmatprep.subr.bf16.mxu0 0
          %618 = vmatpush1.bf16.msra.mxu0 0
          %619 = vmatprep.subr.bf16.mxu0 0
          %620 = vmatpush1.bf16.msra.mxu0 0
          %621 = vmatprep.subr.bf16.mxu0 0
          %622 = vmatpush1.bf16.msra.mxu0 0
          %623 = vmatprep.subr.bf16.mxu0 0
          %624 = vmatpush1.bf16.msra.mxu0 %v582
          %625 = vmatprep.subr.bf16.mxu0 0
          %626 = vmatpush2.bf16.msra.mxu0 0
          %627 = vmatprep.subr.bf16.mxu0 0
          %628 = vmatpush2.bf16.msra.mxu0 0
          %629 = vmatprep.subr.bf16.mxu0 0
          %630 = vmatpush2.bf16.msra.mxu0 0
          %631 = vmatprep.subr.bf16.mxu0 0
          %632 = vmatpush2.bf16.msra.mxu0 0
          %633 = vmatprep.subr.bf16.mxu0 0
          %634 = vmatpush2.bf16.msra.mxu0 0
          %635 = vmatprep.subr.bf16.mxu0 0
          %636 = vmatpush2.bf16.msra.mxu0 0
          %637 = vmatprep.subr.bf16.mxu0 0
          %638 = vmatpush2.bf16.msra.mxu0 0
          %639 = vmatprep.subr.bf16.mxu0 0
          %640 = vmatpush2.bf16.msra.mxu0 0
          %641 = vmatprep.mubr.bf16.mxu0 0
          %642 = vmatmul.mubr.bf16.gmra.mxu0 %v586
          %v643 = vpop.f32.mrf.mxu0
          %v644 = vadd.f32 0.0, %v643
          %v645 = vpop.f32.mrf.mxu0
          %v646 = vpop.f32.mrf.mxu0
          %v647 = vadd.f32 0.0, %v646
          %v648 = vpop.f32.mrf.mxu0
          %649 = vmatprep.mubr.bf16.mxu0 0
          %650 = vmatmul.mubr.bf16.gmra.mxu0 %v589
          %v651 = vpop.f32.mrf.mxu0
          %v652 = vadd.f32 0.0, %v651
          %v653 = vpop.f32.mrf.mxu0
          %v654 = vpop.f32.mrf.mxu0
          %v655 = vadd.f32 0.0, %v654
          %v656 = vpop.f32.mrf.mxu0
          %657 = vmatprep.mubr.bf16.mxu0 0
          %658 = vmatmul.mubr.bf16.gmra.mxu0 %v592
          %v659 = vpop.f32.mrf.mxu0
          %v660 = vadd.f32 0.0, %v659
          %v661 = vpop.f32.mrf.mxu0
          %v662 = vpop.f32.mrf.mxu0
          %v663 = vadd.f32 0.0, %v662
          %v664 = vpop.f32.mrf.mxu0
          %665 = vmatprep.mubr.bf16.mxu0 0
          %666 = vmatmul.mubr.bf16.gmra.mxu0 %v595
          %v667 = vpop.f32.mrf.mxu0
          %v668 = vadd.f32 0.0, %v667
          %v669 = vpop.f32.mrf.mxu0
          %v670 = vpop.f32.mrf.mxu0
          %v671 = vadd.f32 0.0, %v670
          %v672 = vpop.f32.mrf.mxu0
          %673 = vmatprep.mubr.bf16.mxu0 0
          %674 = vmatmul.mubr.bf16.gmra.mxu0 %v598
          %v675 = vpop.f32.mrf.mxu0
          %v676 = vadd.f32 0.0, %v675
          %v677 = vpop.f32.mrf.mxu0
          %v678 = vpop.f32.mrf.mxu0
          %v679 = vadd.f32 0.0, %v678
          %v680 = vpop.f32.mrf.mxu0
          %681 = vmatprep.mubr.bf16.mxu0 0
          %682 = vmatmul.mubr.bf16.gmra.mxu0 %v601
          %v683 = vpop.f32.mrf.mxu0
          %v684 = vadd.f32 0.0, %v683
          %v685 = vpop.f32.mrf.mxu0
          %v686 = vpop.f32.mrf.mxu0
          %v687 = vadd.f32 0.0, %v686
          %v688 = vpop.f32.mrf.mxu0
          %689 = vmatprep.mubr.bf16.mxu0 0
          %690 = vmatmul.mubr.bf16.gmra.mxu0 %v604
          %v691 = vpop.f32.mrf.mxu0
          %v692 = vadd.f32 0.0, %v691
          %v693 = vpop.f32.mrf.mxu0
          %v694 = vpop.f32.mrf.mxu0
          %v695 = vadd.f32 0.0, %v694
          %v696 = vpop.f32.mrf.mxu0
          %697 = vmatprep.mubr.bf16.mxu0 0
          %698 = vmatmul.mubr.bf16.gmra.mxu0 %v607
          %v699 = vpop.f32.mrf.mxu0
          %v700 = vadd.f32 0.0, %v699
          %v701 = vpop.f32.mrf.mxu0
          %v702 = vpop.f32.mrf.mxu0
          %v703 = vadd.f32 0.0, %v702
          %v704 = vpop.f32.mrf.mxu0
          %705 = vdwg.mxu0
          %706 = vst [vmem:[#allocation8] sm:$0xff] %v644
          %707 = vst [vmem:[#allocation8 + $0x8] sm:$0xff] %v647
          %708 = vst [vmem:[#allocation8 + $0x10] sm:$0xff] %v652
          %709 = vst [vmem:[#allocation8 + $0x18] sm:$0xff] %v655
          %710 = vst [vmem:[#allocation8 + $0x20] sm:$0xff] %v660
          %711 = vst [vmem:[#allocation8 + $0x28] sm:$0xff] %v663
          %712 = vst [vmem:[#allocation8 + $0x30] sm:$0xff] %v668
          %713 = vst [vmem:[#allocation8 + $0x38] sm:$0xff] %v671
          %714 = vst [vmem:[#allocation8 + $0x40] sm:$0xff] %v676
          %715 = vst [vmem:[#allocation8 + $0x48] sm:$0xff] %v679
          %716 = vst [vmem:[#allocation8 + $0x50] sm:$0xff] %v684
          %717 = vst [vmem:[#allocation8 + $0x58] sm:$0xff] %v687
          %718 = vst [vmem:[#allocation8 + $0x60] sm:$0xff] %v692
          %719 = vst [vmem:[#allocation8 + $0x68] sm:$0xff] %v695
          %720 = vst [vmem:[#allocation8 + $0x70] sm:$0xff] %v700
          %721 = vst [vmem:[#allocation8 + $0x78] sm:$0xff] %v703
        $region84: #{tpu_custom_call.1} parent=67 // pred_fallthru
          _
        %v722 = vlaneseq
        %v723 = vshrl.u32 %v722, 7
        %v724 = vadd.s32 %v723, 8
        %v725 = vadd.s32 %v723, 16
        %v726 = vadd.s32 %v723, 24
        %v727 = vadd.s32 %v723, 32
        %v728 = vadd.s32 %v723, 40
        %v729 = vadd.s32 %v723, 48
        %v730 = vadd.s32 %v723, 56
        %v731 = vadd.s32 %v723, 64
        %v732 = vadd.s32 %v723, 72
        %v733 = vadd.s32 %v723, 80
        %v734 = vadd.s32 %v723, 88
        %v735 = vadd.s32 %v723, 96
        %v736 = vadd.s32 %v723, 104
        %v737 = vadd.s32 %v723, 112
        %v738 = vadd.s32 %v723, 120
        %v739 = vld [vmem:[%s2] sm:$0x3]
        %v740 = vlaneseq
        %v741 = vshrl.u32 %v740, 7
        %v742 = vsub.s32 0, %v741
        %v743 = vrot.slane %v739, %v742
        %v744 = vlaneseq
        %v745 = vshrl.u32 %v744, 7
        %v746 = vsub.s32 1, %v745
        %v747 = vrot.slane %v739, %v746
        %vm748 = vcmp.eq.s32.totalorder %v723, %v743
        %vm749 = vcmp.eq.s32.totalorder %v723, %v747
        %vm750 = vcmp.eq.s32.totalorder %v724, %v743
        %vm751 = vcmp.eq.s32.totalorder %v724, %v747
        %vm752 = vcmp.eq.s32.totalorder %v725, %v743
        %vm753 = vcmp.eq.s32.totalorder %v725, %v747
        %vm754 = vcmp.eq.s32.totalorder %v726, %v743
        %vm755 = vcmp.eq.s32.totalorder %v726, %v747
        %vm756 = vcmp.eq.s32.totalorder %v727, %v743
        %vm757 = vcmp.eq.s32.totalorder %v727, %v747
        %vm758 = vcmp.eq.s32.totalorder %v728, %v743
        %vm759 = vcmp.eq.s32.totalorder %v728, %v747
        %vm760 = vcmp.eq.s32.totalorder %v729, %v743
        %vm761 = vcmp.eq.s32.totalorder %v729, %v747
        %vm762 = vcmp.eq.s32.totalorder %v730, %v743
        %vm763 = vcmp.eq.s32.totalorder %v730, %v747
        %vm764 = vcmp.eq.s32.totalorder %v731, %v743
        %vm765 = vcmp.eq.s32.totalorder %v731, %v747
        %vm766 = vcmp.eq.s32.totalorder %v732, %v743
        %vm767 = vcmp.eq.s32.totalorder %v732, %v747
        %vm768 = vcmp.eq.s32.totalorder %v733, %v743
        %vm769 = vcmp.eq.s32.totalorder %v733, %v747
        %vm770 = vcmp.eq.s32.totalorder %v734, %v743
        %vm771 = vcmp.eq.s32.totalorder %v734, %v747
        %vm772 = vcmp.eq.s32.totalorder %v735, %v743
        %vm773 = vcmp.eq.s32.totalorder %v735, %v747
        %vm774 = vcmp.eq.s32.totalorder %v736, %v743
        %vm775 = vcmp.eq.s32.totalorder %v736, %v747
        %vm776 = vcmp.eq.s32.totalorder %v737, %v743
        %vm777 = vcmp.eq.s32.totalorder %v737, %v747
        %vm778 = vcmp.eq.s32.totalorder %v738, %v743
        %vm779 = vcmp.eq.s32.totalorder %v738, %v747
        %v780 = vsel %vm748, 1, 0
        %v781 = vsel %vm749, 1, 0
        %v782 = vsel %vm750, 1, 0
        %v783 = vsel %vm751, 1, 0
        %v784 = vsel %vm752, 1, 0
        %v785 = vsel %vm753, 1, 0
        %v786 = vsel %vm754, 1, 0
        %v787 = vsel %vm755, 1, 0
        %v788 = vsel %vm756, 1, 0
        %v789 = vsel %vm757, 1, 0
        %v790 = vsel %vm758, 1, 0
        %v791 = vsel %vm759, 1, 0
        %v792 = vsel %vm760, 1, 0
        %v793 = vsel %vm761, 1, 0
        %v794 = vsel %vm762, 1, 0
        %v795 = vsel %vm763, 1, 0
        %v796 = vsel %vm764, 1, 0
        %v797 = vsel %vm765, 1, 0
        %v798 = vsel %vm766, 1, 0
        %v799 = vsel %vm767, 1, 0
        %v800 = vsel %vm768, 1, 0
        %v801 = vsel %vm769, 1, 0
        %v802 = vsel %vm770, 1, 0
        %v803 = vsel %vm771, 1, 0
        %v804 = vsel %vm772, 1, 0
        %v805 = vsel %vm773, 1, 0
        %v806 = vsel %vm774, 1, 0
        %v807 = vsel %vm775, 1, 0
        %v808 = vsel %vm776, 1, 0
        %v809 = vsel %vm777, 1, 0
        %v810 = vsel %vm778, 1, 0
        %v811 = vsel %vm779, 1, 0
        %v812 = vcvt.s32.f32 %v780
        %v813 = vcvt.s32.f32 %v781
        %v814 = vcvt.s32.f32 %v782
        %v815 = vcvt.s32.f32 %v783
        %v816 = vcvt.s32.f32 %v784
        %v817 = vcvt.s32.f32 %v785
        %v818 = vcvt.s32.f32 %v786
        %v819 = vcvt.s32.f32 %v787
        %v820 = vcvt.s32.f32 %v788
        %v821 = vcvt.s32.f32 %v789
        %v822 = vcvt.s32.f32 %v790
        %v823 = vcvt.s32.f32 %v791
        %v824 = vcvt.s32.f32 %v792
        %v825 = vcvt.s32.f32 %v793
        %v826 = vcvt.s32.f32 %v794
        %v827 = vcvt.s32.f32 %v795
        %v828 = vcvt.s32.f32 %v796
        %v829 = vcvt.s32.f32 %v797
        %v830 = vcvt.s32.f32 %v798
        %v831 = vcvt.s32.f32 %v799
        %v832 = vcvt.s32.f32 %v800
        %v833 = vcvt.s32.f32 %v801
        %v834 = vcvt.s32.f32 %v802
        %v835 = vcvt.s32.f32 %v803
        %v836 = vcvt.s32.f32 %v804
        %v837 = vcvt.s32.f32 %v805
        %v838 = vcvt.s32.f32 %v806
        %v839 = vcvt.s32.f32 %v807
        %v840 = vcvt.s32.f32 %v808
        %v841 = vcvt.s32.f32 %v809
        %v842 = vcvt.s32.f32 %v810
        %v843 = vcvt.s32.f32 %v811
        %v844 = vpack.c.bf16 %v814, %v812
        %v845 = vpack.c.bf16 %v815, %v813
        %v846 = vpack.c.bf16 %v818, %v816
        %v847 = vpack.c.bf16 %v819, %v817
        %v848 = vpack.c.bf16 %v822, %v820
        %v849 = vpack.c.bf16 %v823, %v821
        %v850 = vpack.c.bf16 %v826, %v824
        %v851 = vpack.c.bf16 %v827, %v825
        %v852 = vpack.c.bf16 %v830, %v828
        %v853 = vpack.c.bf16 %v831, %v829
        %v854 = vpack.c.bf16 %v834, %v832
        %v855 = vpack.c.bf16 %v835, %v833
        %v856 = vpack.c.bf16 %v838, %v836
        %v857 = vpack.c.bf16 %v839, %v837
        %v858 = vpack.c.bf16 %v842, %v840
        %v859 = vpack.c.bf16 %v843, %v841
        %v860 = vld [vmem:[%s3] sm:$0x3]
        %v861 = vlaneseq
        %v862 = vshrl.u32 %v861, 7
        %v863 = vsub.s32 0, %v862
        %v864 = vrot.slane %v860, %v863
        %v865 = vlaneseq
        %v866 = vshrl.u32 %v865, 7
        %v867 = vsub.s32 1, %v866
        %v868 = vrot.slane %v860, %v867
        %vm869 = vcmp.eq.s32.totalorder %v723, %v864
        %vm870 = vcmp.eq.s32.totalorder %v723, %v868
        %vm871 = vcmp.eq.s32.totalorder %v724, %v864
        %vm872 = vcmp.eq.s32.totalorder %v724, %v868
        %vm873 = vcmp.eq.s32.totalorder %v725, %v864
        %vm874 = vcmp.eq.s32.totalorder %v725, %v868
        %vm875 = vcmp.eq.s32.totalorder %v726, %v864
        %vm876 = vcmp.eq.s32.totalorder %v726, %v868
        %vm877 = vcmp.eq.s32.totalorder %v727, %v864
        %vm878 = vcmp.eq.s32.totalorder %v727, %v868
        %vm879 = vcmp.eq.s32.totalorder %v728, %v864
        %vm880 = vcmp.eq.s32.totalorder %v728, %v868
        %vm881 = vcmp.eq.s32.totalorder %v729, %v864
        %vm882 = vcmp.eq.s32.totalorder %v729, %v868
        %vm883 = vcmp.eq.s32.totalorder %v730, %v864
        %vm884 = vcmp.eq.s32.totalorder %v730, %v868
        %vm885 = vcmp.eq.s32.totalorder %v731, %v864
        %vm886 = vcmp.eq.s32.totalorder %v731, %v868
        %vm887 = vcmp.eq.s32.totalorder %v732, %v864
        %vm888 = vcmp.eq.s32.totalorder %v732, %v868
        %vm889 = vcmp.eq.s32.totalorder %v733, %v864
        %vm890 = vcmp.eq.s32.totalorder %v733, %v868
        %vm891 = vcmp.eq.s32.totalorder %v734, %v864
        %vm892 = vcmp.eq.s32.totalorder %v734, %v868
        %vm893 = vcmp.eq.s32.totalorder %v735, %v864
        %vm894 = vcmp.eq.s32.totalorder %v735, %v868
        %vm895 = vcmp.eq.s32.totalorder %v736, %v864
        %vm896 = vcmp.eq.s32.totalorder %v736, %v868
        %vm897 = vcmp.eq.s32.totalorder %v737, %v864
        %vm898 = vcmp.eq.s32.totalorder %v737, %v868
        %vm899 = vcmp.eq.s32.totalorder %v738, %v864
        %vm900 = vcmp.eq.s32.totalorder %v738, %v868
        %v901 = vsel %vm869, 1, 0
        %v902 = vsel %vm870, 1, 0
        %v903 = vsel %vm871, 1, 0
        %v904 = vsel %vm872, 1, 0
        %v905 = vsel %vm873, 1, 0
        %v906 = vsel %vm874, 1, 0
        %v907 = vsel %vm875, 1, 0
        %v908 = vsel %vm876, 1, 0
        %v909 = vsel %vm877, 1, 0
        %v910 = vsel %vm878, 1, 0
        %v911 = vsel %vm879, 1, 0
        %v912 = vsel %vm880, 1, 0
        %v913 = vsel %vm881, 1, 0
        %v914 = vsel %vm882, 1, 0
        %v915 = vsel %vm883, 1, 0
        %v916 = vsel %vm884, 1, 0
        %v917 = vsel %vm885, 1, 0
        %v918 = vsel %vm886, 1, 0
        %v919 = vsel %vm887, 1, 0
        %v920 = vsel %vm888, 1, 0
        %v921 = vsel %vm889, 1, 0
        %v922 = vsel %vm890, 1, 0
        %v923 = vsel %vm891, 1, 0
        %v924 = vsel %vm892, 1, 0
        %v925 = vsel %vm893, 1, 0
        %v926 = vsel %vm894, 1, 0
        %v927 = vsel %vm895, 1, 0
        %v928 = vsel %vm896, 1, 0
        %v929 = vsel %vm897, 1, 0
        %v930 = vsel %vm898, 1, 0
        %v931 = vsel %vm899, 1, 0
        %v932 = vsel %vm900, 1, 0
        %v933 = vcvt.s32.f32 %v901
        %v934 = vcvt.s32.f32 %v902
        %v935 = vcvt.s32.f32 %v903
        %v936 = vcvt.s32.f32 %v904
        %v937 = vcvt.s32.f32 %v905
        %v938 = vcvt.s32.f32 %v906
        %v939 = vcvt.s32.f32 %v907
        %v940 = vcvt.s32.f32 %v908
        %v941 = vcvt.s32.f32 %v909
        %v942 = vcvt.s32.f32 %v910
        %v943 = vcvt.s32.f32 %v911
        %v944 = vcvt.s32.f32 %v912
        %v945 = vcvt.s32.f32 %v913
        %v946 = vcvt.s32.f32 %v914
        %v947 = vcvt.s32.f32 %v915
        %v948 = vcvt.s32.f32 %v916
        %v949 = vcvt.s32.f32 %v917
        %v950 = vcvt.s32.f32 %v918
        %v951 = vcvt.s32.f32 %v919
        %v952 = vcvt.s32.f32 %v920
        %v953 = vcvt.s32.f32 %v921
        %v954 = vcvt.s32.f32 %v922
        %v955 = vcvt.s32.f32 %v923
        %v956 = vcvt.s32.f32 %v924
        %v957 = vcvt.s32.f32 %v925
        %v958 = vcvt.s32.f32 %v926
        %v959 = vcvt.s32.f32 %v927
        %v960 = vcvt.s32.f32 %v928
        %v961 = vcvt.s32.f32 %v929
        %v962 = vcvt.s32.f32 %v930
        %v963 = vcvt.s32.f32 %v931
        %v964 = vcvt.s32.f32 %v932
        %v965 = vpack.c.bf16 %v935, %v933
        %v966 = vpack.c.bf16 %v936, %v934
        %v967 = vpack.c.bf16 %v939, %v937
        %v968 = vpack.c.bf16 %v940, %v938
        %v969 = vpack.c.bf16 %v943, %v941
        %v970 = vpack.c.bf16 %v944, %v942
        %v971 = vpack.c.bf16 %v947, %v945
        %v972 = vpack.c.bf16 %v948, %v946
        %v973 = vpack.c.bf16 %v951, %v949
        %v974 = vpack.c.bf16 %v952, %v950
        %v975 = vpack.c.bf16 %v955, %v953
        %v976 = vpack.c.bf16 %v956, %v954
        %v977 = vpack.c.bf16 %v959, %v957
        %v978 = vpack.c.bf16 %v960, %v958
        %v979 = vpack.c.bf16 %v963, %v961
        %v980 = vpack.c.bf16 %v964, %v962
        %v981 = vld [vmem:[#allocation8] sm:$0xff]
        %v982 = vld [vmem:[#allocation8 + $0x8] sm:$0xff]
        %v983 = vld [vmem:[#allocation8 + $0x10] sm:$0xff]
        %v984 = vld [vmem:[#allocation8 + $0x18] sm:$0xff]
        %v985 = vld [vmem:[#allocation8 + $0x20] sm:$0xff]
        %v986 = vld [vmem:[#allocation8 + $0x28] sm:$0xff]
        %v987 = vld [vmem:[#allocation8 + $0x30] sm:$0xff]
        %v988 = vld [vmem:[#allocation8 + $0x38] sm:$0xff]
        %v989 = vld [vmem:[#allocation8 + $0x40] sm:$0xff]
        %v990 = vld [vmem:[#allocation8 + $0x48] sm:$0xff]
        %v991 = vld [vmem:[#allocation8 + $0x50] sm:$0xff]
        %v992 = vld [vmem:[#allocation8 + $0x58] sm:$0xff]
        %v993 = vld [vmem:[#allocation8 + $0x60] sm:$0xff]
        %v994 = vld [vmem:[#allocation8 + $0x68] sm:$0xff]
        %v995 = vld [vmem:[#allocation8 + $0x70] sm:$0xff]
        %v996 = vld [vmem:[#allocation8 + $0x78] sm:$0xff]
        %v997 = vpack.c.bf16 %v982, %v981
        %v998 = vpack.c.bf16 %v984, %v983
        %v999 = vpack.c.bf16 %v986, %v985
        %v1000 = vpack.c.bf16 %v988, %v987
        %v1001 = vpack.c.bf16 %v990, %v989
        %v1002 = vpack.c.bf16 %v992, %v991
        %v1003 = vpack.c.bf16 %v994, %v993
        %v1004 = vpack.c.bf16 %v996, %v995
        %1005 = vxpose.xlu0.c.b16.start [1/8] %v844, 128
        %1006 = vxpose.xlu0.c.b16.cont [2/8] %v846, 128
        %1007 = vxpose.xlu0.c.b16.cont [3/8] %v848, 128
        %1008 = vxpose.xlu0.c.b16.cont [4/8] %v850, 128
        %1009 = vxpose.xlu0.c.b16.cont [5/8] %v852, 128
        %1010 = vxpose.xlu0.c.b16.cont [6/8] %v854, 128
        %1011 = vxpose.xlu0.c.b16.cont [7/8] %v856, 128
        %1012 = vxpose.xlu0.c.b16.end [8/8] %v858, 128
        %v1013 = vpop.trf.xlu0
        %v1014 = vpop.trf.xlu0
        %v1015 = vpop.trf.xlu0
        %v1016 = vpop.trf.xlu0
        %v1017 = vpop.trf.xlu0
        %v1018 = vpop.trf.xlu0
        %v1019 = vpop.trf.xlu0
        %v1020 = vpop.trf.xlu0
        %1021 = vxpose.xlu0.c.b16.start [1/8] %v845, 128
        %1022 = vxpose.xlu0.c.b16.cont [2/8] %v847, 128
        %1023 = vxpose.xlu0.c.b16.cont [3/8] %v849, 128
        %1024 = vxpose.xlu0.c.b16.cont [4/8] %v851, 128
        %1025 = vxpose.xlu0.c.b16.cont [5/8] %v853, 128
        %1026 = vxpose.xlu0.c.b16.cont [6/8] %v855, 128
        %1027 = vxpose.xlu0.c.b16.cont [7/8] %v857, 128
        %1028 = vxpose.xlu0.c.b16.end [8/8] %v859, 128
        %v1029 = vpop.trf.xlu0
        %v1030 = vpop.trf.xlu0
        %v1031 = vpop.trf.xlu0
        %v1032 = vpop.trf.xlu0
        %v1033 = vpop.trf.xlu0
        %v1034 = vpop.trf.xlu0
        %v1035 = vpop.trf.xlu0
        %v1036 = vpop.trf.xlu0
        %1037 = vmatprep.subr.bf16.mxu0 0
        %1038 = vmatpush1.bf16.msra.mxu0 %v1004
        %1039 = vmatprep.subr.bf16.mxu0 0
        %1040 = vmatpush1.bf16.msra.mxu0 %v1003
        %1041 = vmatprep.subr.bf16.mxu0 0
        %1042 = vmatpush1.bf16.msra.mxu0 %v1002
        %1043 = vmatprep.subr.bf16.mxu0 0
        %1044 = vmatpush1.bf16.msra.mxu0 %v1001
        %1045 = vmatprep.subr.bf16.mxu0 0
        %1046 = vmatpush1.bf16.msra.mxu0 %v1000
        %1047 = vmatprep.subr.bf16.mxu0 0
        %1048 = vmatpush1.bf16.msra.mxu0 %v999
        %1049 = vmatprep.subr.bf16.mxu0 0
        %1050 = vmatpush1.bf16.msra.mxu0 %v998
        %1051 = vmatprep.subr.bf16.mxu0 0
        %1052 = vmatpush1.bf16.msra.mxu0 %v997
        %1053 = vmatprep.subr.bf16.mxu0 0
        %1054 = vmatpush2.bf16.msra.mxu0 0
        %1055 = vmatprep.subr.bf16.mxu0 0
        %1056 = vmatpush2.bf16.msra.mxu0 0
        %1057 = vmatprep.subr.bf16.mxu0 0
        %1058 = vmatpush2.bf16.msra.mxu0 0
        %1059 = vmatprep.subr.bf16.mxu0 0
        %1060 = vmatpush2.bf16.msra.mxu0 0
        %1061 = vmatprep.subr.bf16.mxu0 0
        %1062 = vmatpush2.bf16.msra.mxu0 0
        %1063 = vmatprep.subr.bf16.mxu0 0
        %1064 = vmatpush2.bf16.msra.mxu0 0
        %1065 = vmatprep.subr.bf16.mxu0 0
        %1066 = vmatpush2.bf16.msra.mxu0 0
        %1067 = vmatprep.subr.bf16.mxu0 0
        %1068 = vmatpush2.bf16.msra.mxu0 0
        %1069 = vmatprep.mubr.bf16.mxu0 0
        %1070 = vmatmul.mubr.bf16.gmra.mxu0 %v1013
        %v1071 = vpop.f32.mrf.mxu0
        %v1072 = vadd.f32 0.0, %v1071
        %v1073 = vpop.f32.mrf.mxu0
        %v1074 = vpop.f32.mrf.mxu0
        %v1075 = vadd.f32 0.0, %v1074
        %v1076 = vpop.f32.mrf.mxu0
        %1077 = vmatprep.mubr.bf16.mxu0 0
        %1078 = vmatmul.mubr.bf16.gmra.mxu0 %v1014
        %v1079 = vpop.f32.mrf.mxu0
        %v1080 = vadd.f32 0.0, %v1079
        %v1081 = vpop.f32.mrf.mxu0
        %v1082 = vpop.f32.mrf.mxu0
        %v1083 = vadd.f32 0.0, %v1082
        %v1084 = vpop.f32.mrf.mxu0
        %1085 = vmatprep.mubr.bf16.mxu0 0
        %1086 = vmatmul.mubr.bf16.gmra.mxu0 %v1015
        %v1087 = vpop.f32.mrf.mxu0
        %v1088 = vadd.f32 0.0, %v1087
        %v1089 = vpop.f32.mrf.mxu0
        %v1090 = vpop.f32.mrf.mxu0
        %v1091 = vadd.f32 0.0, %v1090
        %v1092 = vpop.f32.mrf.mxu0
        %1093 = vmatprep.mubr.bf16.mxu0 0
        %1094 = vmatmul.mubr.bf16.gmra.mxu0 %v1016
        %v1095 = vpop.f32.mrf.mxu0
        %v1096 = vadd.f32 0.0, %v1095
        %v1097 = vpop.f32.mrf.mxu0
        %v1098 = vpop.f32.mrf.mxu0
        %v1099 = vadd.f32 0.0, %v1098
        %v1100 = vpop.f32.mrf.mxu0
        %1101 = vmatprep.mubr.bf16.mxu0 0
        %1102 = vmatmul.mubr.bf16.gmra.mxu0 %v1017
        %v1103 = vpop.f32.mrf.mxu0
        %v1104 = vadd.f32 0.0, %v1103
        %v1105 = vpop.f32.mrf.mxu0
        %v1106 = vpop.f32.mrf.mxu0
        %v1107 = vadd.f32 0.0, %v1106
        %v1108 = vpop.f32.mrf.mxu0
        %1109 = vmatprep.mubr.bf16.mxu0 0
        %1110 = vmatmul.mubr.bf16.gmra.mxu0 %v1018
        %v1111 = vpop.f32.mrf.mxu0
        %v1112 = vadd.f32 0.0, %v1111
        %v1113 = vpop.f32.mrf.mxu0
        %v1114 = vpop.f32.mrf.mxu0
        %v1115 = vadd.f32 0.0, %v1114
        %v1116 = vpop.f32.mrf.mxu0
        %1117 = vmatprep.mubr.bf16.mxu0 0
        %1118 = vmatmul.mubr.bf16.gmra.mxu0 %v1019
        %v1119 = vpop.f32.mrf.mxu0
        %v1120 = vadd.f32 0.0, %v1119
        %v1121 = vpop.f32.mrf.mxu0
        %v1122 = vpop.f32.mrf.mxu0
        %v1123 = vadd.f32 0.0, %v1122
        %v1124 = vpop.f32.mrf.mxu0
        %1125 = vmatprep.mubr.bf16.mxu0 0
        %1126 = vmatmul.mubr.bf16.gmra.mxu0 %v1020
        %v1127 = vpop.f32.mrf.mxu0
        %v1128 = vadd.f32 0.0, %v1127
        %v1129 = vpop.f32.mrf.mxu0
        %v1130 = vpop.f32.mrf.mxu0
        %v1131 = vadd.f32 0.0, %v1130
        %v1132 = vpop.f32.mrf.mxu0
        %1133 = vmatprep.mubr.bf16.mxu0 0
        %1134 = vmatmul.mubr.bf16.gmra.mxu0 %v1029
        %v1135 = vpop.f32.mrf.mxu0
        %v1136 = vadd.f32 0.0, %v1135
        %v1137 = vpop.f32.mrf.mxu0
        %v1138 = vpop.f32.mrf.mxu0
        %v1139 = vadd.f32 0.0, %v1138
        %v1140 = vpop.f32.mrf.mxu0
        %1141 = vmatprep.mubr.bf16.mxu0 0
        %1142 = vmatmul.mubr.bf16.gmra.mxu0 %v1030
        %v1143 = vpop.f32.mrf.mxu0
        %v1144 = vadd.f32 0.0, %v1143
        %v1145 = vpop.f32.mrf.mxu0
        %v1146 = vpop.f32.mrf.mxu0
        %v1147 = vadd.f32 0.0, %v1146
        %v1148 = vpop.f32.mrf.mxu0
        %1149 = vmatprep.mubr.bf16.mxu0 0
        %1150 = vmatmul.mubr.bf16.gmra.mxu0 %v1031
        %v1151 = vpop.f32.mrf.mxu0
        %v1152 = vadd.f32 0.0, %v1151
        %v1153 = vpop.f32.mrf.mxu0
        %v1154 = vpop.f32.mrf.mxu0
        %v1155 = vadd.f32 0.0, %v1154
        %v1156 = vpop.f32.mrf.mxu0
        %1157 = vmatprep.mubr.bf16.mxu0 0
        %1158 = vmatmul.mubr.bf16.gmra.mxu0 %v1032
        %v1159 = vpop.f32.mrf.mxu0
        %v1160 = vadd.f32 0.0, %v1159
        %v1161 = vpop.f32.mrf.mxu0
        %v1162 = vpop.f32.mrf.mxu0
        %v1163 = vadd.f32 0.0, %v1162
        %v1164 = vpop.f32.mrf.mxu0
        %1165 = vmatprep.mubr.bf16.mxu0 0
        %1166 = vmatmul.mubr.bf16.gmra.mxu0 %v1033
        %v1167 = vpop.f32.mrf.mxu0
        %v1168 = vadd.f32 0.0, %v1167
        %v1169 = vpop.f32.mrf.mxu0
        %v1170 = vpop.f32.mrf.mxu0
        %v1171 = vadd.f32 0.0, %v1170
        %v1172 = vpop.f32.mrf.mxu0
        %1173 = vmatprep.mubr.bf16.mxu0 0
        %1174 = vmatmul.mubr.bf16.gmra.mxu0 %v1034
        %v1175 = vpop.f32.mrf.mxu0
        %v1176 = vadd.f32 0.0, %v1175
        %v1177 = vpop.f32.mrf.mxu0
        %v1178 = vpop.f32.mrf.mxu0
        %v1179 = vadd.f32 0.0, %v1178
        %v1180 = vpop.f32.mrf.mxu0
        %1181 = vmatprep.mubr.bf16.mxu0 0
        %1182 = vmatmul.mubr.bf16.gmra.mxu0 %v1035
        %v1183 = vpop.f32.mrf.mxu0
        %v1184 = vadd.f32 0.0, %v1183
        %v1185 = vpop.f32.mrf.mxu0
        %v1186 = vpop.f32.mrf.mxu0
        %v1187 = vadd.f32 0.0, %v1186
        %v1188 = vpop.f32.mrf.mxu0
        %1189 = vmatprep.mubr.bf16.mxu0 0
        %1190 = vmatmul.mubr.bf16.gmra.mxu0 %v1036
        %v1191 = vpop.f32.mrf.mxu0
        %v1192 = vadd.f32 0.0, %v1191
        %v1193 = vpop.f32.mrf.mxu0
        %v1194 = vpop.f32.mrf.mxu0
        %v1195 = vadd.f32 0.0, %v1194
        %v1196 = vpop.f32.mrf.mxu0
        %1197 = vdwg.mxu0
        %v1198 = vld [vmem:[%s1] sm:$0xf]
        %v1199 = vld [vmem:[%s1 + $0x4] sm:$0xf]
        %v1200 = vld [vmem:[%s1 + $0x8] sm:$0xf]
        %v1201 = vld [vmem:[%s1 + $0xc] sm:$0xf]
        %v1202 = vld [vmem:[%s1 + $0x10] sm:$0xf]
        %v1203 = vld [vmem:[%s1 + $0x14] sm:$0xf]
        %v1204 = vld [vmem:[%s1 + $0x18] sm:$0xf]
        %v1205 = vld [vmem:[%s1 + $0x1c] sm:$0xf]
        %v1206 = vld [vmem:[%s1 + $0x20] sm:$0xf]
        %v1207 = vld [vmem:[%s1 + $0x24] sm:$0xf]
        %v1208 = vld [vmem:[%s1 + $0x28] sm:$0xf]
        %v1209 = vld [vmem:[%s1 + $0x2c] sm:$0xf]
        %v1210 = vld [vmem:[%s1 + $0x30] sm:$0xf]
        %v1211 = vld [vmem:[%s1 + $0x34] sm:$0xf]
        %v1212 = vld [vmem:[%s1 + $0x38] sm:$0xf]
        %v1213 = vld [vmem:[%s1 + $0x3c] sm:$0xf]
        %v1214 = vld [vmem:[%s1 + $0x40] sm:$0xf]
        %v1215 = vld [vmem:[%s1 + $0x44] sm:$0xf]
        %v1216 = vld [vmem:[%s1 + $0x48] sm:$0xf]
        %v1217 = vld [vmem:[%s1 + $0x4c] sm:$0xf]
        %v1218 = vld [vmem:[%s1 + $0x50] sm:$0xf]
        %v1219 = vld [vmem:[%s1 + $0x54] sm:$0xf]
        %v1220 = vld [vmem:[%s1 + $0x58] sm:$0xf]
        %v1221 = vld [vmem:[%s1 + $0x5c] sm:$0xf]
        %v1222 = vld [vmem:[%s1 + $0x60] sm:$0xf]
        %v1223 = vld [vmem:[%s1 + $0x64] sm:$0xf]
        %v1224 = vld [vmem:[%s1 + $0x68] sm:$0xf]
        %v1225 = vld [vmem:[%s1 + $0x6c] sm:$0xf]
        %v1226 = vld [vmem:[%s1 + $0x70] sm:$0xf]
        %v1227 = vld [vmem:[%s1 + $0x74] sm:$0xf]
        %v1228 = vld [vmem:[%s1 + $0x78] sm:$0xf]
        %v1229 = vld [vmem:[%s1 + $0x7c] sm:$0xf]
        %v1230 = vld [vmem:[%s509] sm:$0xf]
        %v1231 = vld [vmem:[%s509 + $0x4] sm:$0xf]
        %v1264 = vunpack.c.l.b16 %v1198
        %v1265 = vunpack.c.l.b16 %v1199
        %v1266 = vunpack.c.l.b16 %v1200
        %v1267 = vunpack.c.l.b16 %v1201
        %v1268 = vunpack.c.l.b16 %v1202
        %v1269 = vunpack.c.l.b16 %v1203
        %v1270 = vunpack.c.l.b16 %v1204
        %v1271 = vunpack.c.l.b16 %v1205
        %v1272 = vunpack.c.l.b16 %v1206
        %v1273 = vunpack.c.l.b16 %v1207
        %v1274 = vunpack.c.l.b16 %v1208
        %v1275 = vunpack.c.l.b16 %v1209
        %v1276 = vunpack.c.l.b16 %v1210
        %v1277 = vunpack.c.l.b16 %v1211
        %v1278 = vunpack.c.l.b16 %v1212
        %v1279 = vunpack.c.l.b16 %v1213
        %v1280 = vunpack.c.l.b16 %v1214
        %v1281 = vunpack.c.l.b16 %v1215
        %v1282 = vunpack.c.l.b16 %v1216
        %v1283 = vunpack.c.l.b16 %v1217
        %v1284 = vunpack.c.l.b16 %v1218
        %v1285 = vunpack.c.l.b16 %v1219
        %v1286 = vunpack.c.l.b16 %v1220
        %v1287 = vunpack.c.l.b16 %v1221
        %v1288 = vunpack.c.l.b16 %v1222
        %v1289 = vunpack.c.l.b16 %v1223
        %v1290 = vunpack.c.l.b16 %v1224
        %v1291 = vunpack.c.l.b16 %v1225
        %v1292 = vunpack.c.l.b16 %v1226
        %v1293 = vunpack.c.l.b16 %v1227
        %v1294 = vunpack.c.l.b16 %v1228
        %v1295 = vunpack.c.l.b16 %v1229
        %v1296 = vpack.c.b16 %v1265, %v1264
        %v1297 = vpack.c.b16 %v1267, %v1266
        %v1298 = vpack.c.b16 %v1269, %v1268
        %v1299 = vpack.c.b16 %v1271, %v1270
        %v1300 = vpack.c.b16 %v1273, %v1272
        %v1301 = vpack.c.b16 %v1275, %v1274
        %v1302 = vpack.c.b16 %v1277, %v1276
        %v1303 = vpack.c.b16 %v1279, %v1278
        %v1304 = vpack.c.b16 %v1281, %v1280
        %v1305 = vpack.c.b16 %v1283, %v1282
        %v1306 = vpack.c.b16 %v1285, %v1284
        %v1307 = vpack.c.b16 %v1287, %v1286
        %v1308 = vpack.c.b16 %v1289, %v1288
        %v1309 = vpack.c.b16 %v1291, %v1290
        %v1310 = vpack.c.b16 %v1293, %v1292
        %v1311 = vpack.c.b16 %v1295, %v1294
        %v1314 = vunpack.c.l.b16 %v1230
        %v1315 = vunpack.c.l.b16 %v1231
        %v1316 = vpack.c.b16 %v1315, %v1314
        %vm1318 = vcmask 130048
        %v1320 = vsel %vm1318, %v1296, 0
        %v1323 = vsel %vm1318, %v1297, 0
        %v1326 = vsel %vm1318, %v1298, 0
        %v1329 = vsel %vm1318, %v1299, 0
        %v1332 = vsel %vm1318, %v1300, 0
        %v1335 = vsel %vm1318, %v1301, 0
        %v1338 = vsel %vm1318, %v1302, 0
        %v1341 = vsel %vm1318, %v1303, 0
        %v1344 = vsel %vm1318, %v1304, 0
        %v1347 = vsel %vm1318, %v1305, 0
        %v1350 = vsel %vm1318, %v1306, 0
        %v1353 = vsel %vm1318, %v1307, 0
        %v1356 = vsel %vm1318, %v1308, 0
        %v1359 = vsel %vm1318, %v1309, 0
        %v1362 = vsel %vm1318, %v1310, 0
        %v1365 = vsel %vm1318, %v1311, 0
        %1367 = vmatprep.subr.bf16.mxu0 0
        %1368 = vmatpush1.bf16.msra.mxu0 0
        %1369 = vmatprep.subr.bf16.mxu0 0
        %1370 = vmatpush1.bf16.msra.mxu0 0
        %1371 = vmatprep.subr.bf16.mxu0 0
        %1372 = vmatpush1.bf16.msra.mxu0 0
        %1373 = vmatprep.subr.bf16.mxu0 0
        %1374 = vmatpush1.bf16.msra.mxu0 0
        %1375 = vmatprep.subr.bf16.mxu0 0
        %1376 = vmatpush1.bf16.msra.mxu0 0
        %1377 = vmatprep.subr.bf16.mxu0 0
        %1378 = vmatpush1.bf16.msra.mxu0 0
        %1379 = vmatprep.subr.bf16.mxu0 0
        %1380 = vmatpush1.bf16.msra.mxu0 0
        %1381 = vmatprep.subr.bf16.mxu0 0
        %1382 = vmatpush1.bf16.msra.mxu0 %v1316
        %1383 = vmatprep.subr.bf16.mxu0 0
        %1384 = vmatpush2.bf16.msra.mxu0 0
        %1385 = vmatprep.subr.bf16.mxu0 0
        %1386 = vmatpush2.bf16.msra.mxu0 0
        %1387 = vmatprep.subr.bf16.mxu0 0
        %1388 = vmatpush2.bf16.msra.mxu0 0
        %1389 = vmatprep.subr.bf16.mxu0 0
        %1390 = vmatpush2.bf16.msra.mxu0 0
        %1391 = vmatprep.subr.bf16.mxu0 0
        %1392 = vmatpush2.bf16.msra.mxu0 0
        %1393 = vmatprep.subr.bf16.mxu0 0
        %1394 = vmatpush2.bf16.msra.mxu0 0
        %1395 = vmatprep.subr.bf16.mxu0 0
        %1396 = vmatpush2.bf16.msra.mxu0 0
        %1397 = vmatprep.subr.bf16.mxu0 0
        %1398 = vmatpush2.bf16.msra.mxu0 0
        %1399 = vmatprep.mubr.bf16.mxu0 0
        %1400 = vmatmul.mubr.bf16.gmra.mxu0 %v1320
        %v1401 = vpop.f32.mrf.mxu0
        %v1402 = vadd.f32 0.0, %v1401
        %v1403 = vpop.f32.mrf.mxu0
        %v1404 = vpop.f32.mrf.mxu0
        %v1405 = vadd.f32 0.0, %v1404
        %v1406 = vpop.f32.mrf.mxu0
        %1407 = vmatprep.mubr.bf16.mxu0 0
        %1408 = vmatmul.mubr.bf16.gmra.mxu0 %v1323
        %v1409 = vpop.f32.mrf.mxu0
        %v1410 = vadd.f32 0.0, %v1409
        %v1411 = vpop.f32.mrf.mxu0
        %v1412 = vpop.f32.mrf.mxu0
        %v1413 = vadd.f32 0.0, %v1412
        %v1414 = vpop.f32.mrf.mxu0
        %1415 = vmatprep.mubr.bf16.mxu0 0
        %1416 = vmatmul.mubr.bf16.gmra.mxu0 %v1326
        %v1417 = vpop.f32.mrf.mxu0
        %v1418 = vadd.f32 0.0, %v1417
        %v1419 = vpop.f32.mrf.mxu0
        %v1420 = vpop.f32.mrf.mxu0
        %v1421 = vadd.f32 0.0, %v1420
        %v1422 = vpop.f32.mrf.mxu0
        %1423 = vmatprep.mubr.bf16.mxu0 0
        %1424 = vmatmul.mubr.bf16.gmra.mxu0 %v1329
        %v1425 = vpop.f32.mrf.mxu0
        %v1426 = vadd.f32 0.0, %v1425
        %v1427 = vpop.f32.mrf.mxu0
        %v1428 = vpop.f32.mrf.mxu0
        %v1429 = vadd.f32 0.0, %v1428
        %v1430 = vpop.f32.mrf.mxu0
        %1431 = vmatprep.mubr.bf16.mxu0 0
        %1432 = vmatmul.mubr.bf16.gmra.mxu0 %v1332
        %v1433 = vpop.f32.mrf.mxu0
        %v1434 = vadd.f32 0.0, %v1433
        %v1435 = vpop.f32.mrf.mxu0
        %v1436 = vpop.f32.mrf.mxu0
        %v1437 = vadd.f32 0.0, %v1436
        %v1438 = vpop.f32.mrf.mxu0
        %1439 = vmatprep.mubr.bf16.mxu0 0
        %1440 = vmatmul.mubr.bf16.gmra.mxu0 %v1335
        %v1441 = vpop.f32.mrf.mxu0
        %v1442 = vadd.f32 0.0, %v1441
        %v1443 = vpop.f32.mrf.mxu0
        %v1444 = vpop.f32.mrf.mxu0
        %v1445 = vadd.f32 0.0, %v1444
        %v1446 = vpop.f32.mrf.mxu0
        %1447 = vmatprep.mubr.bf16.mxu0 0
        %1448 = vmatmul.mubr.bf16.gmra.mxu0 %v1338
        %v1449 = vpop.f32.mrf.mxu0
        %v1450 = vadd.f32 0.0, %v1449
        %v1451 = vpop.f32.mrf.mxu0
        %v1452 = vpop.f32.mrf.mxu0
        %v1453 = vadd.f32 0.0, %v1452
        %v1454 = vpop.f32.mrf.mxu0
        %1455 = vmatprep.mubr.bf16.mxu0 0
        %1456 = vmatmul.mubr.bf16.gmra.mxu0 %v1341
        %v1457 = vpop.f32.mrf.mxu0
        %v1458 = vadd.f32 0.0, %v1457
        %v1459 = vpop.f32.mrf.mxu0
        %v1460 = vpop.f32.mrf.mxu0
        %v1461 = vadd.f32 0.0, %v1460
        %v1462 = vpop.f32.mrf.mxu0
        %1463 = vmatprep.mubr.bf16.mxu0 0
        %1464 = vmatmul.mubr.bf16.gmra.mxu0 %v1344
        %v1465 = vpop.f32.mrf.mxu0
        %v1466 = vadd.f32 0.0, %v1465
        %v1467 = vpop.f32.mrf.mxu0
        %v1468 = vpop.f32.mrf.mxu0
        %v1469 = vadd.f32 0.0, %v1468
        %v1470 = vpop.f32.mrf.mxu0
        %1471 = vmatprep.mubr.bf16.mxu0 0
        %1472 = vmatmul.mubr.bf16.gmra.mxu0 %v1347
        %v1473 = vpop.f32.mrf.mxu0
        %v1474 = vadd.f32 0.0, %v1473
        %v1475 = vpop.f32.mrf.mxu0
        %v1476 = vpop.f32.mrf.mxu0
        %v1477 = vadd.f32 0.0, %v1476
        %v1478 = vpop.f32.mrf.mxu0
        %1479 = vmatprep.mubr.bf16.mxu0 0
        %1480 = vmatmul.mubr.bf16.gmra.mxu0 %v1350
        %v1481 = vpop.f32.mrf.mxu0
        %v1482 = vadd.f32 0.0, %v1481
        %v1483 = vpop.f32.mrf.mxu0
        %v1484 = vpop.f32.mrf.mxu0
        %v1485 = vadd.f32 0.0, %v1484
        %v1486 = vpop.f32.mrf.mxu0
        %1487 = vmatprep.mubr.bf16.mxu0 0
        %1488 = vmatmul.mubr.bf16.gmra.mxu0 %v1353
        %v1489 = vpop.f32.mrf.mxu0
        %v1490 = vadd.f32 0.0, %v1489
        %v1491 = vpop.f32.mrf.mxu0
        %v1492 = vpop.f32.mrf.mxu0
        %v1493 = vadd.f32 0.0, %v1492
        %v1494 = vpop.f32.mrf.mxu0
        %1495 = vmatprep.mubr.bf16.mxu0 0
        %1496 = vmatmul.mubr.bf16.gmra.mxu0 %v1356
        %v1497 = vpop.f32.mrf.mxu0
        %v1498 = vadd.f32 0.0, %v1497
        %v1499 = vpop.f32.mrf.mxu0
        %v1500 = vpop.f32.mrf.mxu0
        %v1501 = vadd.f32 0.0, %v1500
        %v1502 = vpop.f32.mrf.mxu0
        %1503 = vmatprep.mubr.bf16.mxu0 0
        %1504 = vmatmul.mubr.bf16.gmra.mxu0 %v1359
        %v1505 = vpop.f32.mrf.mxu0
        %v1506 = vadd.f32 0.0, %v1505
        %v1507 = vpop.f32.mrf.mxu0
        %v1508 = vpop.f32.mrf.mxu0
        %v1509 = vadd.f32 0.0, %v1508
        %v1510 = vpop.f32.mrf.mxu0
        %1511 = vmatprep.mubr.bf16.mxu0 0
        %1512 = vmatmul.mubr.bf16.gmra.mxu0 %v1362
        %v1513 = vpop.f32.mrf.mxu0
        %v1514 = vadd.f32 0.0, %v1513
        %v1515 = vpop.f32.mrf.mxu0
        %v1516 = vpop.f32.mrf.mxu0
        %v1517 = vadd.f32 0.0, %v1516
        %v1518 = vpop.f32.mrf.mxu0
        %1519 = vmatprep.mubr.bf16.mxu0 0
        %1520 = vmatmul.mubr.bf16.gmra.mxu0 %v1365
        %v1521 = vpop.f32.mrf.mxu0
        %v1522 = vadd.f32 0.0, %v1521
        %v1523 = vpop.f32.mrf.mxu0
        %v1524 = vpop.f32.mrf.mxu0
        %v1525 = vadd.f32 0.0, %v1524
        %v1526 = vpop.f32.mrf.mxu0
        %1527 = vdwg.mxu0
        %v1528 = vxor.u32 %v1402, 2147483648
        %v1529 = vxor.u32 %v1405, 2147483648
        %v1530 = vxor.u32 %v1410, 2147483648
        %v1531 = vxor.u32 %v1413, 2147483648
        %v1532 = vxor.u32 %v1418, 2147483648
        %v1533 = vxor.u32 %v1421, 2147483648
        %v1534 = vxor.u32 %v1426, 2147483648
        %v1535 = vxor.u32 %v1429, 2147483648
        %v1536 = vxor.u32 %v1434, 2147483648
        %v1537 = vxor.u32 %v1437, 2147483648
        %v1538 = vxor.u32 %v1442, 2147483648
        %v1539 = vxor.u32 %v1445, 2147483648
        %v1540 = vxor.u32 %v1450, 2147483648
        %v1541 = vxor.u32 %v1453, 2147483648
        %v1542 = vxor.u32 %v1458, 2147483648
        %v1543 = vxor.u32 %v1461, 2147483648
        %v1544 = vxor.u32 %v1466, 2147483648
        %v1545 = vxor.u32 %v1469, 2147483648
        %v1546 = vxor.u32 %v1474, 2147483648
        %v1547 = vxor.u32 %v1477, 2147483648
        %v1548 = vxor.u32 %v1482, 2147483648
        %v1549 = vxor.u32 %v1485, 2147483648
        %v1550 = vxor.u32 %v1490, 2147483648
        %v1551 = vxor.u32 %v1493, 2147483648
        %v1552 = vxor.u32 %v1498, 2147483648
        %v1553 = vxor.u32 %v1501, 2147483648
        %v1554 = vxor.u32 %v1506, 2147483648
        %v1555 = vxor.u32 %v1509, 2147483648
        %v1556 = vxor.u32 %v1514, 2147483648
        %v1557 = vxor.u32 %v1517, 2147483648
        %v1558 = vxor.u32 %v1522, 2147483648
        %v1559 = vxor.u32 %v1525, 2147483648
        %v1560 = vmul.f32 %v1528, 1.442695
        %v1561 = vpow.pop %v1560
        %v1562 = vmul.f32 %v1529, 1.442695
        %v1563 = vpow.pop %v1562
        %v1564 = vmul.f32 %v1530, 1.442695
        %v1565 = vpow.pop %v1564
        %v1566 = vmul.f32 %v1531, 1.442695
        %v1567 = vpow.pop %v1566
        %v1568 = vmul.f32 %v1532, 1.442695
        %v1569 = vpow.pop %v1568
        %v1570 = vmul.f32 %v1533, 1.442695
        %v1571 = vpow.pop %v1570
        %v1572 = vmul.f32 %v1534, 1.442695
        %v1573 = vpow.pop %v1572
        %v1574 = vmul.f32 %v1535, 1.442695
        %v1575 = vpow.pop %v1574
        %v1576 = vmul.f32 %v1536, 1.442695
        %v1577 = vpow.pop %v1576
        %v1578 = vmul.f32 %v1537, 1.442695
        %v1579 = vpow.pop %v1578
        %v1580 = vmul.f32 %v1538, 1.442695
        %v1581 = vpow.pop %v1580
        %v1582 = vmul.f32 %v1539, 1.442695
        %v1583 = vpow.pop %v1582
        %v1584 = vmul.f32 %v1540, 1.442695
        %v1585 = vpow.pop %v1584
        %v1586 = vmul.f32 %v1541, 1.442695
        %v1587 = vpow.pop %v1586
        %v1588 = vmul.f32 %v1542, 1.442695
        %v1589 = vpow.pop %v1588
        %v1590 = vmul.f32 %v1543, 1.442695
        %v1591 = vpow.pop %v1590
        %v1592 = vmul.f32 %v1544, 1.442695
        %v1593 = vpow.pop %v1592
        %v1594 = vmul.f32 %v1545, 1.442695
        %v1595 = vpow.pop %v1594
        %v1596 = vmul.f32 %v1546, 1.442695
        %v1597 = vpow.pop %v1596
        %v1598 = vmul.f32 %v1547, 1.442695
        %v1599 = vpow.pop %v1598
        %v1600 = vmul.f32 %v1548, 1.442695
        %v1601 = vpow.pop %v1600
        %v1602 = vmul.f32 %v1549, 1.442695
        %v1603 = vpow.pop %v1602
        %v1604 = vmul.f32 %v1550, 1.442695
        %v1605 = vpow.pop %v1604
        %v1606 = vmul.f32 %v1551, 1.442695
        %v1607 = vpow.pop %v1606
        %v1608 = vmul.f32 %v1552, 1.442695
        %v1609 = vpow.pop %v1608
        %v1610 = vmul.f32 %v1553, 1.442695
        %v1611 = vpow.pop %v1610
        %v1612 = vmul.f32 %v1554, 1.442695
        %v1613 = vpow.pop %v1612
        %v1614 = vmul.f32 %v1555, 1.442695
        %v1615 = vpow.pop %v1614
        %v1616 = vmul.f32 %v1556, 1.442695
        %v1617 = vpow.pop %v1616
        %v1618 = vmul.f32 %v1557, 1.442695
        %v1619 = vpow.pop %v1618
        %v1620 = vmul.f32 %v1558, 1.442695
        %v1621 = vpow.pop %v1620
        %v1622 = vmul.f32 %v1559, 1.442695
        %v1623 = vpow.pop %v1622
        %v1624 = vadd.f32 %v1561, 1.0
        %v1625 = vadd.f32 %v1563, 1.0
        %v1626 = vadd.f32 %v1565, 1.0
        %v1627 = vadd.f32 %v1567, 1.0
        %v1628 = vadd.f32 %v1569, 1.0
        %v1629 = vadd.f32 %v1571, 1.0
        %v1630 = vadd.f32 %v1573, 1.0
        %v1631 = vadd.f32 %v1575, 1.0
        %v1632 = vadd.f32 %v1577, 1.0
        %v1633 = vadd.f32 %v1579, 1.0
        %v1634 = vadd.f32 %v1581, 1.0
        %v1635 = vadd.f32 %v1583, 1.0
        %v1636 = vadd.f32 %v1585, 1.0
        %v1637 = vadd.f32 %v1587, 1.0
        %v1638 = vadd.f32 %v1589, 1.0
        %v1639 = vadd.f32 %v1591, 1.0
        %v1640 = vadd.f32 %v1593, 1.0
        %v1641 = vadd.f32 %v1595, 1.0
        %v1642 = vadd.f32 %v1597, 1.0
        %v1643 = vadd.f32 %v1599, 1.0
        %v1644 = vadd.f32 %v1601, 1.0
        %v1645 = vadd.f32 %v1603, 1.0
        %v1646 = vadd.f32 %v1605, 1.0
        %v1647 = vadd.f32 %v1607, 1.0
        %v1648 = vadd.f32 %v1609, 1.0
        %v1649 = vadd.f32 %v1611, 1.0
        %v1650 = vadd.f32 %v1613, 1.0
        %v1651 = vadd.f32 %v1615, 1.0
        %v1652 = vadd.f32 %v1617, 1.0
        %v1653 = vadd.f32 %v1619, 1.0
        %v1654 = vadd.f32 %v1621, 1.0
        %v1655 = vadd.f32 %v1623, 1.0
        %v1656 = vrcp.pop %v1624
        %v1657 = vmul.f32 1.0, %v1656
        %v1658 = vrcp.pop %v1625
        %v1659 = vmul.f32 1.0, %v1658
        %v1660 = vrcp.pop %v1626
        %v1661 = vmul.f32 1.0, %v1660
        %v1662 = vrcp.pop %v1627
        %v1663 = vmul.f32 1.0, %v1662
        %v1664 = vrcp.pop %v1628
        %v1665 = vmul.f32 1.0, %v1664
        %v1666 = vrcp.pop %v1629
        %v1667 = vmul.f32 1.0, %v1666
        %v1668 = vrcp.pop %v1630
        %v1669 = vmul.f32 1.0, %v1668
        %v1670 = vrcp.pop %v1631
        %v1671 = vmul.f32 1.0, %v1670
        %v1672 = vrcp.pop %v1632
        %v1673 = vmul.f32 1.0, %v1672
        %v1674 = vrcp.pop %v1633
        %v1675 = vmul.f32 1.0, %v1674
        %v1676 = vrcp.pop %v1634
        %v1677 = vmul.f32 1.0, %v1676
        %v1678 = vrcp.pop %v1635
        %v1679 = vmul.f32 1.0, %v1678
        %v1680 = vrcp.pop %v1636
        %v1681 = vmul.f32 1.0, %v1680
        %v1682 = vrcp.pop %v1637
        %v1683 = vmul.f32 1.0, %v1682
        %v1684 = vrcp.pop %v1638
        %v1685 = vmul.f32 1.0, %v1684
        %v1686 = vrcp.pop %v1639
        %v1687 = vmul.f32 1.0, %v1686
        %v1688 = vrcp.pop %v1640
        %v1689 = vmul.f32 1.0, %v1688
        %v1690 = vrcp.pop %v1641
        %v1691 = vmul.f32 1.0, %v1690
        %v1692 = vrcp.pop %v1642
        %v1693 = vmul.f32 1.0, %v1692
        %v1694 = vrcp.pop %v1643
        %v1695 = vmul.f32 1.0, %v1694
        %v1696 = vrcp.pop %v1644
        %v1697 = vmul.f32 1.0, %v1696
        %v1698 = vrcp.pop %v1645
        %v1699 = vmul.f32 1.0, %v1698
        %v1700 = vrcp.pop %v1646
        %v1701 = vmul.f32 1.0, %v1700
        %v1702 = vrcp.pop %v1647
        %v1703 = vmul.f32 1.0, %v1702
        %v1704 = vrcp.pop %v1648
        %v1705 = vmul.f32 1.0, %v1704
        %v1706 = vrcp.pop %v1649
        %v1707 = vmul.f32 1.0, %v1706
        %v1708 = vrcp.pop %v1650
        %v1709 = vmul.f32 1.0, %v1708
        %v1710 = vrcp.pop %v1651
        %v1711 = vmul.f32 1.0, %v1710
        %v1712 = vrcp.pop %v1652
        %v1713 = vmul.f32 1.0, %v1712
        %v1714 = vrcp.pop %v1653
        %v1715 = vmul.f32 1.0, %v1714
        %v1716 = vrcp.pop %v1654
        %v1717 = vmul.f32 1.0, %v1716
        %v1718 = vrcp.pop %v1655
        %v1719 = vmul.f32 1.0, %v1718
        %v1720 = vmul.f32 %v1402, %v1657
        %v1721 = vmul.f32 %v1405, %v1659
        %v1722 = vmul.f32 %v1410, %v1661
        %v1723 = vmul.f32 %v1413, %v1663
        %v1724 = vmul.f32 %v1418, %v1665
        %v1725 = vmul.f32 %v1421, %v1667
        %v1726 = vmul.f32 %v1426, %v1669
        %v1727 = vmul.f32 %v1429, %v1671
        %v1728 = vmul.f32 %v1434, %v1673
        %v1729 = vmul.f32 %v1437, %v1675
        %v1730 = vmul.f32 %v1442, %v1677
        %v1731 = vmul.f32 %v1445, %v1679
        %v1732 = vmul.f32 %v1450, %v1681
        %v1733 = vmul.f32 %v1453, %v1683
        %v1734 = vmul.f32 %v1458, %v1685
        %v1735 = vmul.f32 %v1461, %v1687
        %v1736 = vmul.f32 %v1466, %v1689
        %v1737 = vmul.f32 %v1469, %v1691
        %v1738 = vmul.f32 %v1474, %v1693
        %v1739 = vmul.f32 %v1477, %v1695
        %v1740 = vmul.f32 %v1482, %v1697
        %v1741 = vmul.f32 %v1485, %v1699
        %v1742 = vmul.f32 %v1490, %v1701
        %v1743 = vmul.f32 %v1493, %v1703
        %v1744 = vmul.f32 %v1498, %v1705
        %v1745 = vmul.f32 %v1501, %v1707
        %v1746 = vmul.f32 %v1506, %v1709
        %v1747 = vmul.f32 %v1509, %v1711
        %v1748 = vmul.f32 %v1514, %v1713
        %v1749 = vmul.f32 %v1517, %v1715
        %v1750 = vmul.f32 %v1522, %v1717
        %v1751 = vmul.f32 %v1525, %v1719
        %v1752 = vpack.c.bf16 %v1721, %v1720
        %v1753 = vpack.c.bf16 %v1723, %v1722
        %v1754 = vpack.c.bf16 %v1725, %v1724
        %v1755 = vpack.c.bf16 %v1727, %v1726
        %v1756 = vpack.c.bf16 %v1729, %v1728
        %v1757 = vpack.c.bf16 %v1731, %v1730
        %v1758 = vpack.c.bf16 %v1733, %v1732
        %v1759 = vpack.c.bf16 %v1735, %v1734
        %v1760 = vpack.c.bf16 %v1737, %v1736
        %v1761 = vpack.c.bf16 %v1739, %v1738
        %v1762 = vpack.c.bf16 %v1741, %v1740
        %v1763 = vpack.c.bf16 %v1743, %v1742
        %v1764 = vpack.c.bf16 %v1745, %v1744
        %v1765 = vpack.c.bf16 %v1747, %v1746
        %v1766 = vpack.c.bf16 %v1749, %v1748
        %v1767 = vpack.c.bf16 %v1751, %v1750
        %v1768 = vld [vmem:[%s514] sm:$0xf]
        %v1769 = vld [vmem:[%s514 + $0x4] sm:$0xf]
        %v1770 = vld [vmem:[%s514 + $0x8] sm:$0xf]
        %v1771 = vld [vmem:[%s514 + $0xc] sm:$0xf]
        %v1772 = vld [vmem:[%s514 + $0x10] sm:$0xf]
        %v1773 = vld [vmem:[%s514 + $0x14] sm:$0xf]
        %v1774 = vld [vmem:[%s514 + $0x18] sm:$0xf]
        %v1775 = vld [vmem:[%s514 + $0x1c] sm:$0xf]
        %v1776 = vld [vmem:[%s514 + $0x20] sm:$0xf]
        %v1777 = vld [vmem:[%s514 + $0x24] sm:$0xf]
        %v1778 = vld [vmem:[%s514 + $0x28] sm:$0xf]
        %v1779 = vld [vmem:[%s514 + $0x2c] sm:$0xf]
        %v1780 = vld [vmem:[%s514 + $0x30] sm:$0xf]
        %v1781 = vld [vmem:[%s514 + $0x34] sm:$0xf]
        %v1782 = vld [vmem:[%s514 + $0x38] sm:$0xf]
        %v1783 = vld [vmem:[%s514 + $0x3c] sm:$0xf]
        %v1800 = vunpack.c.l.b16 %v1768
        %v1801 = vunpack.c.l.b16 %v1769
        %v1802 = vunpack.c.l.b16 %v1770
        %v1803 = vunpack.c.l.b16 %v1771
        %v1804 = vunpack.c.l.b16 %v1772
        %v1805 = vunpack.c.l.b16 %v1773
        %v1806 = vunpack.c.l.b16 %v1774
        %v1807 = vunpack.c.l.b16 %v1775
        %v1808 = vunpack.c.l.b16 %v1776
        %v1809 = vunpack.c.l.b16 %v1777
        %v1810 = vunpack.c.l.b16 %v1778
        %v1811 = vunpack.c.l.b16 %v1779
        %v1812 = vunpack.c.l.b16 %v1780
        %v1813 = vunpack.c.l.b16 %v1781
        %v1814 = vunpack.c.l.b16 %v1782
        %v1815 = vunpack.c.l.b16 %v1783
        %v1816 = vpack.c.b16 %v1801, %v1800
        %v1817 = vpack.c.b16 %v1803, %v1802
        %v1818 = vpack.c.b16 %v1805, %v1804
        %v1819 = vpack.c.b16 %v1807, %v1806
        %v1820 = vpack.c.b16 %v1809, %v1808
        %v1821 = vpack.c.b16 %v1811, %v1810
        %v1822 = vpack.c.b16 %v1813, %v1812
        %v1823 = vpack.c.b16 %v1815, %v1814
        %1832 = vmatprep.subr.bf16.mxu0 0
        %1833 = vmatpush1.bf16.msra.mxu0 %v1823
        %1834 = vmatprep.subr.bf16.mxu0 0
        %1835 = vmatpush1.bf16.msra.mxu0 %v1822
        %1836 = vmatprep.subr.bf16.mxu0 0
        %1837 = vmatpush1.bf16.msra.mxu0 %v1821
        %1838 = vmatprep.subr.bf16.mxu0 0
        %1839 = vmatpush1.bf16.msra.mxu0 %v1820
        %1840 = vmatprep.subr.bf16.mxu0 0
        %1841 = vmatpush1.bf16.msra.mxu0 %v1819
        %1842 = vmatprep.subr.bf16.mxu0 0
        %1843 = vmatpush1.bf16.msra.mxu0 %v1818
        %1844 = vmatprep.subr.bf16.mxu0 0
        %1845 = vmatpush1.bf16.msra.mxu0 %v1817
        %1846 = vmatprep.subr.bf16.mxu0 0
        %1847 = vmatpush1.bf16.msra.mxu0 %v1816
        %1848 = vmatprep.subr.bf16.mxu0 0
        %1849 = vmatpush2.bf16.msra.mxu0 0
        %1850 = vmatprep.subr.bf16.mxu0 0
        %1851 = vmatpush2.bf16.msra.mxu0 0
        %1852 = vmatprep.subr.bf16.mxu0 0
        %1853 = vmatpush2.bf16.msra.mxu0 0
        %1854 = vmatprep.subr.bf16.mxu0 0
        %1855 = vmatpush2.bf16.msra.mxu0 0
        %1856 = vmatprep.subr.bf16.mxu0 0
        %1857 = vmatpush2.bf16.msra.mxu0 0
        %1858 = vmatprep.subr.bf16.mxu0 0
        %1859 = vmatpush2.bf16.msra.mxu0 0
        %1860 = vmatprep.subr.bf16.mxu0 0
        %1861 = vmatpush2.bf16.msra.mxu0 0
        %1862 = vmatprep.subr.bf16.mxu0 0
        %1863 = vmatpush2.bf16.msra.mxu0 0
        %1864 = vmatprep.mubr.bf16.mxu0 0
        %1865 = vmatmul.mubr.bf16.gmra.mxu0 %v1752
        %v1866 = vpop.f32.mrf.mxu0
        %v1867 = vadd.f32 0.0, %v1866
        %v1868 = vpop.f32.mrf.mxu0
        %v1869 = vpop.f32.mrf.mxu0
        %v1870 = vadd.f32 0.0, %v1869
        %v1871 = vpop.f32.mrf.mxu0
        %1872 = vmatprep.mubr.bf16.mxu0 0
        %1873 = vmatmul.mubr.bf16.gmra.mxu0 %v1753
        %v1874 = vpop.f32.mrf.mxu0
        %v1875 = vadd.f32 0.0, %v1874
        %v1876 = vpop.f32.mrf.mxu0
        %v1877 = vpop.f32.mrf.mxu0
        %v1878 = vadd.f32 0.0, %v1877
        %v1879 = vpop.f32.mrf.mxu0
        %1880 = vmatprep.mubr.bf16.mxu0 0
        %1881 = vmatmul.mubr.bf16.gmra.mxu0 %v1754
        %v1882 = vpop.f32.mrf.mxu0
        %v1883 = vadd.f32 0.0, %v1882
        %v1884 = vpop.f32.mrf.mxu0
        %v1885 = vpop.f32.mrf.mxu0
        %v1886 = vadd.f32 0.0, %v1885
        %v1887 = vpop.f32.mrf.mxu0
        %1888 = vmatprep.mubr.bf16.mxu0 0
        %1889 = vmatmul.mubr.bf16.gmra.mxu0 %v1755
        %v1890 = vpop.f32.mrf.mxu0
        %v1891 = vadd.f32 0.0, %v1890
        %v1892 = vpop.f32.mrf.mxu0
        %v1893 = vpop.f32.mrf.mxu0
        %v1894 = vadd.f32 0.0, %v1893
        %v1895 = vpop.f32.mrf.mxu0
        %1896 = vmatprep.mubr.bf16.mxu0 0
        %1897 = vmatmul.mubr.bf16.gmra.mxu0 %v1756
        %v1898 = vpop.f32.mrf.mxu0
        %v1899 = vadd.f32 0.0, %v1898
        %v1900 = vpop.f32.mrf.mxu0
        %v1901 = vpop.f32.mrf.mxu0
        %v1902 = vadd.f32 0.0, %v1901
        %v1903 = vpop.f32.mrf.mxu0
        %1904 = vmatprep.mubr.bf16.mxu0 0
        %1905 = vmatmul.mubr.bf16.gmra.mxu0 %v1757
        %v1906 = vpop.f32.mrf.mxu0
        %v1907 = vadd.f32 0.0, %v1906
        %v1908 = vpop.f32.mrf.mxu0
        %v1909 = vpop.f32.mrf.mxu0
        %v1910 = vadd.f32 0.0, %v1909
        %v1911 = vpop.f32.mrf.mxu0
        %1912 = vmatprep.mubr.bf16.mxu0 0
        %1913 = vmatmul.mubr.bf16.gmra.mxu0 %v1758
        %v1914 = vpop.f32.mrf.mxu0
        %v1915 = vadd.f32 0.0, %v1914
        %v1916 = vpop.f32.mrf.mxu0
        %v1917 = vpop.f32.mrf.mxu0
        %v1918 = vadd.f32 0.0, %v1917
        %v1919 = vpop.f32.mrf.mxu0
        %1920 = vmatprep.mubr.bf16.mxu0 0
        %1921 = vmatmul.mubr.bf16.gmra.mxu0 %v1759
        %v1922 = vpop.f32.mrf.mxu0
        %v1923 = vadd.f32 0.0, %v1922
        %v1924 = vpop.f32.mrf.mxu0
        %v1925 = vpop.f32.mrf.mxu0
        %v1926 = vadd.f32 0.0, %v1925
        %v1927 = vpop.f32.mrf.mxu0
        %1928 = vmatprep.mubr.bf16.mxu0 0
        %1929 = vmatmul.mubr.bf16.gmra.mxu0 %v1760
        %v1930 = vpop.f32.mrf.mxu0
        %v1931 = vadd.f32 0.0, %v1930
        %v1932 = vpop.f32.mrf.mxu0
        %v1933 = vpop.f32.mrf.mxu0
        %v1934 = vadd.f32 0.0, %v1933
        %v1935 = vpop.f32.mrf.mxu0
        %1936 = vmatprep.mubr.bf16.mxu0 0
        %1937 = vmatmul.mubr.bf16.gmra.mxu0 %v1761
        %v1938 = vpop.f32.mrf.mxu0
        %v1939 = vadd.f32 0.0, %v1938
        %v1940 = vpop.f32.mrf.mxu0
        %v1941 = vpop.f32.mrf.mxu0
        %v1942 = vadd.f32 0.0, %v1941
        %v1943 = vpop.f32.mrf.mxu0
        %1944 = vmatprep.mubr.bf16.mxu0 0
        %1945 = vmatmul.mubr.bf16.gmra.mxu0 %v1762
        %v1946 = vpop.f32.mrf.mxu0
        %v1947 = vadd.f32 0.0, %v1946
        %v1948 = vpop.f32.mrf.mxu0
        %v1949 = vpop.f32.mrf.mxu0
        %v1950 = vadd.f32 0.0, %v1949
        %v1951 = vpop.f32.mrf.mxu0
        %1952 = vmatprep.mubr.bf16.mxu0 0
        %1953 = vmatmul.mubr.bf16.gmra.mxu0 %v1763
        %v1954 = vpop.f32.mrf.mxu0
        %v1955 = vadd.f32 0.0, %v1954
        %v1956 = vpop.f32.mrf.mxu0
        %v1957 = vpop.f32.mrf.mxu0
        %v1958 = vadd.f32 0.0, %v1957
        %v1959 = vpop.f32.mrf.mxu0
        %1960 = vmatprep.mubr.bf16.mxu0 0
        %1961 = vmatmul.mubr.bf16.gmra.mxu0 %v1764
        %v1962 = vpop.f32.mrf.mxu0
        %v1963 = vadd.f32 0.0, %v1962
        %v1964 = vpop.f32.mrf.mxu0
        %v1965 = vpop.f32.mrf.mxu0
        %v1966 = vadd.f32 0.0, %v1965
        %v1967 = vpop.f32.mrf.mxu0
        %1968 = vmatprep.mubr.bf16.mxu0 0
        %1969 = vmatmul.mubr.bf16.gmra.mxu0 %v1765
        %v1970 = vpop.f32.mrf.mxu0
        %v1971 = vadd.f32 0.0, %v1970
        %v1972 = vpop.f32.mrf.mxu0
        %v1973 = vpop.f32.mrf.mxu0
        %v1974 = vadd.f32 0.0, %v1973
        %v1975 = vpop.f32.mrf.mxu0
        %1976 = vmatprep.mubr.bf16.mxu0 0
        %1977 = vmatmul.mubr.bf16.gmra.mxu0 %v1766
        %v1978 = vpop.f32.mrf.mxu0
        %v1979 = vadd.f32 0.0, %v1978
        %v1980 = vpop.f32.mrf.mxu0
        %v1981 = vpop.f32.mrf.mxu0
        %v1982 = vadd.f32 0.0, %v1981
        %v1983 = vpop.f32.mrf.mxu0
        %1984 = vmatprep.mubr.bf16.mxu0 0
        %1985 = vmatmul.mubr.bf16.gmra.mxu0 %v1767
        %v1986 = vpop.f32.mrf.mxu0
        %v1987 = vadd.f32 0.0, %v1986
        %v1988 = vpop.f32.mrf.mxu0
        %v1989 = vpop.f32.mrf.mxu0
        %v1990 = vadd.f32 0.0, %v1989
        %v1991 = vpop.f32.mrf.mxu0
        %1992 = vdwg.mxu0
        %v1993 = vmul.f32 %v1867, %v1072
        %v1994 = vmul.f32 %v1870, %v1075
        %v1995 = vmul.f32 %v1875, %v1080
        %v1996 = vmul.f32 %v1878, %v1083
        %v1997 = vmul.f32 %v1883, %v1088
        %v1998 = vmul.f32 %v1886, %v1091
        %v1999 = vmul.f32 %v1891, %v1096
        %v2000 = vmul.f32 %v1894, %v1099
        %v2001 = vmul.f32 %v1899, %v1104
        %v2002 = vmul.f32 %v1902, %v1107
        %v2003 = vmul.f32 %v1907, %v1112
        %v2004 = vmul.f32 %v1910, %v1115
        %v2005 = vmul.f32 %v1915, %v1120
        %v2006 = vmul.f32 %v1918, %v1123
        %v2007 = vmul.f32 %v1923, %v1128
        %v2008 = vmul.f32 %v1926, %v1131
        %v2009 = vmul.f32 %v1931, %v1136
        %v2010 = vmul.f32 %v1934, %v1139
        %v2011 = vmul.f32 %v1939, %v1144
        %v2012 = vmul.f32 %v1942, %v1147
        %v2013 = vmul.f32 %v1947, %v1152
        %v2014 = vmul.f32 %v1950, %v1155
        %v2015 = vmul.f32 %v1955, %v1160
        %v2016 = vmul.f32 %v1958, %v1163
        %v2017 = vmul.f32 %v1963, %v1168
        %v2018 = vmul.f32 %v1966, %v1171
        %v2019 = vmul.f32 %v1971, %v1176
        %v2020 = vmul.f32 %v1974, %v1179
        %v2021 = vmul.f32 %v1979, %v1184
        %v2022 = vmul.f32 %v1982, %v1187
        %v2023 = vmul.f32 %v1987, %v1192
        %v2024 = vmul.f32 %v1990, %v1195
        %v2025 = vpack.c.bf16 %v1994, %v1993
        %v2026 = vpack.c.bf16 %v1996, %v1995
        %v2027 = vpack.c.bf16 %v1998, %v1997
        %v2028 = vpack.c.bf16 %v2000, %v1999
        %v2029 = vpack.c.bf16 %v2002, %v2001
        %v2030 = vpack.c.bf16 %v2004, %v2003
        %v2031 = vpack.c.bf16 %v2006, %v2005
        %v2032 = vpack.c.bf16 %v2008, %v2007
        %v2033 = vpack.c.bf16 %v2010, %v2009
        %v2034 = vpack.c.bf16 %v2012, %v2011
        %v2035 = vpack.c.bf16 %v2014, %v2013
        %v2036 = vpack.c.bf16 %v2016, %v2015
        %v2037 = vpack.c.bf16 %v2018, %v2017
        %v2038 = vpack.c.bf16 %v2020, %v2019
        %v2039 = vpack.c.bf16 %v2022, %v2021
        %v2040 = vpack.c.bf16 %v2024, %v2023
        %2041 = vmatprep.subr.bf16.mxu0 0
        %2042 = vmatpush1.bf16.msra.mxu0 %v2032
        %2043 = vmatprep.subr.bf16.mxu0 0
        %2044 = vmatpush1.bf16.msra.mxu0 %v2031
        %2045 = vmatprep.subr.bf16.mxu0 0
        %2046 = vmatpush1.bf16.msra.mxu0 %v2030
        %2047 = vmatprep.subr.bf16.mxu0 0
        %2048 = vmatpush1.bf16.msra.mxu0 %v2029
        %2049 = vmatprep.subr.bf16.mxu0 0
        %2050 = vmatpush1.bf16.msra.mxu0 %v2028
        %2051 = vmatprep.subr.bf16.mxu0 0
        %2052 = vmatpush1.bf16.msra.mxu0 %v2027
        %2053 = vmatprep.subr.bf16.mxu0 0
        %2054 = vmatpush1.bf16.msra.mxu0 %v2026
        %2055 = vmatprep.subr.bf16.mxu0 0
        %2056 = vmatpush1.bf16.msra.mxu0 %v2025
        %2057 = vmatprep.subr.bf16.mxu0 0
        %2058 = vmatpush2.bf16.msra.mxu0 %v2040
        %2059 = vmatprep.subr.bf16.mxu0 0
        %2060 = vmatpush2.bf16.msra.mxu0 %v2039
        %2061 = vmatprep.subr.bf16.mxu0 0
        %2062 = vmatpush2.bf16.msra.mxu0 %v2038
        %2063 = vmatprep.subr.bf16.mxu0 0
        %2064 = vmatpush2.bf16.msra.mxu0 %v2037
        %2065 = vmatprep.subr.bf16.mxu0 0
        %2066 = vmatpush2.bf16.msra.mxu0 %v2036
        %2067 = vmatprep.subr.bf16.mxu0 0
        %2068 = vmatpush2.bf16.msra.mxu0 %v2035
        %2069 = vmatprep.subr.bf16.mxu0 0
        %2070 = vmatpush2.bf16.msra.mxu0 %v2034
        %2071 = vmatprep.subr.bf16.mxu0 0
        %2072 = vmatpush2.bf16.msra.mxu0 %v2033
        %2073 = vmatprep.mubr.bf16.mxu0 %v966
        %2074 = vmatmul.mubr.bf16.gmra.mxu0 %v965
        %v2075 = vpop.f32.mrf.mxu0
        %v2076 = vadd.f32 0.0, %v2075
        %v2077 = vpop.f32.mrf.mxu0
        %v2078 = vpop.f32.mrf.mxu0
        %v2079 = vadd.f32 0.0, %v2078
        %v2080 = vpop.f32.mrf.mxu0
        %2081 = vmatprep.mubr.bf16.mxu0 %v968
        %2082 = vmatmul.mubr.bf16.gmra.mxu0 %v967
        %v2083 = vpop.f32.mrf.mxu0
        %v2084 = vadd.f32 0.0, %v2083
        %v2085 = vpop.f32.mrf.mxu0
        %v2086 = vpop.f32.mrf.mxu0
        %v2087 = vadd.f32 0.0, %v2086
        %v2088 = vpop.f32.mrf.mxu0
        %2089 = vmatprep.mubr.bf16.mxu0 %v970
        %2090 = vmatmul.mubr.bf16.gmra.mxu0 %v969
        %v2091 = vpop.f32.mrf.mxu0
        %v2092 = vadd.f32 0.0, %v2091
        %v2093 = vpop.f32.mrf.mxu0
        %v2094 = vpop.f32.mrf.mxu0
        %v2095 = vadd.f32 0.0, %v2094
        %v2096 = vpop.f32.mrf.mxu0
        %2097 = vmatprep.mubr.bf16.mxu0 %v972
        %2098 = vmatmul.mubr.bf16.gmra.mxu0 %v971
        %v2099 = vpop.f32.mrf.mxu0
        %v2100 = vadd.f32 0.0, %v2099
        %v2101 = vpop.f32.mrf.mxu0
        %v2102 = vpop.f32.mrf.mxu0
        %v2103 = vadd.f32 0.0, %v2102
        %v2104 = vpop.f32.mrf.mxu0
        %2105 = vmatprep.mubr.bf16.mxu0 %v974
        %2106 = vmatmul.mubr.bf16.gmra.mxu0 %v973
        %v2107 = vpop.f32.mrf.mxu0
        %v2108 = vadd.f32 0.0, %v2107
        %v2109 = vpop.f32.mrf.mxu0
        %v2110 = vpop.f32.mrf.mxu0
        %v2111 = vadd.f32 0.0, %v2110
        %v2112 = vpop.f32.mrf.mxu0
        %2113 = vmatprep.mubr.bf16.mxu0 %v976
        %2114 = vmatmul.mubr.bf16.gmra.mxu0 %v975
        %v2115 = vpop.f32.mrf.mxu0
        %v2116 = vadd.f32 0.0, %v2115
        %v2117 = vpop.f32.mrf.mxu0
        %v2118 = vpop.f32.mrf.mxu0
        %v2119 = vadd.f32 0.0, %v2118
        %v2120 = vpop.f32.mrf.mxu0
        %2121 = vmatprep.mubr.bf16.mxu0 %v978
        %2122 = vmatmul.mubr.bf16.gmra.mxu0 %v977
        %v2123 = vpop.f32.mrf.mxu0
        %v2124 = vadd.f32 0.0, %v2123
        %v2125 = vpop.f32.mrf.mxu0
        %v2126 = vpop.f32.mrf.mxu0
        %v2127 = vadd.f32 0.0, %v2126
        %v2128 = vpop.f32.mrf.mxu0
        %2129 = vmatprep.mubr.bf16.mxu0 %v980
        %2130 = vmatmul.mubr.bf16.gmra.mxu0 %v979
        %v2131 = vpop.f32.mrf.mxu0
        %v2132 = vadd.f32 0.0, %v2131
        %v2133 = vpop.f32.mrf.mxu0
        %v2134 = vpop.f32.mrf.mxu0
        %v2135 = vadd.f32 0.0, %v2134
        %v2136 = vpop.f32.mrf.mxu0
        %2137 = vdwg.mxu0
        %v2138 = vpack.c.bf16 %v2079, %v2076
        %v2139 = vpack.c.bf16 %v2087, %v2084
        %v2140 = vpack.c.bf16 %v2095, %v2092
        %v2141 = vpack.c.bf16 %v2103, %v2100
        %v2142 = vpack.c.bf16 %v2111, %v2108
        %v2143 = vpack.c.bf16 %v2119, %v2116
        %v2144 = vpack.c.bf16 %v2127, %v2124
        %v2145 = vpack.c.bf16 %v2135, %v2132
        %v2146 = vld [vmem:[%s449] sm:$0xf]
        %v2147 = vld [vmem:[%s449 + $0x4] sm:$0xf]
        %v2148 = vld [vmem:[%s449 + $0x8] sm:$0xf]
        %v2149 = vld [vmem:[%s449 + $0xc] sm:$0xf]
        %v2150 = vld [vmem:[%s449 + $0x10] sm:$0xf]
        %v2151 = vld [vmem:[%s449 + $0x14] sm:$0xf]
        %v2152 = vld [vmem:[%s449 + $0x18] sm:$0xf]
        %v2153 = vld [vmem:[%s449 + $0x1c] sm:$0xf]
        %v2154 = vld [vmem:[%s449 + $0x20] sm:$0xf]
        %v2155 = vld [vmem:[%s449 + $0x24] sm:$0xf]
        %v2156 = vld [vmem:[%s449 + $0x28] sm:$0xf]
        %v2157 = vld [vmem:[%s449 + $0x2c] sm:$0xf]
        %v2158 = vld [vmem:[%s449 + $0x30] sm:$0xf]
        %v2159 = vld [vmem:[%s449 + $0x34] sm:$0xf]
        %v2160 = vld [vmem:[%s449 + $0x38] sm:$0xf]
        %v2161 = vld [vmem:[%s449 + $0x3c] sm:$0xf]
        %v2178 = vunpack.c.l.b16 %v2146
        %v2179 = vunpack.c.l.b16 %v2147
        %v2180 = vunpack.c.l.b16 %v2148
        %v2181 = vunpack.c.l.b16 %v2149
        %v2182 = vunpack.c.l.b16 %v2150
        %v2183 = vunpack.c.l.b16 %v2151
        %v2184 = vunpack.c.l.b16 %v2152
        %v2185 = vunpack.c.l.b16 %v2153
        %v2186 = vunpack.c.l.b16 %v2154
        %v2187 = vunpack.c.l.b16 %v2155
        %v2188 = vunpack.c.l.b16 %v2156
        %v2189 = vunpack.c.l.b16 %v2157
        %v2190 = vunpack.c.l.b16 %v2158
        %v2191 = vunpack.c.l.b16 %v2159
        %v2192 = vunpack.c.l.b16 %v2160
        %v2193 = vunpack.c.l.b16 %v2161
        %v2194 = vpack.c.b16 %v2179, %v2178
        %v2195 = vpack.c.b16 %v2181, %v2180
        %v2196 = vpack.c.b16 %v2183, %v2182
        %v2197 = vpack.c.b16 %v2185, %v2184
        %v2198 = vpack.c.b16 %v2187, %v2186
        %v2199 = vpack.c.b16 %v2189, %v2188
        %v2200 = vpack.c.b16 %v2191, %v2190
        %v2201 = vpack.c.b16 %v2193, %v2192
        %2210 = vmatprep.subr.bf16.mxu0 0
        %2211 = vmatpush1.bf16.msra.mxu0 %v2201
        %2212 = vmatprep.subr.bf16.mxu0 0
        %2213 = vmatpush1.bf16.msra.mxu0 %v2200
        %2214 = vmatprep.subr.bf16.mxu0 0
        %2215 = vmatpush1.bf16.msra.mxu0 %v2199
        %2216 = vmatprep.subr.bf16.mxu0 0
        %2217 = vmatpush1.bf16.msra.mxu0 %v2198
        %2218 = vmatprep.subr.bf16.mxu0 0
        %2219 = vmatpush1.bf16.msra.mxu0 %v2197
        %2220 = vmatprep.subr.bf16.mxu0 0
        %2221 = vmatpush1.bf16.msra.mxu0 %v2196
        %2222 = vmatprep.subr.bf16.mxu0 0
        %2223 = vmatpush1.bf16.msra.mxu0 %v2195
        %2224 = vmatprep.subr.bf16.mxu0 0
        %2225 = vmatpush1.bf16.msra.mxu0 %v2194
        %2226 = vmatprep.subr.bf16.mxu0 0
        %2227 = vmatpush2.bf16.msra.mxu0 0
        %2228 = vmatprep.subr.bf16.mxu0 0
        %2229 = vmatpush2.bf16.msra.mxu0 0
        %2230 = vmatprep.subr.bf16.mxu0 0
        %2231 = vmatpush2.bf16.msra.mxu0 0
        %2232 = vmatprep.subr.bf16.mxu0 0
        %2233 = vmatpush2.bf16.msra.mxu0 0
        %2234 = vmatprep.subr.bf16.mxu0 0
        %2235 = vmatpush2.bf16.msra.mxu0 0
        %2236 = vmatprep.subr.bf16.mxu0 0
        %2237 = vmatpush2.bf16.msra.mxu0 0
        %2238 = vmatprep.subr.bf16.mxu0 0
        %2239 = vmatpush2.bf16.msra.mxu0 0
        %2240 = vmatprep.subr.bf16.mxu0 0
        %2241 = vmatpush2.bf16.msra.mxu0 0
        %2242 = vmatprep.mubr.bf16.mxu0 0
        %2243 = vmatmul.mubr.bf16.gmra.mxu0 %v2138
        %v2244 = vpop.f32.mrf.mxu0
        %v2245 = vadd.f32 0.0, %v2244
        %v2246 = vpop.f32.mrf.mxu0
        %v2247 = vpop.f32.mrf.mxu0
        %v2248 = vadd.f32 0.0, %v2247
        %v2249 = vpop.f32.mrf.mxu0
        %2250 = vmatprep.mubr.bf16.mxu0 0
        %2251 = vmatmul.mubr.bf16.gmra.mxu0 %v2139
        %v2252 = vpop.f32.mrf.mxu0
        %v2253 = vadd.f32 0.0, %v2252
        %v2254 = vpop.f32.mrf.mxu0
        %v2255 = vpop.f32.mrf.mxu0
        %v2256 = vadd.f32 0.0, %v2255
        %v2257 = vpop.f32.mrf.mxu0
        %2258 = vmatprep.mubr.bf16.mxu0 0
        %2259 = vmatmul.mubr.bf16.gmra.mxu0 %v2140
        %v2260 = vpop.f32.mrf.mxu0
        %v2261 = vadd.f32 0.0, %v2260
        %v2262 = vpop.f32.mrf.mxu0
        %v2263 = vpop.f32.mrf.mxu0
        %v2264 = vadd.f32 0.0, %v2263
        %v2265 = vpop.f32.mrf.mxu0
        %2266 = vmatprep.mubr.bf16.mxu0 0
        %2267 = vmatmul.mubr.bf16.gmra.mxu0 %v2141
        %v2268 = vpop.f32.mrf.mxu0
        %v2269 = vadd.f32 0.0, %v2268
        %v2270 = vpop.f32.mrf.mxu0
        %v2271 = vpop.f32.mrf.mxu0
        %v2272 = vadd.f32 0.0, %v2271
        %v2273 = vpop.f32.mrf.mxu0
        %2274 = vmatprep.mubr.bf16.mxu0 0
        %2275 = vmatmul.mubr.bf16.gmra.mxu0 %v2142
        %v2276 = vpop.f32.mrf.mxu0
        %v2277 = vadd.f32 0.0, %v2276
        %v2278 = vpop.f32.mrf.mxu0
        %v2279 = vpop.f32.mrf.mxu0
        %v2280 = vadd.f32 0.0, %v2279
        %v2281 = vpop.f32.mrf.mxu0
        %2282 = vmatprep.mubr.bf16.mxu0 0
        %2283 = vmatmul.mubr.bf16.gmra.mxu0 %v2143
        %v2284 = vpop.f32.mrf.mxu0
        %v2285 = vadd.f32 0.0, %v2284
        %v2286 = vpop.f32.mrf.mxu0
        %v2287 = vpop.f32.mrf.mxu0
        %v2288 = vadd.f32 0.0, %v2287
        %v2289 = vpop.f32.mrf.mxu0
        %2290 = vmatprep.mubr.bf16.mxu0 0
        %2291 = vmatmul.mubr.bf16.gmra.mxu0 %v2144
        %v2292 = vpop.f32.mrf.mxu0
        %v2293 = vadd.f32 0.0, %v2292
        %v2294 = vpop.f32.mrf.mxu0
        %v2295 = vpop.f32.mrf.mxu0
        %v2296 = vadd.f32 0.0, %v2295
        %v2297 = vpop.f32.mrf.mxu0
        %2298 = vmatprep.mubr.bf16.mxu0 0
        %2299 = vmatmul.mubr.bf16.gmra.mxu0 %v2145
        %v2300 = vpop.f32.mrf.mxu0
        %v2301 = vadd.f32 0.0, %v2300
        %v2302 = vpop.f32.mrf.mxu0
        %v2303 = vpop.f32.mrf.mxu0
        %v2304 = vadd.f32 0.0, %v2303
        %v2305 = vpop.f32.mrf.mxu0
        %2306 = vdwg.mxu0
        %v2307 = vxor.u32 %v2245, 2147483648
        %v2308 = vxor.u32 %v2248, 2147483648
        %v2309 = vxor.u32 %v2253, 2147483648
        %v2310 = vxor.u32 %v2256, 2147483648
        %v2311 = vxor.u32 %v2261, 2147483648
        %v2312 = vxor.u32 %v2264, 2147483648
        %v2313 = vxor.u32 %v2269, 2147483648
        %v2314 = vxor.u32 %v2272, 2147483648
        %v2315 = vxor.u32 %v2277, 2147483648
        %v2316 = vxor.u32 %v2280, 2147483648
        %v2317 = vxor.u32 %v2285, 2147483648
        %v2318 = vxor.u32 %v2288, 2147483648
        %v2319 = vxor.u32 %v2293, 2147483648
        %v2320 = vxor.u32 %v2296, 2147483648
        %v2321 = vxor.u32 %v2301, 2147483648
        %v2322 = vxor.u32 %v2304, 2147483648
        %v2323 = vmul.f32 %v2307, 1.442695
        %v2324 = vpow.pop %v2323
        %v2325 = vmul.f32 %v2308, 1.442695
        %v2326 = vpow.pop %v2325
        %v2327 = vmul.f32 %v2309, 1.442695
        %v2328 = vpow.pop %v2327
        %v2329 = vmul.f32 %v2310, 1.442695
        %v2330 = vpow.pop %v2329
        %v2331 = vmul.f32 %v2311, 1.442695
        %v2332 = vpow.pop %v2331
        %v2333 = vmul.f32 %v2312, 1.442695
        %v2334 = vpow.pop %v2333
        %v2335 = vmul.f32 %v2313, 1.442695
        %v2336 = vpow.pop %v2335
        %v2337 = vmul.f32 %v2314, 1.442695
        %v2338 = vpow.pop %v2337
        %v2339 = vmul.f32 %v2315, 1.442695
        %v2340 = vpow.pop %v2339
        %v2341 = vmul.f32 %v2316, 1.442695
        %v2342 = vpow.pop %v2341
        %v2343 = vmul.f32 %v2317, 1.442695
        %v2344 = vpow.pop %v2343
        %v2345 = vmul.f32 %v2318, 1.442695
        %v2346 = vpow.pop %v2345
        %v2347 = vmul.f32 %v2319, 1.442695
        %v2348 = vpow.pop %v2347
        %v2349 = vmul.f32 %v2320, 1.442695
        %v2350 = vpow.pop %v2349
        %v2351 = vmul.f32 %v2321, 1.442695
        %v2352 = vpow.pop %v2351
        %v2353 = vmul.f32 %v2322, 1.442695
        %v2354 = vpow.pop %v2353
        %v2355 = vadd.f32 %v2324, 1.0
        %v2356 = vadd.f32 %v2326, 1.0
        %v2357 = vadd.f32 %v2328, 1.0
        %v2358 = vadd.f32 %v2330, 1.0
        %v2359 = vadd.f32 %v2332, 1.0
        %v2360 = vadd.f32 %v2334, 1.0
        %v2361 = vadd.f32 %v2336, 1.0
        %v2362 = vadd.f32 %v2338, 1.0
        %v2363 = vadd.f32 %v2340, 1.0
        %v2364 = vadd.f32 %v2342, 1.0
        %v2365 = vadd.f32 %v2344, 1.0
        %v2366 = vadd.f32 %v2346, 1.0
        %v2367 = vadd.f32 %v2348, 1.0
        %v2368 = vadd.f32 %v2350, 1.0
        %v2369 = vadd.f32 %v2352, 1.0
        %v2370 = vadd.f32 %v2354, 1.0
        %v2371 = vrcp.pop %v2355
        %v2372 = vmul.f32 1.0, %v2371
        %v2373 = vrcp.pop %v2356
        %v2374 = vmul.f32 1.0, %v2373
        %v2375 = vrcp.pop %v2357
        %v2376 = vmul.f32 1.0, %v2375
        %v2377 = vrcp.pop %v2358
        %v2378 = vmul.f32 1.0, %v2377
        %v2379 = vrcp.pop %v2359
        %v2380 = vmul.f32 1.0, %v2379
        %v2381 = vrcp.pop %v2360
        %v2382 = vmul.f32 1.0, %v2381
        %v2383 = vrcp.pop %v2361
        %v2384 = vmul.f32 1.0, %v2383
        %v2385 = vrcp.pop %v2362
        %v2386 = vmul.f32 1.0, %v2385
        %v2387 = vrcp.pop %v2363
        %v2388 = vmul.f32 1.0, %v2387
        %v2389 = vrcp.pop %v2364
        %v2390 = vmul.f32 1.0, %v2389
        %v2391 = vrcp.pop %v2365
        %v2392 = vmul.f32 1.0, %v2391
        %v2393 = vrcp.pop %v2366
        %v2394 = vmul.f32 1.0, %v2393
        %v2395 = vrcp.pop %v2367
        %v2396 = vmul.f32 1.0, %v2395
        %v2397 = vrcp.pop %v2368
        %v2398 = vmul.f32 1.0, %v2397
        %v2399 = vrcp.pop %v2369
        %v2400 = vmul.f32 1.0, %v2399
        %v2401 = vrcp.pop %v2370
        %v2402 = vmul.f32 1.0, %v2401
        %v2403 = vmul.f32 %v2245, %v2372
        %v2404 = vmul.f32 %v2248, %v2374
        %v2405 = vmul.f32 %v2253, %v2376
        %v2406 = vmul.f32 %v2256, %v2378
        %v2407 = vmul.f32 %v2261, %v2380
        %v2408 = vmul.f32 %v2264, %v2382
        %v2409 = vmul.f32 %v2269, %v2384
        %v2410 = vmul.f32 %v2272, %v2386
        %v2411 = vmul.f32 %v2277, %v2388
        %v2412 = vmul.f32 %v2280, %v2390
        %v2413 = vmul.f32 %v2285, %v2392
        %v2414 = vmul.f32 %v2288, %v2394
        %v2415 = vmul.f32 %v2293, %v2396
        %v2416 = vmul.f32 %v2296, %v2398
        %v2417 = vmul.f32 %v2301, %v2400
        %v2418 = vmul.f32 %v2304, %v2402
        %2419 = vst [vmem:[#allocation8] sm:$0xff] %v2403
        %2420 = vst [vmem:[#allocation8 + $0x8] sm:$0xff] %v2404
        %2421 = vst [vmem:[#allocation8 + $0x10] sm:$0xff] %v2405
        %2422 = vst [vmem:[#allocation8 + $0x18] sm:$0xff] %v2406
        %2423 = vst [vmem:[#allocation8 + $0x20] sm:$0xff] %v2407
        %2424 = vst [vmem:[#allocation8 + $0x28] sm:$0xff] %v2408
        %2425 = vst [vmem:[#allocation8 + $0x30] sm:$0xff] %v2409
        %2426 = vst [vmem:[#allocation8 + $0x38] sm:$0xff] %v2410
        %2427 = vst [vmem:[#allocation8 + $0x40] sm:$0xff] %v2411
        %2428 = vst [vmem:[#allocation8 + $0x48] sm:$0xff] %v2412
        %2429 = vst [vmem:[#allocation8 + $0x50] sm:$0xff] %v2413
        %2430 = vst [vmem:[#allocation8 + $0x58] sm:$0xff] %v2414
        %2431 = vst [vmem:[#allocation8 + $0x60] sm:$0xff] %v2415
        %2432 = vst [vmem:[#allocation8 + $0x68] sm:$0xff] %v2416
        %2433 = vst [vmem:[#allocation8 + $0x70] sm:$0xff] %v2417
        %2434 = vst [vmem:[#allocation8 + $0x78] sm:$0xff] %v2418
        %p2435 = scmp.eq.s32.totalorder %s31, 1
        // Predicated region
        $region85: #{tpu_custom_call.1} parent=67 // pred_check
          %p2436 = pneg %p2435
        $region86: #{tpu_custom_call.1} parent=67 // pred_check_branch
          %2438 = sbr.rel (%p2436) target = $region88
        $region87: #{tpu_custom_call.1} parent=67 // pred_region
          %v2439 = vpack.c.bf16 %v2404, %v2403
          %v2440 = vpack.c.bf16 %v2406, %v2405
          %v2441 = vpack.c.bf16 %v2408, %v2407
          %v2442 = vpack.c.bf16 %v2410, %v2409
          %v2443 = vpack.c.bf16 %v2412, %v2411
          %v2444 = vpack.c.bf16 %v2414, %v2413
          %v2445 = vpack.c.bf16 %v2416, %v2415
          %v2446 = vpack.c.bf16 %v2418, %v2417
          %v2447 = vld [vmem:[%s9] sm:$0xf]
          %v2448 = vld [vmem:[%s9 + $0x4] sm:$0xf]
          %v2449 = vld [vmem:[%s9 + $0x8] sm:$0xf]
          %v2450 = vld [vmem:[%s9 + $0xc] sm:$0xf]
          %v2451 = vld [vmem:[%s9 + $0x10] sm:$0xf]
          %v2452 = vld [vmem:[%s9 + $0x14] sm:$0xf]
          %v2453 = vld [vmem:[%s9 + $0x18] sm:$0xf]
          %v2454 = vld [vmem:[%s9 + $0x1c] sm:$0xf]
          %v2455 = vld [vmem:[%s9 + $0x20] sm:$0xf]
          %v2456 = vld [vmem:[%s9 + $0x24] sm:$0xf]
          %v2457 = vld [vmem:[%s9 + $0x28] sm:$0xf]
          %v2458 = vld [vmem:[%s9 + $0x2c] sm:$0xf]
          %v2459 = vld [vmem:[%s9 + $0x30] sm:$0xf]
          %v2460 = vld [vmem:[%s9 + $0x34] sm:$0xf]
          %v2461 = vld [vmem:[%s9 + $0x38] sm:$0xf]
          %v2462 = vld [vmem:[%s9 + $0x3c] sm:$0xf]
          %v2479 = vunpack.c.l.b16 %v2447
          %v2480 = vunpack.c.l.b16 %v2448
          %v2481 = vunpack.c.l.b16 %v2449
          %v2482 = vunpack.c.l.b16 %v2450
          %v2483 = vunpack.c.l.b16 %v2451
          %v2484 = vunpack.c.l.b16 %v2452
          %v2485 = vunpack.c.l.b16 %v2453
          %v2486 = vunpack.c.l.b16 %v2454
          %v2487 = vunpack.c.l.b16 %v2455
          %v2488 = vunpack.c.l.b16 %v2456
          %v2489 = vunpack.c.l.b16 %v2457
          %v2490 = vunpack.c.l.b16 %v2458
          %v2491 = vunpack.c.l.b16 %v2459
          %v2492 = vunpack.c.l.b16 %v2460
          %v2493 = vunpack.c.l.b16 %v2461
          %v2494 = vunpack.c.l.b16 %v2462
          %v2495 = vpack.c.b16 %v2480, %v2479
          %v2496 = vpack.c.b16 %v2482, %v2481
          %v2497 = vpack.c.b16 %v2484, %v2483
          %v2498 = vpack.c.b16 %v2486, %v2485
          %v2499 = vpack.c.b16 %v2488, %v2487
          %v2500 = vpack.c.b16 %v2490, %v2489
          %v2501 = vpack.c.b16 %v2492, %v2491
          %v2502 = vpack.c.b16 %v2494, %v2493
          %2511 = vmatprep.subr.bf16.mxu0 0
          %2512 = vmatpush1.bf16.msra.mxu0 %v2502
          %2513 = vmatprep.subr.bf16.mxu0 0
          %2514 = vmatpush1.bf16.msra.mxu0 %v2501
          %2515 = vmatprep.subr.bf16.mxu0 0
          %2516 = vmatpush1.bf16.msra.mxu0 %v2500
          %2517 = vmatprep.subr.bf16.mxu0 0
          %2518 = vmatpush1.bf16.msra.mxu0 %v2499
          %2519 = vmatprep.subr.bf16.mxu0 0
          %2520 = vmatpush1.bf16.msra.mxu0 %v2498
          %2521 = vmatprep.subr.bf16.mxu0 0
          %2522 = vmatpush1.bf16.msra.mxu0 %v2497
          %2523 = vmatprep.subr.bf16.mxu0 0
          %2524 = vmatpush1.bf16.msra.mxu0 %v2496
          %2525 = vmatprep.subr.bf16.mxu0 0
          %2526 = vmatpush1.bf16.msra.mxu0 %v2495
          %2527 = vmatprep.subr.bf16.mxu0 0
          %2528 = vmatpush2.bf16.msra.mxu0 0
          %2529 = vmatprep.subr.bf16.mxu0 0
          %2530 = vmatpush2.bf16.msra.mxu0 0
          %2531 = vmatprep.subr.bf16.mxu0 0
          %2532 = vmatpush2.bf16.msra.mxu0 0
          %2533 = vmatprep.subr.bf16.mxu0 0
          %2534 = vmatpush2.bf16.msra.mxu0 0
          %2535 = vmatprep.subr.bf16.mxu0 0
          %2536 = vmatpush2.bf16.msra.mxu0 0
          %2537 = vmatprep.subr.bf16.mxu0 0
          %2538 = vmatpush2.bf16.msra.mxu0 0
          %2539 = vmatprep.subr.bf16.mxu0 0
          %2540 = vmatpush2.bf16.msra.mxu0 0
          %2541 = vmatprep.subr.bf16.mxu0 0
          %2542 = vmatpush2.bf16.msra.mxu0 0
          %2543 = vmatprep.mubr.bf16.mxu0 0
          %2544 = vmatmul.mubr.bf16.gmra.mxu0 %v2439
          %v2545 = vpop.f32.mrf.mxu0
          %v2546 = vadd.f32 0.0, %v2545
          %v2547 = vpop.f32.mrf.mxu0
          %v2548 = vpop.f32.mrf.mxu0
          %v2549 = vadd.f32 0.0, %v2548
          %v2550 = vpop.f32.mrf.mxu0
          %2551 = vmatprep.mubr.bf16.mxu0 0
          %2552 = vmatmul.mubr.bf16.gmra.mxu0 %v2440
          %v2553 = vpop.f32.mrf.mxu0
          %v2554 = vadd.f32 0.0, %v2553
          %v2555 = vpop.f32.mrf.mxu0
          %v2556 = vpop.f32.mrf.mxu0
          %v2557 = vadd.f32 0.0, %v2556
          %v2558 = vpop.f32.mrf.mxu0
          %2559 = vmatprep.mubr.bf16.mxu0 0
          %2560 = vmatmul.mubr.bf16.gmra.mxu0 %v2441
          %v2561 = vpop.f32.mrf.mxu0
          %v2562 = vadd.f32 0.0, %v2561
          %v2563 = vpop.f32.mrf.mxu0
          %v2564 = vpop.f32.mrf.mxu0
          %v2565 = vadd.f32 0.0, %v2564
          %v2566 = vpop.f32.mrf.mxu0
          %2567 = vmatprep.mubr.bf16.mxu0 0
          %2568 = vmatmul.mubr.bf16.gmra.mxu0 %v2442
          %v2569 = vpop.f32.mrf.mxu0
          %v2570 = vadd.f32 0.0, %v2569
          %v2571 = vpop.f32.mrf.mxu0
          %v2572 = vpop.f32.mrf.mxu0
          %v2573 = vadd.f32 0.0, %v2572
          %v2574 = vpop.f32.mrf.mxu0
          %2575 = vmatprep.mubr.bf16.mxu0 0
          %2576 = vmatmul.mubr.bf16.gmra.mxu0 %v2443
          %v2577 = vpop.f32.mrf.mxu0
          %v2578 = vadd.f32 0.0, %v2577
          %v2579 = vpop.f32.mrf.mxu0
          %v2580 = vpop.f32.mrf.mxu0
          %v2581 = vadd.f32 0.0, %v2580
          %v2582 = vpop.f32.mrf.mxu0
          %2583 = vmatprep.mubr.bf16.mxu0 0
          %2584 = vmatmul.mubr.bf16.gmra.mxu0 %v2444
          %v2585 = vpop.f32.mrf.mxu0
          %v2586 = vadd.f32 0.0, %v2585
          %v2587 = vpop.f32.mrf.mxu0
          %v2588 = vpop.f32.mrf.mxu0
          %v2589 = vadd.f32 0.0, %v2588
          %v2590 = vpop.f32.mrf.mxu0
          %2591 = vmatprep.mubr.bf16.mxu0 0
          %2592 = vmatmul.mubr.bf16.gmra.mxu0 %v2445
          %v2593 = vpop.f32.mrf.mxu0
          %v2594 = vadd.f32 0.0, %v2593
          %v2595 = vpop.f32.mrf.mxu0
          %v2596 = vpop.f32.mrf.mxu0
          %v2597 = vadd.f32 0.0, %v2596
          %v2598 = vpop.f32.mrf.mxu0
          %2599 = vmatprep.mubr.bf16.mxu0 0
          %2600 = vmatmul.mubr.bf16.gmra.mxu0 %v2446
          %v2601 = vpop.f32.mrf.mxu0
          %v2602 = vadd.f32 0.0, %v2601
          %v2603 = vpop.f32.mrf.mxu0
          %v2604 = vpop.f32.mrf.mxu0
          %v2605 = vadd.f32 0.0, %v2604
          %v2606 = vpop.f32.mrf.mxu0
          %2607 = vdwg.mxu0
          %v2608 = vpack.c.bf16 %v2549, %v2546
          %v2609 = vpack.c.bf16 %v2557, %v2554
          %v2610 = vpack.c.bf16 %v2565, %v2562
          %v2611 = vpack.c.bf16 %v2573, %v2570
          %v2612 = vpack.c.bf16 %v2581, %v2578
          %v2613 = vpack.c.bf16 %v2589, %v2586
          %v2614 = vpack.c.bf16 %v2597, %v2594
          %v2615 = vpack.c.bf16 %v2605, %v2602
          %v2616 = vld [vmem:[#allocation5] sm:$0xf]
          %v2617 = vld [vmem:[#allocation5 + $0x4] sm:$0xf]
          %v2618 = vld [vmem:[#allocation5 + $0x8] sm:$0xf]
          %v2619 = vld [vmem:[#allocation5 + $0xc] sm:$0xf]
          %v2620 = vld [vmem:[#allocation5 + $0x10] sm:$0xf]
          %v2621 = vld [vmem:[#allocation5 + $0x14] sm:$0xf]
          %v2622 = vld [vmem:[#allocation5 + $0x18] sm:$0xf]
          %v2623 = vld [vmem:[#allocation5 + $0x1c] sm:$0xf]
          %v2624 = vld [vmem:[#allocation5 + $0x20] sm:$0xf]
          %v2625 = vld [vmem:[#allocation5 + $0x24] sm:$0xf]
          %v2626 = vld [vmem:[#allocation5 + $0x28] sm:$0xf]
          %v2627 = vld [vmem:[#allocation5 + $0x2c] sm:$0xf]
          %v2628 = vld [vmem:[#allocation5 + $0x30] sm:$0xf]
          %v2629 = vld [vmem:[#allocation5 + $0x34] sm:$0xf]
          %v2630 = vld [vmem:[#allocation5 + $0x38] sm:$0xf]
          %v2631 = vld [vmem:[#allocation5 + $0x3c] sm:$0xf]
          %v2648 = vunpack.c.l.b16 %v2616
          %v2649 = vunpack.c.l.b16 %v2617
          %v2650 = vunpack.c.l.b16 %v2618
          %v2651 = vunpack.c.l.b16 %v2619
          %v2652 = vunpack.c.l.b16 %v2620
          %v2653 = vunpack.c.l.b16 %v2621
          %v2654 = vunpack.c.l.b16 %v2622
          %v2655 = vunpack.c.l.b16 %v2623
          %v2656 = vunpack.c.l.b16 %v2624
          %v2657 = vunpack.c.l.b16 %v2625
          %v2658 = vunpack.c.l.b16 %v2626
          %v2659 = vunpack.c.l.b16 %v2627
          %v2660 = vunpack.c.l.b16 %v2628
          %v2661 = vunpack.c.l.b16 %v2629
          %v2662 = vunpack.c.l.b16 %v2630
          %v2663 = vunpack.c.l.b16 %v2631
          %v2664 = vpack.c.b16 %v2649, %v2648
          %v2665 = vpack.c.b16 %v2651, %v2650
          %v2666 = vpack.c.b16 %v2653, %v2652
          %v2667 = vpack.c.b16 %v2655, %v2654
          %v2668 = vpack.c.b16 %v2657, %v2656
          %v2669 = vpack.c.b16 %v2659, %v2658
          %v2670 = vpack.c.b16 %v2661, %v2660
          %v2671 = vpack.c.b16 %v2663, %v2662
          %2680 = vmatprep.subr.bf16.mxu0 0
          %2681 = vmatpush1.bf16.msra.mxu0 %v2671
          %2682 = vmatprep.subr.bf16.mxu0 0
          %2683 = vmatpush1.bf16.msra.mxu0 %v2670
          %2684 = vmatprep.subr.bf16.mxu0 0
          %2685 = vmatpush1.bf16.msra.mxu0 %v2669
          %2686 = vmatprep.subr.bf16.mxu0 0
          %2687 = vmatpush1.bf16.msra.mxu0 %v2668
          %2688 = vmatprep.subr.bf16.mxu0 0
          %2689 = vmatpush1.bf16.msra.mxu0 %v2667
          %2690 = vmatprep.subr.bf16.mxu0 0
          %2691 = vmatpush1.bf16.msra.mxu0 %v2666
          %2692 = vmatprep.subr.bf16.mxu0 0
          %2693 = vmatpush1.bf16.msra.mxu0 %v2665
          %2694 = vmatprep.subr.bf16.mxu0 0
          %2695 = vmatpush1.bf16.msra.mxu0 %v2664
          %2696 = vmatprep.subr.bf16.mxu0 0
          %2697 = vmatpush2.bf16.msra.mxu0 0
          %2698 = vmatprep.subr.bf16.mxu0 0
          %2699 = vmatpush2.bf16.msra.mxu0 0
          %2700 = vmatprep.subr.bf16.mxu0 0
          %2701 = vmatpush2.bf16.msra.mxu0 0
          %2702 = vmatprep.subr.bf16.mxu0 0
          %2703 = vmatpush2.bf16.msra.mxu0 0
          %2704 = vmatprep.subr.bf16.mxu0 0
          %2705 = vmatpush2.bf16.msra.mxu0 0
          %2706 = vmatprep.subr.bf16.mxu0 0
          %2707 = vmatpush2.bf16.msra.mxu0 0
          %2708 = vmatprep.subr.bf16.mxu0 0
          %2709 = vmatpush2.bf16.msra.mxu0 0
          %2710 = vmatprep.subr.bf16.mxu0 0
          %2711 = vmatpush2.bf16.msra.mxu0 0
          %2712 = vmatprep.mubr.bf16.mxu0 0
          %2713 = vmatmul.mubr.bf16.gmra.mxu0 %v2439
          %v2714 = vpop.f32.mrf.mxu0
          %v2715 = vadd.f32 0.0, %v2714
          %v2716 = vpop.f32.mrf.mxu0
          %v2717 = vpop.f32.mrf.mxu0
          %v2718 = vadd.f32 0.0, %v2717
          %v2719 = vpop.f32.mrf.mxu0
          %2720 = vmatprep.mubr.bf16.mxu0 0
          %2721 = vmatmul.mubr.bf16.gmra.mxu0 %v2440
          %v2722 = vpop.f32.mrf.mxu0
          %v2723 = vadd.f32 0.0, %v2722
          %v2724 = vpop.f32.mrf.mxu0
          %v2725 = vpop.f32.mrf.mxu0
          %v2726 = vadd.f32 0.0, %v2725
          %v2727 = vpop.f32.mrf.mxu0
          %2728 = vmatprep.mubr.bf16.mxu0 0
          %2729 = vmatmul.mubr.bf16.gmra.mxu0 %v2441
          %v2730 = vpop.f32.mrf.mxu0
          %v2731 = vadd.f32 0.0, %v2730
          %v2732 = vpop.f32.mrf.mxu0
          %v2733 = vpop.f32.mrf.mxu0
          %v2734 = vadd.f32 0.0, %v2733
          %v2735 = vpop.f32.mrf.mxu0
          %2736 = vmatprep.mubr.bf16.mxu0 0
          %2737 = vmatmul.mubr.bf16.gmra.mxu0 %v2442
          %v2738 = vpop.f32.mrf.mxu0
          %v2739 = vadd.f32 0.0, %v2738
          %v2740 = vpop.f32.mrf.mxu0
          %v2741 = vpop.f32.mrf.mxu0
          %v2742 = vadd.f32 0.0, %v2741
          %v2743 = vpop.f32.mrf.mxu0
          %2744 = vmatprep.mubr.bf16.mxu0 0
          %2745 = vmatmul.mubr.bf16.gmra.mxu0 %v2443
          %v2746 = vpop.f32.mrf.mxu0
          %v2747 = vadd.f32 0.0, %v2746
          %v2748 = vpop.f32.mrf.mxu0
          %v2749 = vpop.f32.mrf.mxu0
          %v2750 = vadd.f32 0.0, %v2749
          %v2751 = vpop.f32.mrf.mxu0
          %2752 = vmatprep.mubr.bf16.mxu0 0
          %2753 = vmatmul.mubr.bf16.gmra.mxu0 %v2444
          %v2754 = vpop.f32.mrf.mxu0
          %v2755 = vadd.f32 0.0, %v2754
          %v2756 = vpop.f32.mrf.mxu0
          %v2757 = vpop.f32.mrf.mxu0
          %v2758 = vadd.f32 0.0, %v2757
          %v2759 = vpop.f32.mrf.mxu0
          %2760 = vmatprep.mubr.bf16.mxu0 0
          %2761 = vmatmul.mubr.bf16.gmra.mxu0 %v2445
          %v2762 = vpop.f32.mrf.mxu0
          %v2763 = vadd.f32 0.0, %v2762
          %v2764 = vpop.f32.mrf.mxu0
          %v2765 = vpop.f32.mrf.mxu0
          %v2766 = vadd.f32 0.0, %v2765
          %v2767 = vpop.f32.mrf.mxu0
          %2768 = vmatprep.mubr.bf16.mxu0 0
          %2769 = vmatmul.mubr.bf16.gmra.mxu0 %v2446
          %v2770 = vpop.f32.mrf.mxu0
          %v2771 = vadd.f32 0.0, %v2770
          %v2772 = vpop.f32.mrf.mxu0
          %v2773 = vpop.f32.mrf.mxu0
          %v2774 = vadd.f32 0.0, %v2773
          %v2775 = vpop.f32.mrf.mxu0
          %2776 = vdwg.mxu0
          %v2777 = vpack.c.bf16 %v2718, %v2715
          %v2778 = vpack.c.bf16 %v2726, %v2723
          %v2779 = vpack.c.bf16 %v2734, %v2731
          %v2780 = vpack.c.bf16 %v2742, %v2739
          %v2781 = vpack.c.bf16 %v2750, %v2747
          %v2782 = vpack.c.bf16 %v2758, %v2755
          %v2783 = vpack.c.bf16 %v2766, %v2763
          %v2784 = vpack.c.bf16 %v2774, %v2771
          %v2785 = vld [vmem:[%s8] sm:$0xf]
          %2786 = vmatprep.subr.bf16.mxu0 0
          %2787 = vmatpush1.bf16.xpose.msra.mxu0 %v2615
          %2788 = vmatprep.subr.bf16.mxu0 0
          %2789 = vmatpush1.bf16.xpose.msra.mxu0 %v2614
          %2790 = vmatprep.subr.bf16.mxu0 0
          %2791 = vmatpush1.bf16.xpose.msra.mxu0 %v2613
          %2792 = vmatprep.subr.bf16.mxu0 0
          %2793 = vmatpush1.bf16.xpose.msra.mxu0 %v2612
          %2794 = vmatprep.subr.bf16.mxu0 0
          %2795 = vmatpush1.bf16.xpose.msra.mxu0 %v2611
          %2796 = vmatprep.subr.bf16.mxu0 0
          %2797 = vmatpush1.bf16.xpose.msra.mxu0 %v2610
          %2798 = vmatprep.subr.bf16.mxu0 0
          %2799 = vmatpush1.bf16.xpose.msra.mxu0 %v2609
          %2800 = vmatprep.subr.bf16.mxu0 0
          %2801 = vmatpush1.bf16.xpose.msra.mxu0 %v2608
          %2802 = vmatprep.subr.bf16.mxu0 0
          %2803 = vmatpush2.bf16.xpose.msra.mxu0 0
          %2804 = vmatprep.subr.bf16.mxu0 0
          %2805 = vmatpush2.bf16.xpose.msra.mxu0 0
          %2806 = vmatprep.subr.bf16.mxu0 0
          %2807 = vmatpush2.bf16.xpose.msra.mxu0 0
          %2808 = vmatprep.subr.bf16.mxu0 0
          %2809 = vmatpush2.bf16.xpose.msra.mxu0 0
          %2810 = vmatprep.subr.bf16.mxu0 0
          %2811 = vmatpush2.bf16.xpose.msra.mxu0 0
          %2812 = vmatprep.subr.bf16.mxu0 0
          %2813 = vmatpush2.bf16.xpose.msra.mxu0 0
          %2814 = vmatprep.subr.bf16.mxu0 0
          %2815 = vmatpush2.bf16.xpose.msra.mxu0 0
          %2816 = vmatprep.subr.bf16.mxu0 0
          %2817 = vmatpush2.bf16.xpose.msra.mxu0 0
          %2818 = vmatprep.mubr.bf16.mxu0 0
          %2819 = vmatmul.mubr.bf16.gmra.mxu0 %v2785
          %v2820 = vpop.f32.mrf.mxu0
          %v2821 = vadd.f32 0.0, %v2820
          %v2822 = vpop.f32.mrf.mxu0
          %v2823 = vpop.f32.mrf.mxu0
          %v2824 = vpop.f32.mrf.mxu0
          %2825 = vdwg.mxu0
          %v2826 = vmul.f32 %v2821, 0.088388346
          %2827 = vmax.xlane.f32.xlu0 %v2826
          %v2828 = vpop.xlane.xlu0 %2827
          %v2829 = vsub.f32 %v2826, %v2828
          %v2830 = vmul.f32 %v2829, 1.442695
          %v2831 = vpow.pop %v2830
          %2832 = vadd.xlane.f32.xlu0 %v2831
          %v2833 = vpop.xlane.xlu0 %2832
          %v2834 = vrcp.pop %v2833
          %v2835 = vmul.f32 %v2831, %v2834
          %v2836 = vpack.c.bf16 %v2835, %v2835
          %2837 = vmatprep.subr.bf16.mxu0 0
          %2838 = vmatpush1.bf16.msra.mxu0 %v2784
          %2839 = vmatprep.subr.bf16.mxu0 0
          %2840 = vmatpush1.bf16.msra.mxu0 %v2783
          %2841 = vmatprep.subr.bf16.mxu0 0
          %2842 = vmatpush1.bf16.msra.mxu0 %v2782
          %2843 = vmatprep.subr.bf16.mxu0 0
          %2844 = vmatpush1.bf16.msra.mxu0 %v2781
          %2845 = vmatprep.subr.bf16.mxu0 0
          %2846 = vmatpush1.bf16.msra.mxu0 %v2780
          %2847 = vmatprep.subr.bf16.mxu0 0
          %2848 = vmatpush1.bf16.msra.mxu0 %v2779
          %2849 = vmatprep.subr.bf16.mxu0 0
          %2850 = vmatpush1.bf16.msra.mxu0 %v2778
          %2851 = vmatprep.subr.bf16.mxu0 0
          %2852 = vmatpush1.bf16.msra.mxu0 %v2777
          %2853 = vmatprep.subr.bf16.mxu0 0
          %2854 = vmatpush2.bf16.msra.mxu0 0
          %2855 = vmatprep.subr.bf16.mxu0 0
          %2856 = vmatpush2.bf16.msra.mxu0 0
          %2857 = vmatprep.subr.bf16.mxu0 0
          %2858 = vmatpush2.bf16.msra.mxu0 0
          %2859 = vmatprep.subr.bf16.mxu0 0
          %2860 = vmatpush2.bf16.msra.mxu0 0
          %2861 = vmatprep.subr.bf16.mxu0 0
          %2862 = vmatpush2.bf16.msra.mxu0 0
          %2863 = vmatprep.subr.bf16.mxu0 0
          %2864 = vmatpush2.bf16.msra.mxu0 0
          %2865 = vmatprep.subr.bf16.mxu0 0
          %2866 = vmatpush2.bf16.msra.mxu0 0
          %2867 = vmatprep.subr.bf16.mxu0 0
          %2868 = vmatpush2.bf16.msra.mxu0 0
          %2869 = vmatprep.mubr.bf16.mxu0 0
          %2870 = vmatmul.mubr.bf16.gmra.mxu0 %v2836
          %v2871 = vpop.f32.mrf.mxu0
          %v2872 = vadd.f32 0.0, %v2871
          %v2873 = vpop.f32.mrf.mxu0
          %v2874 = vpop.f32.mrf.mxu0
          %v2875 = vpop.f32.mrf.mxu0
          %2876 = vdwg.mxu0
          %v2877 = vpack.c.bf16 %v2872, %v2872
          %v2878 = vld [vmem:[#allocation7] sm:$0xf]
          %v2879 = vld [vmem:[#allocation7 + $0x4] sm:$0xf]
          %v2880 = vld [vmem:[#allocation7 + $0x8] sm:$0xf]
          %v2881 = vld [vmem:[#allocation7 + $0xc] sm:$0xf]
          %v2882 = vld [vmem:[#allocation7 + $0x10] sm:$0xf]
          %v2883 = vld [vmem:[#allocation7 + $0x14] sm:$0xf]
          %v2884 = vld [vmem:[#allocation7 + $0x18] sm:$0xf]
          %v2885 = vld [vmem:[#allocation7 + $0x1c] sm:$0xf]
          %v2886 = vld [vmem:[#allocation7 + $0x20] sm:$0xf]
          %v2887 = vld [vmem:[#allocation7 + $0x24] sm:$0xf]
          %v2888 = vld [vmem:[#allocation7 + $0x28] sm:$0xf]
          %v2889 = vld [vmem:[#allocation7 + $0x2c] sm:$0xf]
          %v2890 = vld [vmem:[#allocation7 + $0x30] sm:$0xf]
          %v2891 = vld [vmem:[#allocation7 + $0x34] sm:$0xf]
          %v2892 = vld [vmem:[#allocation7 + $0x38] sm:$0xf]
          %v2893 = vld [vmem:[#allocation7 + $0x3c] sm:$0xf]
          %v2910 = vunpack.c.l.b16 %v2878
          %v2911 = vunpack.c.l.b16 %v2879
          %v2912 = vunpack.c.l.b16 %v2880
          %v2913 = vunpack.c.l.b16 %v2881
          %v2914 = vunpack.c.l.b16 %v2882
          %v2915 = vunpack.c.l.b16 %v2883
          %v2916 = vunpack.c.l.b16 %v2884
          %v2917 = vunpack.c.l.b16 %v2885
          %v2918 = vunpack.c.l.b16 %v2886
          %v2919 = vunpack.c.l.b16 %v2887
          %v2920 = vunpack.c.l.b16 %v2888
          %v2921 = vunpack.c.l.b16 %v2889
          %v2922 = vunpack.c.l.b16 %v2890
          %v2923 = vunpack.c.l.b16 %v2891
          %v2924 = vunpack.c.l.b16 %v2892
          %v2925 = vunpack.c.l.b16 %v2893
          %v2926 = vpack.c.b16 %v2911, %v2910
          %v2927 = vpack.c.b16 %v2913, %v2912
          %v2928 = vpack.c.b16 %v2915, %v2914
          %v2929 = vpack.c.b16 %v2917, %v2916
          %v2930 = vpack.c.b16 %v2919, %v2918
          %v2931 = vpack.c.b16 %v2921, %v2920
          %v2932 = vpack.c.b16 %v2923, %v2922
          %v2933 = vpack.c.b16 %v2925, %v2924
          %2942 = vmatprep.subr.bf16.mxu0 0
          %2943 = vmatpush1.bf16.msra.mxu0 %v2933
          %2944 = vmatprep.subr.bf16.mxu0 0
          %2945 = vmatpush1.bf16.msra.mxu0 %v2932
          %2946 = vmatprep.subr.bf16.mxu0 0
          %2947 = vmatpush1.bf16.msra.mxu0 %v2931
          %2948 = vmatprep.subr.bf16.mxu0 0
          %2949 = vmatpush1.bf16.msra.mxu0 %v2930
          %2950 = vmatprep.subr.bf16.mxu0 0
          %2951 = vmatpush1.bf16.msra.mxu0 %v2929
          %2952 = vmatprep.subr.bf16.mxu0 0
          %2953 = vmatpush1.bf16.msra.mxu0 %v2928
          %2954 = vmatprep.subr.bf16.mxu0 0
          %2955 = vmatpush1.bf16.msra.mxu0 %v2927
          %2956 = vmatprep.subr.bf16.mxu0 0
          %2957 = vmatpush1.bf16.msra.mxu0 %v2926
          %2958 = vmatprep.subr.bf16.mxu0 0
          %2959 = vmatpush2.bf16.msra.mxu0 0
          %2960 = vmatprep.subr.bf16.mxu0 0
          %2961 = vmatpush2.bf16.msra.mxu0 0
          %2962 = vmatprep.subr.bf16.mxu0 0
          %2963 = vmatpush2.bf16.msra.mxu0 0
          %2964 = vmatprep.subr.bf16.mxu0 0
          %2965 = vmatpush2.bf16.msra.mxu0 0
          %2966 = vmatprep.subr.bf16.mxu0 0
          %2967 = vmatpush2.bf16.msra.mxu0 0
          %2968 = vmatprep.subr.bf16.mxu0 0
          %2969 = vmatpush2.bf16.msra.mxu0 0
          %2970 = vmatprep.subr.bf16.mxu0 0
          %2971 = vmatpush2.bf16.msra.mxu0 0
          %2972 = vmatprep.subr.bf16.mxu0 0
          %2973 = vmatpush2.bf16.msra.mxu0 0
          %2974 = vmatprep.mubr.bf16.mxu0 0
          %2975 = vmatmul.mubr.bf16.gmra.mxu0 %v2877
          %v2976 = vpop.f32.mrf.mxu0
          %v2977 = vadd.f32 0.0, %v2976
          %v2978 = vpop.f32.mrf.mxu0
          %v2979 = vpop.f32.mrf.mxu0
          %v2980 = vpop.f32.mrf.mxu0
          %2981 = vdwg.mxu0
          %2982 = vst [vmem:[#allocation9] sm:$0xff] %v2977
        $region88: #{tpu_custom_call.1} parent=67 // pred_fallthru
          _
        // Predicated region
        $region89: #{tpu_custom_call.1} parent=67 // pred_check
          %p2983 = pneg %p311
        $region90: #{tpu_custom_call.1} parent=67 // pred_check_branch
          %2985 = sbr.rel (%p2983) target = $region92
        $region91: #{tpu_custom_call.1} parent=67 // pred_region
          %s2987 = ssub.s32 2048, 2048
          %2988 = vsyncadd [#allocation4], %s2987
          %s2989 = sshll.u32 [#allocation8], 4
          %s2990 = int_to_ptr.vmem [resolvable:$true] %s2989
          %2995 = dma.vmem_to_hbm [thread:$0]  %s2990, 2048, %s12, [#allocation4], 128, 128, 8
        $region92: #{tpu_custom_call.1} parent=67 // pred_fallthru
          _
        // Predicated region
        $region93: #{tpu_custom_call.1} parent=67 // pred_check
          %p2996 = pneg %p332
        $region94: #{tpu_custom_call.1} parent=67 // pred_check_branch
          %2998 = sbr.rel (%p2996) target = $region96
        $region95: #{tpu_custom_call.1} parent=67 // pred_region
          %s3000 = ssub.s32 128, 128
          %3001 = vsyncadd [#allocation10], %s3000
          %s3003 = sshll.u32 [#allocation9], 4
          %s3004 = int_to_ptr.vmem [resolvable:$true] %s3003
          %3006 = dma.vmem_to_hbm [thread:$0]  %s3004, 128, %s13, [#allocation10]
        $region96: #{tpu_custom_call.1} parent=67 // pred_fallthru
          _
        // Predicated region
        $region97: #{tpu_custom_call.1} parent=67 // pred_check
          %p3007 = pneg %p311
        $region98: #{tpu_custom_call.1} parent=67 // pred_check_branch
          %3009 = sbr.rel (%p3007) target = $region100
        $region99: #{tpu_custom_call.1} parent=67 // pred_region
          %3010 = dma.done [#allocation4], 2048
        $region100: #{tpu_custom_call.1} parent=67 // pred_fallthru
          _
        // Predicated region
        $region101: #{tpu_custom_call.1} parent=67 // pred_check
          %p3011 = pneg %p332
        $region102: #{tpu_custom_call.1} parent=67 // pred_check_branch
          %3013 = sbr.rel (%p3011) target = $region104
        $region103: #{tpu_custom_call.1} parent=67 // pred_region
          %3014 = dma.done [#allocation10], 128
        $region104: #{tpu_custom_call.1} parent=67 // pred_fallthru
          _
      $region68: #{tpu_custom_call.1} parent=5 // pred_fallthru
        _
      %p3015 = scmp.le.s32.totalorder 2, %s26
      // Predicated region
      $region105: #{tpu_custom_call.1} parent=5 // pred_check
        %p3016 = pneg %p3015
      $region106: #{tpu_custom_call.1} parent=5 // pred_check_branch
        %3018 = sbr.rel (%p3016) target = $region108
      $region107: #{tpu_custom_call.1} parent=5 // pred_region
        %s3019 = ssub.s32 %s26, 2
      $region108: #{tpu_custom_call.1} parent=5 // pred_fallthru
        _
    $region6: #{tpu_custom_call.1} parent=1 // loop_footer
      %s30 = sadd.s32 1, %s26
    $region7: #{tpu_custom_call.1} parent=1 // loop_footer_branch
      %25 = sbr.rel target = $region3
    $region8: #{tpu_custom_call.1} parent=1 // loop_exit
      _
    %3020 = vsyncpa [#allocation3], 1
    %s3021 = scalar_lea.sflag [#allocation3], 1
    %3022 = vsyncpa %s3021, 1
    %3023 = vsyncpa [#allocation6], 1
    %3024 = vsyncpa [#allocation4], 1
    %s3025 = scalar_lea.sflag [#allocation4], 1
    %3026 = vsyncpa %s3025, 1
    %3027 = vsyncpa [#allocation10], 1

</llo_original>
